<compile_context>
chip_gen: v6e
topology: v6e:2x2x1
jax: 0.10.0
libtpu: 0.0.40
codegen_flags: <defaults>
</compile_context>

<pallas_src>
import functools

import jax
import jax.numpy as jnp
from jax.experimental import pallas as pl
from jax.experimental.pallas import tpu as pltpu  # noqa: F401  (TPU backend assumed)


# ----------------------------------------------------------------------------
# Fused Pallas kernel: the entire Q forward, fully VMEM-resident.
# ----------------------------------------------------------------------------
def _q_fused_kernel(x_ref,
                    c1w_ref, c1b_ref, c2w_ref, c2b_ref, c3w_ref, c3b_ref,
                    linw_ref, linb_ref,
                    f1w_ref, f1b_ref, f2w_ref, f2b_ref, f3w_ref, f3b_ref,
                    o_ref, *, batch, height, width):
    B, H, W = batch, height, width
    S = H * W                     # per-sample row stride of flattened activations
    f32 = jnp.float32

    def conv2x2_relu(a, w_ref, b_ref, h_in, w_in):
        """2x2 / stride-1 conv + bias + ReLU as 4 shifted-slab matmuls.

        `a` holds channel-last activations with rows indexed  b*S + h*W + w
        (W = ORIGINAL image width).  Returns a slab with the same row indexing;
        only rows with h < h_in-1 and w < w_in-1 are valid, and those are the
        only rows later layers ever read (garbage rows stay finite).
        """
        h_out, w_out = h_in - 1, w_in - 1
        n_rows = (B - 1) * S + (h_out - 1) * W + w_out
        cout = w_ref.shape[-1]
        acc = jnp.zeros((n_rows, cout), f32)
        for kh in range(2):
            for kw in range(2):
                off = kh * W + kw
                acc = acc + jnp.dot(a[off:off + n_rows, :],
                                    w_ref[kh * 2 + kw],
                                    preferred_element_type=f32)
        return jnp.maximum(acc + b_ref[...], 0.0)

    # --- CNN (all intermediates are VMEM/vreg values, never touch HBM) ------
    a = x_ref[...].astype(f32)                              # (B*H*W, Cin)
    a = conv2x2_relu(a, c1w_ref, c1b_ref, H, W)             # valid (H-1)x(W-1)x16
    a = conv2x2_relu(a, c2w_ref, c2b_ref, H - 1, W - 1)     # valid (H-2)x(W-2)x32
    a = conv2x2_relu(a, c3w_ref, c3b_ref, H - 2, W - 2)     # valid (H-3)x(W-3)x64

    hf, wf = H - 3, W - 3

    # --- Flatten + feature Linear + MLP head, per sample ---------------------
    for b in range(B):
        # Flatten + Linear fused: one (1,64)@(64,F) matmul per spatial position
        # against pre-permuted lin weights (matches PyTorch NCHW flatten order).
        feat = linb_ref[...]                                 # (1, feature_dim)
        for ho in range(hf):
            for wo in range(wf):
                row = b * S + ho * W + wo
                feat = feat + jnp.dot(a[row:row + 1, :],
                                      linw_ref[ho * wf + wo],
                                      preferred_element_type=f32)
        feat = jnp.maximum(feat, 0.0)

        h = jnp.maximum(jnp.dot(feat, f1w_ref[...], preferred_element_type=f32)
                        + f1b_ref[...], 0.0)
        h = jnp.maximum(jnp.dot(h, f2w_ref[...], preferred_element_type=f32)
                        + f2b_ref[...], 0.0)
        q = jnp.dot(h, f3w_ref[...], preferred_element_type=f32) + f3b_ref[...]

        o_ref[pl.ds(b, 1), :] = q.astype(o_ref.dtype)


# ----------------------------------------------------------------------------
# Forward wrapper: one tiny input transpose + one fused pallas_call.
# ----------------------------------------------------------------------------
def q_forward(kparams, x_nchw):
    """x_nchw: (B, C, H, W) float32 -> Q-values (B, action_dim)."""
    B, C, H, W = x_nchw.shape
    action_dim = kparams["fc3_w"].shape[-1]
    # Channel-last, spatially flattened activations: rows ordered (b, h, w).
    x_rows = x_nchw.transpose(0, 2, 3, 1).reshape(B * H * W, C)
    kernel = functools.partial(_q_fused_kernel, batch=B, height=H, width=W)
    return pl.pallas_call(
        kernel,
        out_shape=jax.ShapeDtypeStruct((B, action_dim), jnp.float32),
    )(x_rows,
      kparams["c1_w"], kparams["c1_b"],
      kparams["c2_w"], kparams["c2_b"],
      kparams["c3_w"], kparams["c3_b"],
      kparams["lin_w"], kparams["lin_b"],
      kparams["fc1_w"], kparams["fc1_b"],
      kparams["fc2_w"], kparams["fc2_b"],
      kparams["fc3_w"], kparams["fc3_b"])


# ----------------------------------------------------------------------------
# Parameter construction (PyTorch layouts) + one-time kernel-layout preparation.
# ----------------------------------------------------------------------------
def init_params(key, in_channels, H, W, feature_dim, hidden_dim, action_dim):
    keys = jax.random.split(key, 14)
    k = iter(keys)

    def u(kk, shape, fan_in):
        bound = 1.0 / jnp.sqrt(jnp.float32(fan_in))
        return jax.random.uniform(kk, shape, jnp.float32, -bound, bound)

    p = {}
    # cnn: Conv2d(Cin,16,2) -> Conv2d(16,32,2) -> Conv2d(32,64,2)  (OIHW)
    p["c1_w"] = u(next(k), (16, in_channels, 2, 2), in_channels * 4)
    p["c1_b"] = u(next(k), (16,), in_channels * 4)
    p["c2_w"] = u(next(k), (32, 16, 2, 2), 16 * 4)
    p["c2_b"] = u(next(k), (32,), 16 * 4)
    p["c3_w"] = u(next(k), (64, 32, 2, 2), 32 * 4)
    p["c3_b"] = u(next(k), (64,), 32 * 4)
    n_flatten = 64 * (H - 3) * (W - 3)
    # nn.Linear stores (out, in)
    p["lin_w"] = u(next(k), (feature_dim, n_flatten), n_flatten)
    p["lin_b"] = u(next(k), (feature_dim,), n_flatten)
    p["fc1_w"] = u(next(k), (hidden_dim, feature_dim), feature_dim)
    p["fc1_b"] = u(next(k), (hidden_dim,), feature_dim)
    p["fc2_w"] = u(next(k), (hidden_dim, hidden_dim), hidden_dim)
    p["fc2_b"] = u(next(k), (hidden_dim,), hidden_dim)
    p["fc3_w"] = u(next(k), (action_dim, hidden_dim), hidden_dim)
    p["fc3_b"] = u(next(k), (action_dim,), hidden_dim)
    return p


def prepare_params(p, H, W):
    """One-time weight layout transforms (hoisted out of the forward path)."""
    def conv_w(w):  # (Cout, Cin, 2, 2) -> (4, Cin, Cout), tap index = kh*2 + kw
        cout, cin = w.shape[0], w.shape[1]
        return jnp.transpose(w, (2, 3, 1, 0)).reshape(4, cin, cout)

    hf, wf = H - 3, W - 3
    cout3 = p["c3_w"].shape[0]
    fdim = p["lin_w"].shape[0]
    # PyTorch flatten of (B, C, Hf, Wf) is (c, h, w)-major; permute lin_w so the
    # kernel indexes it by spatial position pos = h*Wf + w with a (Cout3, fdim) inner matmul.
    lin_w = (p["lin_w"].reshape(fdim, cout3, hf, wf)
             .transpose(2, 3, 1, 0)                  # (hf, wf, cout3, fdim)
             .reshape(hf * wf, cout3, fdim))

    return {
        "c1_w": conv_w(p["c1_w"]), "c1_b": p["c1_b"].reshape(1, -1),
        "c2_w": conv_w(p["c2_w"]), "c2_b": p["c2_b"].reshape(1, -1),
        "c3_w": conv_w(p["c3_w"]), "c3_b": p["c3_b"].reshape(1, -1),
        "lin_w": lin_w, "lin_b": p["lin_b"].reshape(1, -1),
        "fc1_w": p["fc1_w"].T, "fc1_b": p["fc1_b"].reshape(1, -1),
        "fc2_w": p["fc2_w"].T, "fc2_b": p["fc2_b"].reshape(1, -1),
        "fc3_w": p["fc3_w"].T, "fc3_b": p["fc3_b"].reshape(1, -1),
    }


# ----------------------------------------------------------------------------
# Plain-JAX reference of the PyTorch module (for correctness validation).
# ----------------------------------------------------------------------------
def q_forward_reference(params_pt, x_nchw):
    h = x_nchw
    for i in (1, 2, 3):
        w = params_pt[f"c{i}_w"]
        b = params_pt[f"c{i}_b"]
        h = jax.lax.conv_general_dilated(
            h, w, window_strides=(1, 1), padding="VALID",
            dimension_numbers=("NCHW", "OIHW", "NCHW"))
        h = jnp.maximum(h + b[None, :, None, None], 0.0)
    h = h.reshape(h.shape[0], -1)
    h = jnp.maximum(h @ params_pt["lin_w"].T + params_pt["lin_b"], 0.0)
    h = jnp.maximum(h @ params_pt["fc1_w"].T + params_pt["fc1_b"], 0.0)
    h = jnp.maximum(h @ params_pt["fc2_w"].T + params_pt["fc2_b"], 0.0)
    return h @ params_pt["fc3_w"].T + params_pt["fc3_b"]


if __name__ == "__main__":
    # Small, Minigrid-like observation: (B, C, H, W) = (2, 3, 7, 7), 7 actions.
    B, C, H, W = 2, 3, 7, 7
    feature_dim, hidden_dim, action_dim = 128, 64, 7

    key = jax.random.PRNGKey(0)
    pkey, xkey = jax.random.split(key)
    params_pt = init_params(pkey, C, H, W, feature_dim, hidden_dim, action_dim)
    x = jax.random.uniform(xkey, (B, C, H, W), jnp.float32)

    kparams = prepare_params(params_pt, H, W)      # one-time weight-layout prep
    q_fn = jax.jit(q_forward)
    q_values = q_fn(kparams, x)
    jax.block_until_ready(q_values)
    assert q_values.shape == (B, action_dim), q_values.shape

    # Validate the fused kernel against the plain-JAX reference of the module.
    q_ref = q_forward_reference(params_pt, x)
    assert jnp.allclose(q_values, q_ref, atol=2e-2, rtol=2e-2), (
        float(jnp.max(jnp.abs(q_values - q_ref))))
    print("KERNEL_OK")
</pallas_src>

<mosaic_0001>
module attributes {stable_mosaic.version = 11 : i64} {
  func.func @_q_fused_kernel(%arg0: memref<98x3xf32, #tpu.memory_space<vmem>>, %arg1: memref<4x3x16xf32, #tpu.memory_space<vmem>>, %arg2: memref<1x16xf32, #tpu.memory_space<vmem>>, %arg3: memref<4x16x32xf32, #tpu.memory_space<vmem>>, %arg4: memref<1x32xf32, #tpu.memory_space<vmem>>, %arg5: memref<4x32x64xf32, #tpu.memory_space<vmem>>, %arg6: memref<1x64xf32, #tpu.memory_space<vmem>>, %arg7: memref<16x64x128xf32, #tpu.memory_space<vmem>>, %arg8: memref<1x128xf32, #tpu.memory_space<vmem>>, %arg9: memref<128x64xf32, #tpu.memory_space<vmem>>, %arg10: memref<1x64xf32, #tpu.memory_space<vmem>>, %arg11: memref<64x64xf32, #tpu.memory_space<vmem>>, %arg12: memref<1x64xf32, #tpu.memory_space<vmem>>, %arg13: memref<64x7xf32, #tpu.memory_space<vmem>>, %arg14: memref<1x7xf32, #tpu.memory_space<vmem>>, %arg15: memref<2x7xf32, #tpu.memory_space<vmem>>) attributes {dimension_semantics = [], scalar_prefetch = 0 : i64, scratch_operands = 0 : i64, tpu.core_type = #tpu.core_type<tc>} {
    %c0 = arith.constant 0 : index
    %c0_0 = arith.constant 0 : index
    %0 = vector.load %arg0[%c0, %c0_0] : memref<98x3xf32, #tpu.memory_space<vmem>>, vector<98x3xf32>
    %cst = arith.constant 0.000000e+00 : f32
    %1 = vector.broadcast %cst : f32 to vector<90x16xf32>
    %2 = vector.extract_strided_slice %0 {offsets = [0, 0], sizes = [90, 3], strides = [1, 1]} : vector<98x3xf32> to vector<90x3xf32>
    %c0_1 = arith.constant 0 : index
    %c0_2 = arith.constant 0 : index
    %c0_3 = arith.constant 0 : index
    %3 = vector.load %arg1[%c0_1, %c0_2, %c0_3] : memref<4x3x16xf32, #tpu.memory_space<vmem>>, vector<1x3x16xf32>
    %4 = vector.shape_cast %3 : vector<1x3x16xf32> to vector<3x16xf32>
    %cst_4 = arith.constant dense<0.000000e+00> : vector<90x16xf32>
    %5 = tpu.matmul %2, %4, %cst_4 {dimension_numbers = #tpu.dot_dimension_numbers<[1], [0], [0], [1], [0, 0, 1, 1], [], []>} : vector<90x3xf32>, vector<3x16xf32>, vector<90x16xf32> -> vector<90x16xf32>
    %6 = arith.addf %1, %5 : vector<90x16xf32>
    %7 = vector.extract_strided_slice %0 {offsets = [1, 0], sizes = [90, 3], strides = [1, 1]} : vector<98x3xf32> to vector<90x3xf32>
    %c1 = arith.constant 1 : index
    %c0_5 = arith.constant 0 : index
    %c0_6 = arith.constant 0 : index
    %8 = vector.load %arg1[%c1, %c0_5, %c0_6] : memref<4x3x16xf32, #tpu.memory_space<vmem>>, vector<1x3x16xf32>
    %9 = vector.shape_cast %8 : vector<1x3x16xf32> to vector<3x16xf32>
    %cst_7 = arith.constant dense<0.000000e+00> : vector<90x16xf32>
    %10 = tpu.matmul %7, %9, %cst_7 {dimension_numbers = #tpu.dot_dimension_numbers<[1], [0], [0], [1], [0, 0, 1, 1], [], []>} : vector<90x3xf32>, vector<3x16xf32>, vector<90x16xf32> -> vector<90x16xf32>
    %11 = arith.addf %6, %10 : vector<90x16xf32>
    %12 = vector.extract_strided_slice %0 {offsets = [7, 0], sizes = [90, 3], strides = [1, 1]} : vector<98x3xf32> to vector<90x3xf32>
    %c2 = arith.constant 2 : index
    %c0_8 = arith.constant 0 : index
    %c0_9 = arith.constant 0 : index
    %13 = vector.load %arg1[%c2, %c0_8, %c0_9] : memref<4x3x16xf32, #tpu.memory_space<vmem>>, vector<1x3x16xf32>
    %14 = vector.shape_cast %13 : vector<1x3x16xf32> to vector<3x16xf32>
    %cst_10 = arith.constant dense<0.000000e+00> : vector<90x16xf32>
    %15 = tpu.matmul %12, %14, %cst_10 {dimension_numbers = #tpu.dot_dimension_numbers<[1], [0], [0], [1], [0, 0, 1, 1], [], []>} : vector<90x3xf32>, vector<3x16xf32>, vector<90x16xf32> -> vector<90x16xf32>
    %16 = arith.addf %11, %15 : vector<90x16xf32>
    %17 = vector.extract_strided_slice %0 {offsets = [8, 0], sizes = [90, 3], strides = [1, 1]} : vector<98x3xf32> to vector<90x3xf32>
    %c3 = arith.constant 3 : index
    %c0_11 = arith.constant 0 : index
    %c0_12 = arith.constant 0 : index
    %18 = vector.load %arg1[%c3, %c0_11, %c0_12] : memref<4x3x16xf32, #tpu.memory_space<vmem>>, vector<1x3x16xf32>
    %19 = vector.shape_cast %18 : vector<1x3x16xf32> to vector<3x16xf32>
    %cst_13 = arith.constant dense<0.000000e+00> : vector<90x16xf32>
    %20 = tpu.matmul %17, %19, %cst_13 {dimension_numbers = #tpu.dot_dimension_numbers<[1], [0], [0], [1], [0, 0, 1, 1], [], []>} : vector<90x3xf32>, vector<3x16xf32>, vector<90x16xf32> -> vector<90x16xf32>
    %21 = arith.addf %16, %20 : vector<90x16xf32>
    %c0_14 = arith.constant 0 : index
    %c0_15 = arith.constant 0 : index
    %22 = vector.load %arg2[%c0_14, %c0_15] : memref<1x16xf32, #tpu.memory_space<vmem>>, vector<1x16xf32>
    %23 = vector.broadcast %22 : vector<1x16xf32> to vector<90x16xf32>
    %24 = arith.addf %21, %23 : vector<90x16xf32>
    %cst_16 = arith.constant 0.000000e+00 : f32
    %25 = vector.broadcast %cst_16 : f32 to vector<90x16xf32>
    %26 = arith.maximumf %24, %25 : vector<90x16xf32>
    %cst_17 = arith.constant 0.000000e+00 : f32
    %27 = vector.broadcast %cst_17 : f32 to vector<82x32xf32>
    %28 = vector.extract_strided_slice %26 {offsets = [0, 0], sizes = [82, 16], strides = [1, 1]} : vector<90x16xf32> to vector<82x16xf32>
    %c0_18 = arith.constant 0 : index
    %c0_19 = arith.constant 0 : index
    %c0_20 = arith.constant 0 : index
    %29 = vector.load %arg3[%c0_18, %c0_19, %c0_20] : memref<4x16x32xf32, #tpu.memory_space<vmem>>, vector<1x16x32xf32>
    %30 = vector.shape_cast %29 : vector<1x16x32xf32> to vector<16x32xf32>
    %cst_21 = arith.constant dense<0.000000e+00> : vector<82x32xf32>
    %31 = tpu.matmul %28, %30, %cst_21 {dimension_numbers = #tpu.dot_dimension_numbers<[1], [0], [0], [1], [0, 0, 1, 1], [], []>} : vector<82x16xf32>, vector<16x32xf32>, vector<82x32xf32> -> vector<82x32xf32>
    %32 = arith.addf %27, %31 : vector<82x32xf32>
    %33 = vector.extract_strided_slice %26 {offsets = [1, 0], sizes = [82, 16], strides = [1, 1]} : vector<90x16xf32> to vector<82x16xf32>
    %c1_22 = arith.constant 1 : index
    %c0_23 = arith.constant 0 : index
    %c0_24 = arith.constant 0 : index
    %34 = vector.load %arg3[%c1_22, %c0_23, %c0_24] : memref<4x16x32xf32, #tpu.memory_space<vmem>>, vector<1x16x32xf32>
    %35 = vector.shape_cast %34 : vector<1x16x32xf32> to vector<16x32xf32>
    %cst_25 = arith.constant dense<0.000000e+00> : vector<82x32xf32>
    %36 = tpu.matmul %33, %35, %cst_25 {dimension_numbers = #tpu.dot_dimension_numbers<[1], [0], [0], [1], [0, 0, 1, 1], [], []>} : vector<82x16xf32>, vector<16x32xf32>, vector<82x32xf32> -> vector<82x32xf32>
    %37 = arith.addf %32, %36 : vector<82x32xf32>
    %38 = vector.extract_strided_slice %26 {offsets = [7, 0], sizes = [82, 16], strides = [1, 1]} : vector<90x16xf32> to vector<82x16xf32>
    %c2_26 = arith.constant 2 : index
    %c0_27 = arith.constant 0 : index
    %c0_28 = arith.constant 0 : index
    %39 = vector.load %arg3[%c2_26, %c0_27, %c0_28] : memref<4x16x32xf32, #tpu.memory_space<vmem>>, vector<1x16x32xf32>
    %40 = vector.shape_cast %39 : vector<1x16x32xf32> to vector<16x32xf32>
    %cst_29 = arith.constant dense<0.000000e+00> : vector<82x32xf32>
    %41 = tpu.matmul %38, %40, %cst_29 {dimension_numbers = #tpu.dot_dimension_numbers<[1], [0], [0], [1], [0, 0, 1, 1], [], []>} : vector<82x16xf32>, vector<16x32xf32>, vector<82x32xf32> -> vector<82x32xf32>
    %42 = arith.addf %37, %41 : vector<82x32xf32>
    %43 = vector.extract_strided_slice %26 {offsets = [8, 0], sizes = [82, 16], strides = [1, 1]} : vector<90x16xf32> to vector<82x16xf32>
    %c3_30 = arith.constant 3 : index
    %c0_31 = arith.constant 0 : index
    %c0_32 = arith.constant 0 : index
    %44 = vector.load %arg3[%c3_30, %c0_31, %c0_32] : memref<4x16x32xf32, #tpu.memory_space<vmem>>, vector<1x16x32xf32>
    %45 = vector.shape_cast %44 : vector<1x16x32xf32> to vector<16x32xf32>
    %cst_33 = arith.constant dense<0.000000e+00> : vector<82x32xf32>
    %46 = tpu.matmul %43, %45, %cst_33 {dimension_numbers = #tpu.dot_dimension_numbers<[1], [0], [0], [1], [0, 0, 1, 1], [], []>} : vector<82x16xf32>, vector<16x32xf32>, vector<82x32xf32> -> vector<82x32xf32>
    %47 = arith.addf %42, %46 : vector<82x32xf32>
    %c0_34 = arith.constant 0 : index
    %c0_35 = arith.constant 0 : index
    %48 = vector.load %arg4[%c0_34, %c0_35] : memref<1x32xf32, #tpu.memory_space<vmem>>, vector<1x32xf32>
    %49 = vector.broadcast %48 : vector<1x32xf32> to vector<82x32xf32>
    %50 = arith.addf %47, %49 : vector<82x32xf32>
    %cst_36 = arith.constant 0.000000e+00 : f32
    %51 = vector.broadcast %cst_36 : f32 to vector<82x32xf32>
    %52 = arith.maximumf %50, %51 : vector<82x32xf32>
    %cst_37 = arith.constant 0.000000e+00 : f32
    %53 = vector.broadcast %cst_37 : f32 to vector<74x64xf32>
    %54 = vector.extract_strided_slice %52 {offsets = [0, 0], sizes = [74, 32], strides = [1, 1]} : vector<82x32xf32> to vector<74x32xf32>
    %c0_38 = arith.constant 0 : index
    %c0_39 = arith.constant 0 : index
    %c0_40 = arith.constant 0 : index
    %55 = vector.load %arg5[%c0_38, %c0_39, %c0_40] : memref<4x32x64xf32, #tpu.memory_space<vmem>>, vector<1x32x64xf32>
    %56 = vector.shape_cast %55 : vector<1x32x64xf32> to vector<32x64xf32>
    %cst_41 = arith.constant dense<0.000000e+00> : vector<74x64xf32>
    %57 = tpu.matmul %54, %56, %cst_41 {dimension_numbers = #tpu.dot_dimension_numbers<[1], [0], [0], [1], [0, 0, 1, 1], [], []>} : vector<74x32xf32>, vector<32x64xf32>, vector<74x64xf32> -> vector<74x64xf32>
    %58 = arith.addf %53, %57 : vector<74x64xf32>
    %59 = vector.extract_strided_slice %52 {offsets = [1, 0], sizes = [74, 32], strides = [1, 1]} : vector<82x32xf32> to vector<74x32xf32>
    %c1_42 = arith.constant 1 : index
    %c0_43 = arith.constant 0 : index
    %c0_44 = arith.constant 0 : index
    %60 = vector.load %arg5[%c1_42, %c0_43, %c0_44] : memref<4x32x64xf32, #tpu.memory_space<vmem>>, vector<1x32x64xf32>
    %61 = vector.shape_cast %60 : vector<1x32x64xf32> to vector<32x64xf32>
    %cst_45 = arith.constant dense<0.000000e+00> : vector<74x64xf32>
    %62 = tpu.matmul %59, %61, %cst_45 {dimension_numbers = #tpu.dot_dimension_numbers<[1], [0], [0], [1], [0, 0, 1, 1], [], []>} : vector<74x32xf32>, vector<32x64xf32>, vector<74x64xf32> -> vector<74x64xf32>
    %63 = arith.addf %58, %62 : vector<74x64xf32>
    %64 = vector.extract_strided_slice %52 {offsets = [7, 0], sizes = [74, 32], strides = [1, 1]} : vector<82x32xf32> to vector<74x32xf32>
    %c2_46 = arith.constant 2 : index
    %c0_47 = arith.constant 0 : index
    %c0_48 = arith.constant 0 : index
    %65 = vector.load %arg5[%c2_46, %c0_47, %c0_48] : memref<4x32x64xf32, #tpu.memory_space<vmem>>, vector<1x32x64xf32>
    %66 = vector.shape_cast %65 : vector<1x32x64xf32> to vector<32x64xf32>
    %cst_49 = arith.constant dense<0.000000e+00> : vector<74x64xf32>
    %67 = tpu.matmul %64, %66, %cst_49 {dimension_numbers = #tpu.dot_dimension_numbers<[1], [0], [0], [1], [0, 0, 1, 1], [], []>} : vector<74x32xf32>, vector<32x64xf32>, vector<74x64xf32> -> vector<74x64xf32>
    %68 = arith.addf %63, %67 : vector<74x64xf32>
    %69 = vector.extract_strided_slice %52 {offsets = [8, 0], sizes = [74, 32], strides = [1, 1]} : vector<82x32xf32> to vector<74x32xf32>
    %c3_50 = arith.constant 3 : index
    %c0_51 = arith.constant 0 : index
    %c0_52 = arith.constant 0 : index
    %70 = vector.load %arg5[%c3_50, %c0_51, %c0_52] : memref<4x32x64xf32, #tpu.memory_space<vmem>>, vector<1x32x64xf32>
    %71 = vector.shape_cast %70 : vector<1x32x64xf32> to vector<32x64xf32>
    %cst_53 = arith.constant dense<0.000000e+00> : vector<74x64xf32>
    %72 = tpu.matmul %69, %71, %cst_53 {dimension_numbers = #tpu.dot_dimension_numbers<[1], [0], [0], [1], [0, 0, 1, 1], [], []>} : vector<74x32xf32>, vector<32x64xf32>, vector<74x64xf32> -> vector<74x64xf32>
    %73 = arith.addf %68, %72 : vector<74x64xf32>
    %c0_54 = arith.constant 0 : index
    %c0_55 = arith.constant 0 : index
    %74 = vector.load %arg6[%c0_54, %c0_55] : memref<1x64xf32, #tpu.memory_space<vmem>>, vector<1x64xf32>
    %75 = vector.broadcast %74 : vector<1x64xf32> to vector<74x64xf32>
    %76 = arith.addf %73, %75 : vector<74x64xf32>
    %cst_56 = arith.constant 0.000000e+00 : f32
    %77 = vector.broadcast %cst_56 : f32 to vector<74x64xf32>
    %78 = arith.maximumf %76, %77 : vector<74x64xf32>
    %c0_57 = arith.constant 0 : index
    %c0_58 = arith.constant 0 : index
    %79 = vector.load %arg8[%c0_57, %c0_58] : memref<1x128xf32, #tpu.memory_space<vmem>>, vector<1x128xf32>
    %80 = vector.extract_strided_slice %78 {offsets = [0, 0], sizes = [1, 64], strides = [1, 1]} : vector<74x64xf32> to vector<1x64xf32>
    %c0_59 = arith.constant 0 : index
    %c0_60 = arith.constant 0 : index
    %c0_61 = arith.constant 0 : index
    %81 = vector.load %arg7[%c0_59, %c0_60, %c0_61] : memref<16x64x128xf32, #tpu.memory_space<vmem>>, vector<1x64x128xf32>
    %82 = vector.shape_cast %81 : vector<1x64x128xf32> to vector<64x128xf32>
    %cst_62 = arith.constant dense<0.000000e+00> : vector<1x128xf32>
    %83 = tpu.matmul %80, %82, %cst_62 {dimension_numbers = #tpu.dot_dimension_numbers<[1], [0], [0], [1], [0, 0, 1, 1], [], []>} : vector<1x64xf32>, vector<64x128xf32>, vector<1x128xf32> -> vector<1x128xf32>
    %84 = arith.addf %79, %83 : vector<1x128xf32>
    %85 = vector.extract_strided_slice %78 {offsets = [1, 0], sizes = [1, 64], strides = [1, 1]} : vector<74x64xf32> to vector<1x64xf32>
    %c1_63 = arith.constant 1 : index
    %c0_64 = arith.constant 0 : index
    %c0_65 = arith.constant 0 : index
    %86 = vector.load %arg7[%c1_63, %c0_64, %c0_65] : memref<16x64x128xf32, #tpu.memory_space<vmem>>, vector<1x64x128xf32>
    %87 = vector.shape_cast %86 : vector<1x64x128xf32> to vector<64x128xf32>
    %cst_66 = arith.constant dense<0.000000e+00> : vector<1x128xf32>
    %88 = tpu.matmul %85, %87, %cst_66 {dimension_numbers = #tpu.dot_dimension_numbers<[1], [0], [0], [1], [0, 0, 1, 1], [], []>} : vector<1x64xf32>, vector<64x128xf32>, vector<1x128xf32> -> vector<1x128xf32>
    %89 = arith.addf %84, %88 : vector<1x128xf32>
    %90 = vector.extract_strided_slice %78 {offsets = [2, 0], sizes = [1, 64], strides = [1, 1]} : vector<74x64xf32> to vector<1x64xf32>
    %c2_67 = arith.constant 2 : index
    %c0_68 = arith.constant 0 : index
    %c0_69 = arith.constant 0 : index
    %91 = vector.load %arg7[%c2_67, %c0_68, %c0_69] : memref<16x64x128xf32, #tpu.memory_space<vmem>>, vector<1x64x128xf32>
    %92 = vector.shape_cast %91 : vector<1x64x128xf32> to vector<64x128xf32>
    %cst_70 = arith.constant dense<0.000000e+00> : vector<1x128xf32>
    %93 = tpu.matmul %90, %92, %cst_70 {dimension_numbers = #tpu.dot_dimension_numbers<[1], [0], [0], [1], [0, 0, 1, 1], [], []>} : vector<1x64xf32>, vector<64x128xf32>, vector<1x128xf32> -> vector<1x128xf32>
    %94 = arith.addf %89, %93 : vector<1x128xf32>
    %95 = vector.extract_strided_slice %78 {offsets = [3, 0], sizes = [1, 64], strides = [1, 1]} : vector<74x64xf32> to vector<1x64xf32>
    %c3_71 = arith.constant 3 : index
    %c0_72 = arith.constant 0 : index
    %c0_73 = arith.constant 0 : index
    %96 = vector.load %arg7[%c3_71, %c0_72, %c0_73] : memref<16x64x128xf32, #tpu.memory_space<vmem>>, vector<1x64x128xf32>
    %97 = vector.shape_cast %96 : vector<1x64x128xf32> to vector<64x128xf32>
    %cst_74 = arith.constant dense<0.000000e+00> : vector<1x128xf32>
    %98 = tpu.matmul %95, %97, %cst_74 {dimension_numbers = #tpu.dot_dimension_numbers<[1], [0], [0], [1], [0, 0, 1, 1], [], []>} : vector<1x64xf32>, vector<64x128xf32>, vector<1x128xf32> -> vector<1x128xf32>
    %99 = arith.addf %94, %98 : vector<1x128xf32>
    %100 = vector.extract_strided_slice %78 {offsets = [7, 0], sizes = [1, 64], strides = [1, 1]} : vector<74x64xf32> to vector<1x64xf32>
    %c4 = arith.constant 4 : index
    %c0_75 = arith.constant 0 : index
    %c0_76 = arith.constant 0 : index
    %101 = vector.load %arg7[%c4, %c0_75, %c0_76] : memref<16x64x128xf32, #tpu.memory_space<vmem>>, vector<1x64x128xf32>
    %102 = vector.shape_cast %101 : vector<1x64x128xf32> to vector<64x128xf32>
    %cst_77 = arith.constant dense<0.000000e+00> : vector<1x128xf32>
    %103 = tpu.matmul %100, %102, %cst_77 {dimension_numbers = #tpu.dot_dimension_numbers<[1], [0], [0], [1], [0, 0, 1, 1], [], []>} : vector<1x64xf32>, vector<64x128xf32>, vector<1x128xf32> -> vector<1x128xf32>
    %104 = arith.addf %99, %103 : vector<1x128xf32>
    %105 = vector.extract_strided_slice %78 {offsets = [8, 0], sizes = [1, 64], strides = [1, 1]} : vector<74x64xf32> to vector<1x64xf32>
    %c5 = arith.constant 5 : index
    %c0_78 = arith.constant 0 : index
    %c0_79 = arith.constant 0 : index
    %106 = vector.load %arg7[%c5, %c0_78, %c0_79] : memref<16x64x128xf32, #tpu.memory_space<vmem>>, vector<1x64x128xf32>
    %107 = vector.shape_cast %106 : vector<1x64x128xf32> to vector<64x128xf32>
    %cst_80 = arith.constant dense<0.000000e+00> : vector<1x128xf32>
    %108 = tpu.matmul %105, %107, %cst_80 {dimension_numbers = #tpu.dot_dimension_numbers<[1], [0], [0], [1], [0, 0, 1, 1], [], []>} : vector<1x64xf32>, vector<64x128xf32>, vector<1x128xf32> -> vector<1x128xf32>
    %109 = arith.addf %104, %108 : vector<1x128xf32>
    %110 = vector.extract_strided_slice %78 {offsets = [9, 0], sizes = [1, 64], strides = [1, 1]} : vector<74x64xf32> to vector<1x64xf32>
    %c6 = arith.constant 6 : index
    %c0_81 = arith.constant 0 : index
    %c0_82 = arith.constant 0 : index
    %111 = vector.load %arg7[%c6, %c0_81, %c0_82] : memref<16x64x128xf32, #tpu.memory_space<vmem>>, vector<1x64x128xf32>
    %112 = vector.shape_cast %111 : vector<1x64x128xf32> to vector<64x128xf32>
    %cst_83 = arith.constant dense<0.000000e+00> : vector<1x128xf32>
    %113 = tpu.matmul %110, %112, %cst_83 {dimension_numbers = #tpu.dot_dimension_numbers<[1], [0], [0], [1], [0, 0, 1, 1], [], []>} : vector<1x64xf32>, vector<64x128xf32>, vector<1x128xf32> -> vector<1x128xf32>
    %114 = arith.addf %109, %113 : vector<1x128xf32>
    %115 = vector.extract_strided_slice %78 {offsets = [10, 0], sizes = [1, 64], strides = [1, 1]} : vector<74x64xf32> to vector<1x64xf32>
    %c7 = arith.constant 7 : index
    %c0_84 = arith.constant 0 : index
    %c0_85 = arith.constant 0 : index
    %116 = vector.load %arg7[%c7, %c0_84, %c0_85] : memref<16x64x128xf32, #tpu.memory_space<vmem>>, vector<1x64x128xf32>
    %117 = vector.shape_cast %116 : vector<1x64x128xf32> to vector<64x128xf32>
    %cst_86 = arith.constant dense<0.000000e+00> : vector<1x128xf32>
    %118 = tpu.matmul %115, %117, %cst_86 {dimension_numbers = #tpu.dot_dimension_numbers<[1], [0], [0], [1], [0, 0, 1, 1], [], []>} : vector<1x64xf32>, vector<64x128xf32>, vector<1x128xf32> -> vector<1x128xf32>
    %119 = arith.addf %114, %118 : vector<1x128xf32>
    %120 = vector.extract_strided_slice %78 {offsets = [14, 0], sizes = [1, 64], strides = [1, 1]} : vector<74x64xf32> to vector<1x64xf32>
    %c8 = arith.constant 8 : index
    %c0_87 = arith.constant 0 : index
    %c0_88 = arith.constant 0 : index
    %121 = vector.load %arg7[%c8, %c0_87, %c0_88] : memref<16x64x128xf32, #tpu.memory_space<vmem>>, vector<1x64x128xf32>
    %122 = vector.shape_cast %121 : vector<1x64x128xf32> to vector<64x128xf32>
    %cst_89 = arith.constant dense<0.000000e+00> : vector<1x128xf32>
    %123 = tpu.matmul %120, %122, %cst_89 {dimension_numbers = #tpu.dot_dimension_numbers<[1], [0], [0], [1], [0, 0, 1, 1], [], []>} : vector<1x64xf32>, vector<64x128xf32>, vector<1x128xf32> -> vector<1x128xf32>
    %124 = arith.addf %119, %123 : vector<1x128xf32>
    %125 = vector.extract_strided_slice %78 {offsets = [15, 0], sizes = [1, 64], strides = [1, 1]} : vector<74x64xf32> to vector<1x64xf32>
    %c9 = arith.constant 9 : index
    %c0_90 = arith.constant 0 : index
    %c0_91 = arith.constant 0 : index
    %126 = vector.load %arg7[%c9, %c0_90, %c0_91] : memref<16x64x128xf32, #tpu.memory_space<vmem>>, vector<1x64x128xf32>
    %127 = vector.shape_cast %126 : vector<1x64x128xf32> to vector<64x128xf32>
    %cst_92 = arith.constant dense<0.000000e+00> : vector<1x128xf32>
    %128 = tpu.matmul %125, %127, %cst_92 {dimension_numbers = #tpu.dot_dimension_numbers<[1], [0], [0], [1], [0, 0, 1, 1], [], []>} : vector<1x64xf32>, vector<64x128xf32>, vector<1x128xf32> -> vector<1x128xf32>
    %129 = arith.addf %124, %128 : vector<1x128xf32>
    %130 = vector.extract_strided_slice %78 {offsets = [16, 0], sizes = [1, 64], strides = [1, 1]} : vector<74x64xf32> to vector<1x64xf32>
    %c10 = arith.constant 10 : index
    %c0_93 = arith.constant 0 : index
    %c0_94 = arith.constant 0 : index
    %131 = vector.load %arg7[%c10, %c0_93, %c0_94] : memref<16x64x128xf32, #tpu.memory_space<vmem>>, vector<1x64x128xf32>
    %132 = vector.shape_cast %131 : vector<1x64x128xf32> to vector<64x128xf32>
    %cst_95 = arith.constant dense<0.000000e+00> : vector<1x128xf32>
    %133 = tpu.matmul %130, %132, %cst_95 {dimension_numbers = #tpu.dot_dimension_numbers<[1], [0], [0], [1], [0, 0, 1, 1], [], []>} : vector<1x64xf32>, vector<64x128xf32>, vector<1x128xf32> -> vector<1x128xf32>
    %134 = arith.addf %129, %133 : vector<1x128xf32>
    %135 = vector.extract_strided_slice %78 {offsets = [17, 0], sizes = [1, 64], strides = [1, 1]} : vector<74x64xf32> to vector<1x64xf32>
    %c11 = arith.constant 11 : index
    %c0_96 = arith.constant 0 : index
    %c0_97 = arith.constant 0 : index
    %136 = vector.load %arg7[%c11, %c0_96, %c0_97] : memref<16x64x128xf32, #tpu.memory_space<vmem>>, vector<1x64x128xf32>
    %137 = vector.shape_cast %136 : vector<1x64x128xf32> to vector<64x128xf32>
    %cst_98 = arith.constant dense<0.000000e+00> : vector<1x128xf32>
    %138 = tpu.matmul %135, %137, %cst_98 {dimension_numbers = #tpu.dot_dimension_numbers<[1], [0], [0], [1], [0, 0, 1, 1], [], []>} : vector<1x64xf32>, vector<64x128xf32>, vector<1x128xf32> -> vector<1x128xf32>
    %139 = arith.addf %134, %138 : vector<1x128xf32>
    %140 = vector.extract_strided_slice %78 {offsets = [21, 0], sizes = [1, 64], strides = [1, 1]} : vector<74x64xf32> to vector<1x64xf32>
    %c12 = arith.constant 12 : index
    %c0_99 = arith.constant 0 : index
    %c0_100 = arith.constant 0 : index
    %141 = vector.load %arg7[%c12, %c0_99, %c0_100] : memref<16x64x128xf32, #tpu.memory_space<vmem>>, vector<1x64x128xf32>
    %142 = vector.shape_cast %141 : vector<1x64x128xf32> to vector<64x128xf32>
    %cst_101 = arith.constant dense<0.000000e+00> : vector<1x128xf32>
    %143 = tpu.matmul %140, %142, %cst_101 {dimension_numbers = #tpu.dot_dimension_numbers<[1], [0], [0], [1], [0, 0, 1, 1], [], []>} : vector<1x64xf32>, vector<64x128xf32>, vector<1x128xf32> -> vector<1x128xf32>
    %144 = arith.addf %139, %143 : vector<1x128xf32>
    %145 = vector.extract_strided_slice %78 {offsets = [22, 0], sizes = [1, 64], strides = [1, 1]} : vector<74x64xf32> to vector<1x64xf32>
    %c13 = arith.constant 13 : index
    %c0_102 = arith.constant 0 : index
    %c0_103 = arith.constant 0 : index
    %146 = vector.load %arg7[%c13, %c0_102, %c0_103] : memref<16x64x128xf32, #tpu.memory_space<vmem>>, vector<1x64x128xf32>
    %147 = vector.shape_cast %146 : vector<1x64x128xf32> to vector<64x128xf32>
    %cst_104 = arith.constant dense<0.000000e+00> : vector<1x128xf32>
    %148 = tpu.matmul %145, %147, %cst_104 {dimension_numbers = #tpu.dot_dimension_numbers<[1], [0], [0], [1], [0, 0, 1, 1], [], []>} : vector<1x64xf32>, vector<64x128xf32>, vector<1x128xf32> -> vector<1x128xf32>
    %149 = arith.addf %144, %148 : vector<1x128xf32>
    %150 = vector.extract_strided_slice %78 {offsets = [23, 0], sizes = [1, 64], strides = [1, 1]} : vector<74x64xf32> to vector<1x64xf32>
    %c14 = arith.constant 14 : index
    %c0_105 = arith.constant 0 : index
    %c0_106 = arith.constant 0 : index
    %151 = vector.load %arg7[%c14, %c0_105, %c0_106] : memref<16x64x128xf32, #tpu.memory_space<vmem>>, vector<1x64x128xf32>
    %152 = vector.shape_cast %151 : vector<1x64x128xf32> to vector<64x128xf32>
    %cst_107 = arith.constant dense<0.000000e+00> : vector<1x128xf32>
    %153 = tpu.matmul %150, %152, %cst_107 {dimension_numbers = #tpu.dot_dimension_numbers<[1], [0], [0], [1], [0, 0, 1, 1], [], []>} : vector<1x64xf32>, vector<64x128xf32>, vector<1x128xf32> -> vector<1x128xf32>
    %154 = arith.addf %149, %153 : vector<1x128xf32>
    %155 = vector.extract_strided_slice %78 {offsets = [24, 0], sizes = [1, 64], strides = [1, 1]} : vector<74x64xf32> to vector<1x64xf32>
    %c15 = arith.constant 15 : index
    %c0_108 = arith.constant 0 : index
    %c0_109 = arith.constant 0 : index
    %156 = vector.load %arg7[%c15, %c0_108, %c0_109] : memref<16x64x128xf32, #tpu.memory_space<vmem>>, vector<1x64x128xf32>
    %157 = vector.shape_cast %156 : vector<1x64x128xf32> to vector<64x128xf32>
    %cst_110 = arith.constant dense<0.000000e+00> : vector<1x128xf32>
    %158 = tpu.matmul %155, %157, %cst_110 {dimension_numbers = #tpu.dot_dimension_numbers<[1], [0], [0], [1], [0, 0, 1, 1], [], []>} : vector<1x64xf32>, vector<64x128xf32>, vector<1x128xf32> -> vector<1x128xf32>
    %159 = arith.addf %154, %158 : vector<1x128xf32>
    %cst_111 = arith.constant 0.000000e+00 : f32
    %160 = vector.broadcast %cst_111 : f32 to vector<1x128xf32>
    %161 = arith.maximumf %159, %160 : vector<1x128xf32>
    %c0_112 = arith.constant 0 : index
    %c0_113 = arith.constant 0 : index
    %162 = vector.load %arg9[%c0_112, %c0_113] : memref<128x64xf32, #tpu.memory_space<vmem>>, vector<128x64xf32>
    %cst_114 = arith.constant dense<0.000000e+00> : vector<1x64xf32>
    %163 = tpu.matmul %161, %162, %cst_114 {dimension_numbers = #tpu.dot_dimension_numbers<[1], [0], [0], [1], [0, 0, 1, 1], [], []>} : vector<1x128xf32>, vector<128x64xf32>, vector<1x64xf32> -> vector<1x64xf32>
    %c0_115 = arith.constant 0 : index
    %c0_116 = arith.constant 0 : index
    %164 = vector.load %arg10[%c0_115, %c0_116] : memref<1x64xf32, #tpu.memory_space<vmem>>, vector<1x64xf32>
    %165 = arith.addf %163, %164 : vector<1x64xf32>
    %cst_117 = arith.constant 0.000000e+00 : f32
    %166 = vector.broadcast %cst_117 : f32 to vector<1x64xf32>
    %167 = arith.maximumf %165, %166 : vector<1x64xf32>
    %c0_118 = arith.constant 0 : index
    %c0_119 = arith.constant 0 : index
    %168 = vector.load %arg11[%c0_118, %c0_119] : memref<64x64xf32, #tpu.memory_space<vmem>>, vector<64x64xf32>
    %cst_120 = arith.constant dense<0.000000e+00> : vector<1x64xf32>
    %169 = tpu.matmul %167, %168, %cst_120 {dimension_numbers = #tpu.dot_dimension_numbers<[1], [0], [0], [1], [0, 0, 1, 1], [], []>} : vector<1x64xf32>, vector<64x64xf32>, vector<1x64xf32> -> vector<1x64xf32>
    %c0_121 = arith.constant 0 : index
    %c0_122 = arith.constant 0 : index
    %170 = vector.load %arg12[%c0_121, %c0_122] : memref<1x64xf32, #tpu.memory_space<vmem>>, vector<1x64xf32>
    %171 = arith.addf %169, %170 : vector<1x64xf32>
    %cst_123 = arith.constant 0.000000e+00 : f32
    %172 = vector.broadcast %cst_123 : f32 to vector<1x64xf32>
    %173 = arith.maximumf %171, %172 : vector<1x64xf32>
    %c0_124 = arith.constant 0 : index
    %c0_125 = arith.constant 0 : index
    %174 = vector.load %arg13[%c0_124, %c0_125] : memref<64x7xf32, #tpu.memory_space<vmem>>, vector<64x7xf32>
    %cst_126 = arith.constant dense<0.000000e+00> : vector<1x7xf32>
    %175 = tpu.matmul %173, %174, %cst_126 {dimension_numbers = #tpu.dot_dimension_numbers<[1], [0], [0], [1], [0, 0, 1, 1], [], []>} : vector<1x64xf32>, vector<64x7xf32>, vector<1x7xf32> -> vector<1x7xf32>
    %c0_127 = arith.constant 0 : index
    %c0_128 = arith.constant 0 : index
    %176 = vector.load %arg14[%c0_127, %c0_128] : memref<1x7xf32, #tpu.memory_space<vmem>>, vector<1x7xf32>
    %177 = arith.addf %175, %176 : vector<1x7xf32>
    %c0_129 = arith.constant 0 : index
    %c0_130 = arith.constant 0 : index
    %178 = vector.load %arg15[%c0_129, %c0_130] : memref<2x7xf32, #tpu.memory_space<vmem>>, vector<1x7xf32>
    tpu.vector_store %arg15[%c0_129, %c0_130], %177 {strides = array<i32>} : memref<2x7xf32, #tpu.memory_space<vmem>>, vector<1x7xf32>,
    %c0_131 = arith.constant 0 : index
    %c0_132 = arith.constant 0 : index
    %179 = vector.load %arg8[%c0_131, %c0_132] : memref<1x128xf32, #tpu.memory_space<vmem>>, vector<1x128xf32>
    %180 = vector.extract_strided_slice %78 {offsets = [49, 0], sizes = [1, 64], strides = [1, 1]} : vector<74x64xf32> to vector<1x64xf32>
    %c0_133 = arith.constant 0 : index
    %c0_134 = arith.constant 0 : index
    %c0_135 = arith.constant 0 : index
    %181 = vector.load %arg7[%c0_133, %c0_134, %c0_135] : memref<16x64x128xf32, #tpu.memory_space<vmem>>, vector<1x64x128xf32>
    %182 = vector.shape_cast %181 : vector<1x64x128xf32> to vector<64x128xf32>
    %cst_136 = arith.constant dense<0.000000e+00> : vector<1x128xf32>
    %183 = tpu.matmul %180, %182, %cst_136 {dimension_numbers = #tpu.dot_dimension_numbers<[1], [0], [0], [1], [0, 0, 1, 1], [], []>} : vector<1x64xf32>, vector<64x128xf32>, vector<1x128xf32> -> vector<1x128xf32>
    %184 = arith.addf %179, %183 : vector<1x128xf32>
    %185 = vector.extract_strided_slice %78 {offsets = [50, 0], sizes = [1, 64], strides = [1, 1]} : vector<74x64xf32> to vector<1x64xf32>
    %c1_137 = arith.constant 1 : index
    %c0_138 = arith.constant 0 : index
    %c0_139 = arith.constant 0 : index
    %186 = vector.load %arg7[%c1_137, %c0_138, %c0_139] : memref<16x64x128xf32, #tpu.memory_space<vmem>>, vector<1x64x128xf32>
    %187 = vector.shape_cast %186 : vector<1x64x128xf32> to vector<64x128xf32>
    %cst_140 = arith.constant dense<0.000000e+00> : vector<1x128xf32>
    %188 = tpu.matmul %185, %187, %cst_140 {dimension_numbers = #tpu.dot_dimension_numbers<[1], [0], [0], [1], [0, 0, 1, 1], [], []>} : vector<1x64xf32>, vector<64x128xf32>, vector<1x128xf32> -> vector<1x128xf32>
    %189 = arith.addf %184, %188 : vector<1x128xf32>
    %190 = vector.extract_strided_slice %78 {offsets = [51, 0], sizes = [1, 64], strides = [1, 1]} : vector<74x64xf32> to vector<1x64xf32>
    %c2_141 = arith.constant 2 : index
    %c0_142 = arith.constant 0 : index
    %c0_143 = arith.constant 0 : index
    %191 = vector.load %arg7[%c2_141, %c0_142, %c0_143] : memref<16x64x128xf32, #tpu.memory_space<vmem>>, vector<1x64x128xf32>
    %192 = vector.shape_cast %191 : vector<1x64x128xf32> to vector<64x128xf32>
    %cst_144 = arith.constant dense<0.000000e+00> : vector<1x128xf32>
    %193 = tpu.matmul %190, %192, %cst_144 {dimension_numbers = #tpu.dot_dimension_numbers<[1], [0], [0], [1], [0, 0, 1, 1], [], []>} : vector<1x64xf32>, vector<64x128xf32>, vector<1x128xf32> -> vector<1x128xf32>
    %194 = arith.addf %189, %193 : vector<1x128xf32>
    %195 = vector.extract_strided_slice %78 {offsets = [52, 0], sizes = [1, 64], strides = [1, 1]} : vector<74x64xf32> to vector<1x64xf32>
    %c3_145 = arith.constant 3 : index
    %c0_146 = arith.constant 0 : index
    %c0_147 = arith.constant 0 : index
    %196 = vector.load %arg7[%c3_145, %c0_146, %c0_147] : memref<16x64x128xf32, #tpu.memory_space<vmem>>, vector<1x64x128xf32>
    %197 = vector.shape_cast %196 : vector<1x64x128xf32> to vector<64x128xf32>
    %cst_148 = arith.constant dense<0.000000e+00> : vector<1x128xf32>
    %198 = tpu.matmul %195, %197, %cst_148 {dimension_numbers = #tpu.dot_dimension_numbers<[1], [0], [0], [1], [0, 0, 1, 1], [], []>} : vector<1x64xf32>, vector<64x128xf32>, vector<1x128xf32> -> vector<1x128xf32>
    %199 = arith.addf %194, %198 : vector<1x128xf32>
    %200 = vector.extract_strided_slice %78 {offsets = [56, 0], sizes = [1, 64], strides = [1, 1]} : vector<74x64xf32> to vector<1x64xf32>
    %c4_149 = arith.constant 4 : index
    %c0_150 = arith.constant 0 : index
    %c0_151 = arith.constant 0 : index
    %201 = vector.load %arg7[%c4_149, %c0_150, %c0_151] : memref<16x64x128xf32, #tpu.memory_space<vmem>>, vector<1x64x128xf32>
    %202 = vector.shape_cast %201 : vector<1x64x128xf32> to vector<64x128xf32>
    %cst_152 = arith.constant dense<0.000000e+00> : vector<1x128xf32>
    %203 = tpu.matmul %200, %202, %cst_152 {dimension_numbers = #tpu.dot_dimension_numbers<[1], [0], [0], [1], [0, 0, 1, 1], [], []>} : vector<1x64xf32>, vector<64x128xf32>, vector<1x128xf32> -> vector<1x128xf32>
    %204 = arith.addf %199, %203 : vector<1x128xf32>
    %205 = vector.extract_strided_slice %78 {offsets = [57, 0], sizes = [1, 64], strides = [1, 1]} : vector<74x64xf32> to vector<1x64xf32>
    %c5_153 = arith.constant 5 : index
    %c0_154 = arith.constant 0 : index
    %c0_155 = arith.constant 0 : index
    %206 = vector.load %arg7[%c5_153, %c0_154, %c0_155] : memref<16x64x128xf32, #tpu.memory_space<vmem>>, vector<1x64x128xf32>
    %207 = vector.shape_cast %206 : vector<1x64x128xf32> to vector<64x128xf32>
    %cst_156 = arith.constant dense<0.000000e+00> : vector<1x128xf32>
    %208 = tpu.matmul %205, %207, %cst_156 {dimension_numbers = #tpu.dot_dimension_numbers<[1], [0], [0], [1], [0, 0, 1, 1], [], []>} : vector<1x64xf32>, vector<64x128xf32>, vector<1x128xf32> -> vector<1x128xf32>
    %209 = arith.addf %204, %208 : vector<1x128xf32>
    %210 = vector.extract_strided_slice %78 {offsets = [58, 0], sizes = [1, 64], strides = [1, 1]} : vector<74x64xf32> to vector<1x64xf32>
    %c6_157 = arith.constant 6 : index
    %c0_158 = arith.constant 0 : index
    %c0_159 = arith.constant 0 : index
    %211 = vector.load %arg7[%c6_157, %c0_158, %c0_159] : memref<16x64x128xf32, #tpu.memory_space<vmem>>, vector<1x64x128xf32>
    %212 = vector.shape_cast %211 : vector<1x64x128xf32> to vector<64x128xf32>
    %cst_160 = arith.constant dense<0.000000e+00> : vector<1x128xf32>
    %213 = tpu.matmul %210, %212, %cst_160 {dimension_numbers = #tpu.dot_dimension_numbers<[1], [0], [0], [1], [0, 0, 1, 1], [], []>} : vector<1x64xf32>, vector<64x128xf32>, vector<1x128xf32> -> vector<1x128xf32>
    %214 = arith.addf %209, %213 : vector<1x128xf32>
    %215 = vector.extract_strided_slice %78 {offsets = [59, 0], sizes = [1, 64], strides = [1, 1]} : vector<74x64xf32> to vector<1x64xf32>
    %c7_161 = arith.constant 7 : index
    %c0_162 = arith.constant 0 : index
    %c0_163 = arith.constant 0 : index
    %216 = vector.load %arg7[%c7_161, %c0_162, %c0_163] : memref<16x64x128xf32, #tpu.memory_space<vmem>>, vector<1x64x128xf32>
    %217 = vector.shape_cast %216 : vector<1x64x128xf32> to vector<64x128xf32>
    %cst_164 = arith.constant dense<0.000000e+00> : vector<1x128xf32>
    %218 = tpu.matmul %215, %217, %cst_164 {dimension_numbers = #tpu.dot_dimension_numbers<[1], [0], [0], [1], [0, 0, 1, 1], [], []>} : vector<1x64xf32>, vector<64x128xf32>, vector<1x128xf32> -> vector<1x128xf32>
    %219 = arith.addf %214, %218 : vector<1x128xf32>
    %220 = vector.extract_strided_slice %78 {offsets = [63, 0], sizes = [1, 64], strides = [1, 1]} : vector<74x64xf32> to vector<1x64xf32>
    %c8_165 = arith.constant 8 : index
    %c0_166 = arith.constant 0 : index
    %c0_167 = arith.constant 0 : index
    %221 = vector.load %arg7[%c8_165, %c0_166, %c0_167] : memref<16x64x128xf32, #tpu.memory_space<vmem>>, vector<1x64x128xf32>
    %222 = vector.shape_cast %221 : vector<1x64x128xf32> to vector<64x128xf32>
    %cst_168 = arith.constant dense<0.000000e+00> : vector<1x128xf32>
    %223 = tpu.matmul %220, %222, %cst_168 {dimension_numbers = #tpu.dot_dimension_numbers<[1], [0], [0], [1], [0, 0, 1, 1], [], []>} : vector<1x64xf32>, vector<64x128xf32>, vector<1x128xf32> -> vector<1x128xf32>
    %224 = arith.addf %219, %223 : vector<1x128xf32>
    %225 = vector.extract_strided_slice %78 {offsets = [64, 0], sizes = [1, 64], strides = [1, 1]} : vector<74x64xf32> to vector<1x64xf32>
    %c9_169 = arith.constant 9 : index
    %c0_170 = arith.constant 0 : index
    %c0_171 = arith.constant 0 : index
    %226 = vector.load %arg7[%c9_169, %c0_170, %c0_171] : memref<16x64x128xf32, #tpu.memory_space<vmem>>, vector<1x64x128xf32>
    %227 = vector.shape_cast %226 : vector<1x64x128xf32> to vector<64x128xf32>
    %cst_172 = arith.constant dense<0.000000e+00> : vector<1x128xf32>
    %228 = tpu.matmul %225, %227, %cst_172 {dimension_numbers = #tpu.dot_dimension_numbers<[1], [0], [0], [1], [0, 0, 1, 1], [], []>} : vector<1x64xf32>, vector<64x128xf32>, vector<1x128xf32> -> vector<1x128xf32>
    %229 = arith.addf %224, %228 : vector<1x128xf32>
    %230 = vector.extract_strided_slice %78 {offsets = [65, 0], sizes = [1, 64], strides = [1, 1]} : vector<74x64xf32> to vector<1x64xf32>
    %c10_173 = arith.constant 10 : index
    %c0_174 = arith.constant 0 : index
    %c0_175 = arith.constant 0 : index
    %231 = vector.load %arg7[%c10_173, %c0_174, %c0_175] : memref<16x64x128xf32, #tpu.memory_space<vmem>>, vector<1x64x128xf32>
    %232 = vector.shape_cast %231 : vector<1x64x128xf32> to vector<64x128xf32>
    %cst_176 = arith.constant dense<0.000000e+00> : vector<1x128xf32>
    %233 = tpu.matmul %230, %232, %cst_176 {dimension_numbers = #tpu.dot_dimension_numbers<[1], [0], [0], [1], [0, 0, 1, 1], [], []>} : vector<1x64xf32>, vector<64x128xf32>, vector<1x128xf32> -> vector<1x128xf32>
    %234 = arith.addf %229, %233 : vector<1x128xf32>
    %235 = vector.extract_strided_slice %78 {offsets = [66, 0], sizes = [1, 64], strides = [1, 1]} : vector<74x64xf32> to vector<1x64xf32>
    %c11_177 = arith.constant 11 : index
    %c0_178 = arith.constant 0 : index
    %c0_179 = arith.constant 0 : index
    %236 = vector.load %arg7[%c11_177, %c0_178, %c0_179] : memref<16x64x128xf32, #tpu.memory_space<vmem>>, vector<1x64x128xf32>
    %237 = vector.shape_cast %236 : vector<1x64x128xf32> to vector<64x128xf32>
    %cst_180 = arith.constant dense<0.000000e+00> : vector<1x128xf32>
    %238 = tpu.matmul %235, %237, %cst_180 {dimension_numbers = #tpu.dot_dimension_numbers<[1], [0], [0], [1], [0, 0, 1, 1], [], []>} : vector<1x64xf32>, vector<64x128xf32>, vector<1x128xf32> -> vector<1x128xf32>
    %239 = arith.addf %234, %238 : vector<1x128xf32>
    %240 = vector.extract_strided_slice %78 {offsets = [70, 0], sizes = [1, 64], strides = [1, 1]} : vector<74x64xf32> to vector<1x64xf32>
    %c12_181 = arith.constant 12 : index
    %c0_182 = arith.constant 0 : index
    %c0_183 = arith.constant 0 : index
    %241 = vector.load %arg7[%c12_181, %c0_182, %c0_183] : memref<16x64x128xf32, #tpu.memory_space<vmem>>, vector<1x64x128xf32>
    %242 = vector.shape_cast %241 : vector<1x64x128xf32> to vector<64x128xf32>
    %cst_184 = arith.constant dense<0.000000e+00> : vector<1x128xf32>
    %243 = tpu.matmul %240, %242, %cst_184 {dimension_numbers = #tpu.dot_dimension_numbers<[1], [0], [0], [1], [0, 0, 1, 1], [], []>} : vector<1x64xf32>, vector<64x128xf32>, vector<1x128xf32> -> vector<1x128xf32>
    %244 = arith.addf %239, %243 : vector<1x128xf32>
    %245 = vector.extract_strided_slice %78 {offsets = [71, 0], sizes = [1, 64], strides = [1, 1]} : vector<74x64xf32> to vector<1x64xf32>
    %c13_185 = arith.constant 13 : index
    %c0_186 = arith.constant 0 : index
    %c0_187 = arith.constant 0 : index
    %246 = vector.load %arg7[%c13_185, %c0_186, %c0_187] : memref<16x64x128xf32, #tpu.memory_space<vmem>>, vector<1x64x128xf32>
    %247 = vector.shape_cast %246 : vector<1x64x128xf32> to vector<64x128xf32>
    %cst_188 = arith.constant dense<0.000000e+00> : vector<1x128xf32>
    %248 = tpu.matmul %245, %247, %cst_188 {dimension_numbers = #tpu.dot_dimension_numbers<[1], [0], [0], [1], [0, 0, 1, 1], [], []>} : vector<1x64xf32>, vector<64x128xf32>, vector<1x128xf32> -> vector<1x128xf32>
    %249 = arith.addf %244, %248 : vector<1x128xf32>
    %250 = vector.extract_strided_slice %78 {offsets = [72, 0], sizes = [1, 64], strides = [1, 1]} : vector<74x64xf32> to vector<1x64xf32>
    %c14_189 = arith.constant 14 : index
    %c0_190 = arith.constant 0 : index
    %c0_191 = arith.constant 0 : index
    %251 = vector.load %arg7[%c14_189, %c0_190, %c0_191] : memref<16x64x128xf32, #tpu.memory_space<vmem>>, vector<1x64x128xf32>
    %252 = vector.shape_cast %251 : vector<1x64x128xf32> to vector<64x128xf32>
    %cst_192 = arith.constant dense<0.000000e+00> : vector<1x128xf32>
    %253 = tpu.matmul %250, %252, %cst_192 {dimension_numbers = #tpu.dot_dimension_numbers<[1], [0], [0], [1], [0, 0, 1, 1], [], []>} : vector<1x64xf32>, vector<64x128xf32>, vector<1x128xf32> -> vector<1x128xf32>
    %254 = arith.addf %249, %253 : vector<1x128xf32>
    %255 = vector.extract_strided_slice %78 {offsets = [73, 0], sizes = [1, 64], strides = [1, 1]} : vector<74x64xf32> to vector<1x64xf32>
    %c15_193 = arith.constant 15 : index
    %c0_194 = arith.constant 0 : index
    %c0_195 = arith.constant 0 : index
    %256 = vector.load %arg7[%c15_193, %c0_194, %c0_195] : memref<16x64x128xf32, #tpu.memory_space<vmem>>, vector<1x64x128xf32>
    %257 = vector.shape_cast %256 : vector<1x64x128xf32> to vector<64x128xf32>
    %cst_196 = arith.constant dense<0.000000e+00> : vector<1x128xf32>
    %258 = tpu.matmul %255, %257, %cst_196 {dimension_numbers = #tpu.dot_dimension_numbers<[1], [0], [0], [1], [0, 0, 1, 1], [], []>} : vector<1x64xf32>, vector<64x128xf32>, vector<1x128xf32> -> vector<1x128xf32>
    %259 = arith.addf %254, %258 : vector<1x128xf32>
    %cst_197 = arith.constant 0.000000e+00 : f32
    %260 = vector.broadcast %cst_197 : f32 to vector<1x128xf32>
    %261 = arith.maximumf %259, %260 : vector<1x128xf32>
    %c0_198 = arith.constant 0 : index
    %c0_199 = arith.constant 0 : index
    %262 = vector.load %arg9[%c0_198, %c0_199] : memref<128x64xf32, #tpu.memory_space<vmem>>, vector<128x64xf32>
    %cst_200 = arith.constant dense<0.000000e+00> : vector<1x64xf32>
    %263 = tpu.matmul %261, %262, %cst_200 {dimension_numbers = #tpu.dot_dimension_numbers<[1], [0], [0], [1], [0, 0, 1, 1], [], []>} : vector<1x128xf32>, vector<128x64xf32>, vector<1x64xf32> -> vector<1x64xf32>
    %c0_201 = arith.constant 0 : index
    %c0_202 = arith.constant 0 : index
    %264 = vector.load %arg10[%c0_201, %c0_202] : memref<1x64xf32, #tpu.memory_space<vmem>>, vector<1x64xf32>
    %265 = arith.addf %263, %264 : vector<1x64xf32>
    %cst_203 = arith.constant 0.000000e+00 : f32
    %266 = vector.broadcast %cst_203 : f32 to vector<1x64xf32>
    %267 = arith.maximumf %265, %266 : vector<1x64xf32>
    %c0_204 = arith.constant 0 : index
    %c0_205 = arith.constant 0 : index
    %268 = vector.load %arg11[%c0_204, %c0_205] : memref<64x64xf32, #tpu.memory_space<vmem>>, vector<64x64xf32>
    %cst_206 = arith.constant dense<0.000000e+00> : vector<1x64xf32>
    %269 = tpu.matmul %267, %268, %cst_206 {dimension_numbers = #tpu.dot_dimension_numbers<[1], [0], [0], [1], [0, 0, 1, 1], [], []>} : vector<1x64xf32>, vector<64x64xf32>, vector<1x64xf32> -> vector<1x64xf32>
    %c0_207 = arith.constant 0 : index
    %c0_208 = arith.constant 0 : index
    %270 = vector.load %arg12[%c0_207, %c0_208] : memref<1x64xf32, #tpu.memory_space<vmem>>, vector<1x64xf32>
    %271 = arith.addf %269, %270 : vector<1x64xf32>
    %cst_209 = arith.constant 0.000000e+00 : f32
    %272 = vector.broadcast %cst_209 : f32 to vector<1x64xf32>
    %273 = arith.maximumf %271, %272 : vector<1x64xf32>
    %c0_210 = arith.constant 0 : index
    %c0_211 = arith.constant 0 : index
    %274 = vector.load %arg13[%c0_210, %c0_211] : memref<64x7xf32, #tpu.memory_space<vmem>>, vector<64x7xf32>
    %cst_212 = arith.constant dense<0.000000e+00> : vector<1x7xf32>
    %275 = tpu.matmul %273, %274, %cst_212 {dimension_numbers = #tpu.dot_dimension_numbers<[1], [0], [0], [1], [0, 0, 1, 1], [], []>} : vector<1x64xf32>, vector<64x7xf32>, vector<1x7xf32> -> vector<1x7xf32>
    %c0_213 = arith.constant 0 : index
    %c0_214 = arith.constant 0 : index
    %276 = vector.load %arg14[%c0_213, %c0_214] : memref<1x7xf32, #tpu.memory_space<vmem>>, vector<1x7xf32>
    %277 = arith.addf %275, %276 : vector<1x7xf32>
    %c1_215 = arith.constant 1 : index
    %c0_216 = arith.constant 0 : index
    %278 = vector.load %arg15[%c1_215, %c0_216] : memref<2x7xf32, #tpu.memory_space<vmem>>, vector<1x7xf32>
    tpu.vector_store %arg15[%c1_215, %c0_216], %277 {strides = array<i32>} : memref<2x7xf32, #tpu.memory_space<vmem>>, vector<1x7xf32>,
    return
  }
}

</mosaic_0001>

<llo_original>
// kernel: q_forward.1
$region0: #{q_forward.1}
  #allocation0 [shape = 'u32[]', space=smem, size = 0x4, offset = 0x4, fixed_abs, tag = 'smem constant byte address 0x4 - core index']
  #allocation1 [shape = 'u32[144,128]{1,0:T(1,128)}', space=vmem, size = 0x12000, scoped, tag = 'internal scratch']
  %s0 = inlined_call_operand.vmem [shape: f32[98,3], index: 0, kind: input, shape index: {}]
  %s1 = inlined_call_operand.vmem [shape: f32[4,3,16], index: 1, kind: input, shape index: {}]
  %s2 = inlined_call_operand.vmem [shape: f32[1,16], index: 2, kind: input, shape index: {}]
  %s3 = inlined_call_operand.vmem [shape: f32[4,16,32], index: 3, kind: input, shape index: {}]
  %s4 = inlined_call_operand.vmem [shape: f32[1,32], index: 4, kind: input, shape index: {}]
  %s5 = inlined_call_operand.vmem [shape: f32[4,32,64], index: 5, kind: input, shape index: {}]
  %s6 = inlined_call_operand.vmem [shape: f32[1,64], index: 6, kind: input, shape index: {}]
  %s7 = inlined_call_operand.hbm [shape: f32[16,64,128], index: 7, kind: input, shape index: {}]
  %s8 = inlined_call_operand.vmem [shape: f32[1,128], index: 8, kind: input, shape index: {}]
  %s9 = inlined_call_operand.vmem [shape: f32[128,64], index: 9, kind: input, shape index: {}]
  %s10 = inlined_call_operand.vmem [shape: f32[1,64], index: 10, kind: input, shape index: {}]
  %s11 = inlined_call_operand.vmem [shape: f32[64,64], index: 11, kind: input, shape index: {}]
  %s12 = inlined_call_operand.vmem [shape: f32[1,64], index: 12, kind: input, shape index: {}]
  %s13 = inlined_call_operand.vmem [shape: f32[64,7], index: 13, kind: input, shape index: {}]
  %s14 = inlined_call_operand.vmem [shape: f32[1,7], index: 14, kind: input, shape index: {}]
  %s15 = inlined_call_operand.hbm [shape: f32[2,7], index: 15, kind: output, shape index: {}]
  %s16 = sld [smem:[#allocation0]]
  $region74: #{q_forward.1} parent=0
    _
  %s18 = ssub.s32 1, %s16
  %s19 = scalar_select 0, %s18, %s16
  $region1: #{q_forward.1} parent=0
    #allocation2 [shape = 'u8[524288]{0}', space=vmem, size = 0x80000, scoped, tag = 'input window, operand 7, single buffered']
    #allocation3 [shape = 's32[1]{0}', space=sflag, size = 0x4, scoped, tag = 'scoped memory for q_forward.1']
    #allocation4 [shape = 's32[1]{0}', space=sflag, size = 0x4, scoped, tag = 'scoped memory for q_forward.1']
    #allocation5 [shape = 'u8[1024]{0}', space=vmem, size = 0x400, scoped, tag = 'output window, operand 0, single buffered']
    %20 = vsyncpa [#allocation3], 0
    %21 = vsyncpa [#allocation4], 0
    // Predicated region
    $region2: #{q_forward.1} parent=1 // pred_check
      _
    $region3: #{q_forward.1} parent=1 // pred_check_branch
      %23 = sbr.rel (0) target = $region5
    $region4: #{q_forward.1} parent=1 // pred_region
      _
    $region5: #{q_forward.1} parent=1 // pred_fallthru
      _
    // Predicated region
    $region6: #{q_forward.1} parent=1 // pred_check
      _
    $region7: #{q_forward.1} parent=1 // pred_check_branch
      %25 = sbr.rel (0) target = $region9
    $region8: #{q_forward.1} parent=1 // pred_region
      _
    $region9: #{q_forward.1} parent=1 // pred_fallthru
      _
    // Predicated region
    $region10: #{q_forward.1} parent=1 // pred_check
      _
    $region11: #{q_forward.1} parent=1 // pred_check_branch
      %27 = sbr.rel (0) target = $region13
    $region12: #{q_forward.1} parent=1 // pred_region
      _
    $region13: #{q_forward.1} parent=1 // pred_fallthru
      _
    // Predicated region
    $region14: #{q_forward.1} parent=1 // pred_check
      _
    $region15: #{q_forward.1} parent=1 // pred_check_branch
      %29 = sbr.rel (0) target = $region17
    $region16: #{q_forward.1} parent=1 // pred_region
      _
    $region17: #{q_forward.1} parent=1 // pred_fallthru
      _
    // Predicated region
    $region18: #{q_forward.1} parent=1 // pred_check
      _
    $region19: #{q_forward.1} parent=1 // pred_check_branch
      %31 = sbr.rel (0) target = $region21
    $region20: #{q_forward.1} parent=1 // pred_region
      _
    $region21: #{q_forward.1} parent=1 // pred_fallthru
      _
    // Predicated region
    $region22: #{q_forward.1} parent=1 // pred_check
      _
    $region23: #{q_forward.1} parent=1 // pred_check_branch
      %33 = sbr.rel (0) target = $region25
    $region24: #{q_forward.1} parent=1 // pred_region
      _
    $region25: #{q_forward.1} parent=1 // pred_fallthru
      _
    // Predicated region
    $region26: #{q_forward.1} parent=1 // pred_check
      _
    $region27: #{q_forward.1} parent=1 // pred_check_branch
      %35 = sbr.rel (0) target = $region29
    $region28: #{q_forward.1} parent=1 // pred_region
      _
    $region29: #{q_forward.1} parent=1 // pred_fallthru
      _
    // Predicated region
    $region30: #{q_forward.1} parent=1 // pred_check
      _
    $region31: #{q_forward.1} parent=1 // pred_check_branch
      %37 = sbr.rel (0) target = $region33
    $region32: #{q_forward.1} parent=1 // pred_region
      %s39 = ssub.s32 16384, 16384
      %40 = vsyncadd [#allocation3], %s39
      %s41 = sshll.u32 [#allocation2], 4
      %s42 = int_to_ptr.vmem [resolvable:$true] %s41
      %47 = dma.hbm_to_vmem [thread:$0]  %s7, 16384, %s42, [#allocation3], 128, 128, 8
    $region33: #{q_forward.1} parent=1 // pred_fallthru
      _
    // Predicated region
    $region34: #{q_forward.1} parent=1 // pred_check
      _
    $region35: #{q_forward.1} parent=1 // pred_check_branch
      %49 = sbr.rel (0) target = $region37
    $region36: #{q_forward.1} parent=1 // pred_region
      _
    $region37: #{q_forward.1} parent=1 // pred_fallthru
      _
    // Predicated region
    $region38: #{q_forward.1} parent=1 // pred_check
      _
    $region39: #{q_forward.1} parent=1 // pred_check_branch
      %51 = sbr.rel (0) target = $region41
    $region40: #{q_forward.1} parent=1 // pred_region
      _
    $region41: #{q_forward.1} parent=1 // pred_fallthru
      _
    // Predicated region
    $region42: #{q_forward.1} parent=1 // pred_check
      _
    $region43: #{q_forward.1} parent=1 // pred_check_branch
      %53 = sbr.rel (0) target = $region45
    $region44: #{q_forward.1} parent=1 // pred_region
      _
    $region45: #{q_forward.1} parent=1 // pred_fallthru
      _
    // Predicated region
    $region46: #{q_forward.1} parent=1 // pred_check
      _
    $region47: #{q_forward.1} parent=1 // pred_check_branch
      %55 = sbr.rel (0) target = $region49
    $region48: #{q_forward.1} parent=1 // pred_region
      _
    $region49: #{q_forward.1} parent=1 // pred_fallthru
      _
    // Predicated region
    $region50: #{q_forward.1} parent=1 // pred_check
      _
    $region51: #{q_forward.1} parent=1 // pred_check_branch
      %57 = sbr.rel (0) target = $region53
    $region52: #{q_forward.1} parent=1 // pred_region
      _
    $region53: #{q_forward.1} parent=1 // pred_fallthru
      _
    // Predicated region
    $region54: #{q_forward.1} parent=1 // pred_check
      _
    $region55: #{q_forward.1} parent=1 // pred_check_branch
      %59 = sbr.rel (0) target = $region57
    $region56: #{q_forward.1} parent=1 // pred_region
      _
    $region57: #{q_forward.1} parent=1 // pred_fallthru
      _
    // Predicated region
    $region58: #{q_forward.1} parent=1 // pred_check
      _
    $region59: #{q_forward.1} parent=1 // pred_check_branch
      %61 = sbr.rel (0) target = $region61
    $region60: #{q_forward.1} parent=1 // pred_region
      _
    $region61: #{q_forward.1} parent=1 // pred_fallthru
      _
    // Predicated region
    $region62: #{q_forward.1} parent=1 // pred_check
      _
    $region63: #{q_forward.1} parent=1 // pred_check_branch
      %63 = sbr.rel (0) target = $region65
    $region64: #{q_forward.1} parent=1 // pred_region
      %64 = dma.done [#allocation3], 16384
    $region65: #{q_forward.1} parent=1 // pred_fallthru
      _
    %v65 = vld [vmem:[%s0] sm:$0xff]
    %v66 = vld [vmem:[%s0 + $0x8] sm:$0xff]
    %v67 = vld [vmem:[%s0 + $0x10] sm:$0xff]
    %v68 = vld [vmem:[%s0 + $0x18] sm:$0xff]
    %v69 = vld [vmem:[%s0 + $0x20] sm:$0xff]
    %v70 = vld [vmem:[%s0 + $0x28] sm:$0xff]
    %v71 = vld [vmem:[%s0 + $0x30] sm:$0xff]
    %v72 = vld [vmem:[%s0 + $0x38] sm:$0xff]
    %v73 = vld [vmem:[%s0 + $0x40] sm:$0xff]
    %v74 = vld [vmem:[%s0 + $0x48] sm:$0xff]
    %v75 = vld [vmem:[%s0 + $0x50] sm:$0xff]
    %v76 = vld [vmem:[%s0 + $0x58] sm:$0xff]
    %v77 = vld [vmem:[%s0 + $0x60] sm:$0x3]
    %v78 = vld [vmem:[%s1] sm:$0x7]
    %s79 = scalar_lea.vmem %s1, 4
    %v80 = vld [vmem:[%s79] sm:$0x7]
    %vm93 = vcmask 1046528
    %v94 = vrot.slane %v65, 1
    %v95 = vrot.slane %v66, 1
    %v96 = vsel %vm93, %v94, %v95
    %v97 = vrot.slane %v67, 1
    %v98 = vsel %vm93, %v95, %v97
    %v99 = vrot.slane %v68, 1
    %v100 = vsel %vm93, %v97, %v99
    %v101 = vrot.slane %v69, 1
    %v102 = vsel %vm93, %v99, %v101
    %v103 = vrot.slane %v70, 1
    %v104 = vsel %vm93, %v101, %v103
    %v105 = vrot.slane %v71, 1
    %v106 = vsel %vm93, %v103, %v105
    %v107 = vrot.slane %v72, 1
    %v108 = vsel %vm93, %v105, %v107
    %v109 = vrot.slane %v73, 1
    %v110 = vsel %vm93, %v107, %v109
    %v111 = vrot.slane %v74, 1
    %v112 = vsel %vm93, %v109, %v111
    %v113 = vrot.slane %v75, 1
    %v114 = vsel %vm93, %v111, %v113
    %v115 = vrot.slane %v76, 1
    %v116 = vsel %vm93, %v113, %v115
    %vm117 = vcmask 23552
    %v118 = vsel %vm117, %v96, 0
    %v120 = vsel %vm117, %v98, 0
    %v122 = vsel %vm117, %v100, 0
    %v124 = vsel %vm117, %v102, 0
    %v126 = vsel %vm117, %v104, 0
    %v128 = vsel %vm117, %v106, 0
    %v130 = vsel %vm117, %v108, 0
    %v132 = vsel %vm117, %v110, 0
    %v134 = vsel %vm117, %v112, 0
    %v136 = vsel %vm117, %v114, 0
    %v138 = vsel %vm117, %v116, 0
    %v140 = vsel %vm117, %v115, 0
    %vm142 = vcmask 1042432
    %v144 = vsel %vm142, %v80, 0
    %146 = vmatprep.subr.mxu0 0.0
    %147 = vmatpush1.msra.mxu0 0.0
    %148 = vmatprep.subr.mxu0 0.0
    %149 = vmatpush1.msra.mxu0 0.0
    %150 = vmatprep.subr.mxu0 0.0
    %151 = vmatpush1.msra.mxu0 0.0
    %152 = vmatprep.subr.mxu0 0.0
    %153 = vmatpush1.msra.mxu0 0.0
    %154 = vmatprep.subr.mxu0 0.0
    %155 = vmatpush1.msra.mxu0 0.0
    %156 = vmatprep.subr.mxu0 0.0
    %157 = vmatpush1.msra.mxu0 0.0
    %158 = vmatprep.subr.mxu0 0.0
    %159 = vmatpush1.msra.mxu0 0.0
    %160 = vmatprep.subr.mxu0 0.0
    %161 = vmatpush1.msra.mxu0 0.0
    %162 = vmatprep.subr.mxu0 0.0
    %163 = vmatpush1.msra.mxu0 0.0
    %164 = vmatprep.subr.mxu0 0.0
    %165 = vmatpush1.msra.mxu0 0.0
    %166 = vmatprep.subr.mxu0 0.0
    %167 = vmatpush1.msra.mxu0 0.0
    %168 = vmatprep.subr.mxu0 0.0
    %169 = vmatpush1.msra.mxu0 0.0
    %170 = vmatprep.subr.mxu0 0.0
    %171 = vmatpush1.msra.mxu0 0.0
    %172 = vmatprep.subr.mxu0 0.0
    %173 = vmatpush1.msra.mxu0 0.0
    %174 = vmatprep.subr.mxu0 0.0
    %175 = vmatpush1.msra.mxu0 0.0
    %176 = vmatprep.subr.mxu0 0.0
    %177 = vmatpush1.msra.mxu0 %v144
    %178 = vmatprep.subr.mxu0 0.0
    %179 = vmatpush2.msra.mxu0 0.0
    %180 = vmatprep.subr.mxu0 0.0
    %181 = vmatpush2.msra.mxu0 0.0
    %182 = vmatprep.subr.mxu0 0.0
    %183 = vmatpush2.msra.mxu0 0.0
    %184 = vmatprep.subr.mxu0 0.0
    %185 = vmatpush2.msra.mxu0 0.0
    %186 = vmatprep.subr.mxu0 0.0
    %187 = vmatpush2.msra.mxu0 0.0
    %188 = vmatprep.subr.mxu0 0.0
    %189 = vmatpush2.msra.mxu0 0.0
    %190 = vmatprep.subr.mxu0 0.0
    %191 = vmatpush2.msra.mxu0 0.0
    %192 = vmatprep.subr.mxu0 0.0
    %193 = vmatpush2.msra.mxu0 0.0
    %194 = vmatprep.subr.mxu0 0.0
    %195 = vmatpush2.msra.mxu0 0.0
    %196 = vmatprep.subr.mxu0 0.0
    %197 = vmatpush2.msra.mxu0 0.0
    %198 = vmatprep.subr.mxu0 0.0
    %199 = vmatpush2.msra.mxu0 0.0
    %200 = vmatprep.subr.mxu0 0.0
    %201 = vmatpush2.msra.mxu0 0.0
    %202 = vmatprep.subr.mxu0 0.0
    %203 = vmatpush2.msra.mxu0 0.0
    %204 = vmatprep.subr.mxu0 0.0
    %205 = vmatpush2.msra.mxu0 0.0
    %206 = vmatprep.subr.mxu0 0.0
    %207 = vmatpush2.msra.mxu0 0.0
    %208 = vmatprep.subr.mxu0 0.0
    %209 = vmatpush2.msra.mxu0 0.0
    %210 = vmatprep.mubr.f32.mxu0 0.0
    %211 = vmatmul.mubr.f32.gmra.mxu0 %v118
    %v212 = vpop.f32.mrf.mxu0
    %v213 = vadd.f32 0.0, %v212
    %v214 = vpop.f32.mrf.mxu0
    %215 = vmatprep.mubr.f32.mxu0 0.0
    %216 = vmatmul.mubr.f32.gmra.mxu0 %v120
    %v217 = vpop.f32.mrf.mxu0
    %v218 = vadd.f32 0.0, %v217
    %v219 = vpop.f32.mrf.mxu0
    %220 = vmatprep.mubr.f32.mxu0 0.0
    %221 = vmatmul.mubr.f32.gmra.mxu0 %v122
    %v222 = vpop.f32.mrf.mxu0
    %v223 = vadd.f32 0.0, %v222
    %v224 = vpop.f32.mrf.mxu0
    %225 = vmatprep.mubr.f32.mxu0 0.0
    %226 = vmatmul.mubr.f32.gmra.mxu0 %v124
    %v227 = vpop.f32.mrf.mxu0
    %v228 = vadd.f32 0.0, %v227
    %v229 = vpop.f32.mrf.mxu0
    %230 = vmatprep.mubr.f32.mxu0 0.0
    %231 = vmatmul.mubr.f32.gmra.mxu0 %v126
    %v232 = vpop.f32.mrf.mxu0
    %v233 = vadd.f32 0.0, %v232
    %v234 = vpop.f32.mrf.mxu0
    %235 = vmatprep.mubr.f32.mxu0 0.0
    %236 = vmatmul.mubr.f32.gmra.mxu0 %v128
    %v237 = vpop.f32.mrf.mxu0
    %v238 = vadd.f32 0.0, %v237
    %v239 = vpop.f32.mrf.mxu0
    %240 = vmatprep.mubr.f32.mxu0 0.0
    %241 = vmatmul.mubr.f32.gmra.mxu0 %v130
    %v242 = vpop.f32.mrf.mxu0
    %v243 = vadd.f32 0.0, %v242
    %v244 = vpop.f32.mrf.mxu0
    %245 = vmatprep.mubr.f32.mxu0 0.0
    %246 = vmatmul.mubr.f32.gmra.mxu0 %v132
    %v247 = vpop.f32.mrf.mxu0
    %v248 = vadd.f32 0.0, %v247
    %v249 = vpop.f32.mrf.mxu0
    %250 = vmatprep.mubr.f32.mxu0 0.0
    %251 = vmatmul.mubr.f32.gmra.mxu0 %v134
    %v252 = vpop.f32.mrf.mxu0
    %v253 = vadd.f32 0.0, %v252
    %v254 = vpop.f32.mrf.mxu0
    %255 = vmatprep.mubr.f32.mxu0 0.0
    %256 = vmatmul.mubr.f32.gmra.mxu0 %v136
    %v257 = vpop.f32.mrf.mxu0
    %v258 = vadd.f32 0.0, %v257
    %v259 = vpop.f32.mrf.mxu0
    %260 = vmatprep.mubr.f32.mxu0 0.0
    %261 = vmatmul.mubr.f32.gmra.mxu0 %v138
    %v262 = vpop.f32.mrf.mxu0
    %v263 = vadd.f32 0.0, %v262
    %v264 = vpop.f32.mrf.mxu0
    %265 = vmatprep.mubr.f32.mxu0 0.0
    %266 = vmatmul.mubr.f32.gmra.mxu0 %v140
    %v267 = vpop.f32.mrf.mxu0
    %v268 = vadd.f32 0.0, %v267
    %v269 = vpop.f32.mrf.mxu0
    %270 = vdwg.mxu0
    %v271 = vsel %vm117, %v65, 0
    %v273 = vsel %vm117, %v66, 0
    %v275 = vsel %vm117, %v67, 0
    %v277 = vsel %vm117, %v68, 0
    %v279 = vsel %vm117, %v69, 0
    %v281 = vsel %vm117, %v70, 0
    %v283 = vsel %vm117, %v71, 0
    %v285 = vsel %vm117, %v72, 0
    %v287 = vsel %vm117, %v73, 0
    %v289 = vsel %vm117, %v74, 0
    %v291 = vsel %vm117, %v75, 0
    %v293 = vsel %vm117, %v76, 0
    %v296 = vsel %vm142, %v78, 0
    %298 = vmatprep.subr.mxu0 0.0
    %299 = vmatpush1.msra.mxu0 0.0
    %300 = vmatprep.subr.mxu0 0.0
    %301 = vmatpush1.msra.mxu0 0.0
    %302 = vmatprep.subr.mxu0 0.0
    %303 = vmatpush1.msra.mxu0 0.0
    %304 = vmatprep.subr.mxu0 0.0
    %305 = vmatpush1.msra.mxu0 0.0
    %306 = vmatprep.subr.mxu0 0.0
    %307 = vmatpush1.msra.mxu0 0.0
    %308 = vmatprep.subr.mxu0 0.0
    %309 = vmatpush1.msra.mxu0 0.0
    %310 = vmatprep.subr.mxu0 0.0
    %311 = vmatpush1.msra.mxu0 0.0
    %312 = vmatprep.subr.mxu0 0.0
    %313 = vmatpush1.msra.mxu0 0.0
    %314 = vmatprep.subr.mxu0 0.0
    %315 = vmatpush1.msra.mxu0 0.0
    %316 = vmatprep.subr.mxu0 0.0
    %317 = vmatpush1.msra.mxu0 0.0
    %318 = vmatprep.subr.mxu0 0.0
    %319 = vmatpush1.msra.mxu0 0.0
    %320 = vmatprep.subr.mxu0 0.0
    %321 = vmatpush1.msra.mxu0 0.0
    %322 = vmatprep.subr.mxu0 0.0
    %323 = vmatpush1.msra.mxu0 0.0
    %324 = vmatprep.subr.mxu0 0.0
    %325 = vmatpush1.msra.mxu0 0.0
    %326 = vmatprep.subr.mxu0 0.0
    %327 = vmatpush1.msra.mxu0 0.0
    %328 = vmatprep.subr.mxu0 0.0
    %329 = vmatpush1.msra.mxu0 %v296
    %330 = vmatprep.subr.mxu0 0.0
    %331 = vmatpush2.msra.mxu0 0.0
    %332 = vmatprep.subr.mxu0 0.0
    %333 = vmatpush2.msra.mxu0 0.0
    %334 = vmatprep.subr.mxu0 0.0
    %335 = vmatpush2.msra.mxu0 0.0
    %336 = vmatprep.subr.mxu0 0.0
    %337 = vmatpush2.msra.mxu0 0.0
    %338 = vmatprep.subr.mxu0 0.0
    %339 = vmatpush2.msra.mxu0 0.0
    %340 = vmatprep.subr.mxu0 0.0
    %341 = vmatpush2.msra.mxu0 0.0
    %342 = vmatprep.subr.mxu0 0.0
    %343 = vmatpush2.msra.mxu0 0.0
    %344 = vmatprep.subr.mxu0 0.0
    %345 = vmatpush2.msra.mxu0 0.0
    %346 = vmatprep.subr.mxu0 0.0
    %347 = vmatpush2.msra.mxu0 0.0
    %348 = vmatprep.subr.mxu0 0.0
    %349 = vmatpush2.msra.mxu0 0.0
    %350 = vmatprep.subr.mxu0 0.0
    %351 = vmatpush2.msra.mxu0 0.0
    %352 = vmatprep.subr.mxu0 0.0
    %353 = vmatpush2.msra.mxu0 0.0
    %354 = vmatprep.subr.mxu0 0.0
    %355 = vmatpush2.msra.mxu0 0.0
    %356 = vmatprep.subr.mxu0 0.0
    %357 = vmatpush2.msra.mxu0 0.0
    %358 = vmatprep.subr.mxu0 0.0
    %359 = vmatpush2.msra.mxu0 0.0
    %360 = vmatprep.subr.mxu0 0.0
    %361 = vmatpush2.msra.mxu0 0.0
    %362 = vmatprep.mubr.f32.mxu0 0.0
    %363 = vmatmul.mubr.f32.gmra.mxu0 %v271
    %v364 = vpop.f32.mrf.mxu0
    %v365 = vadd.f32 %v213, %v364
    %v366 = vpop.f32.mrf.mxu0
    %367 = vmatprep.mubr.f32.mxu0 0.0
    %368 = vmatmul.mubr.f32.gmra.mxu0 %v273
    %v369 = vpop.f32.mrf.mxu0
    %v370 = vadd.f32 %v218, %v369
    %v371 = vpop.f32.mrf.mxu0
    %372 = vmatprep.mubr.f32.mxu0 0.0
    %373 = vmatmul.mubr.f32.gmra.mxu0 %v275
    %v374 = vpop.f32.mrf.mxu0
    %v375 = vadd.f32 %v223, %v374
    %v376 = vpop.f32.mrf.mxu0
    %377 = vmatprep.mubr.f32.mxu0 0.0
    %378 = vmatmul.mubr.f32.gmra.mxu0 %v277
    %v379 = vpop.f32.mrf.mxu0
    %v380 = vadd.f32 %v228, %v379
    %v381 = vpop.f32.mrf.mxu0
    %382 = vmatprep.mubr.f32.mxu0 0.0
    %383 = vmatmul.mubr.f32.gmra.mxu0 %v279
    %v384 = vpop.f32.mrf.mxu0
    %v385 = vadd.f32 %v233, %v384
    %v386 = vpop.f32.mrf.mxu0
    %387 = vmatprep.mubr.f32.mxu0 0.0
    %388 = vmatmul.mubr.f32.gmra.mxu0 %v281
    %v389 = vpop.f32.mrf.mxu0
    %v390 = vadd.f32 %v238, %v389
    %v391 = vpop.f32.mrf.mxu0
    %392 = vmatprep.mubr.f32.mxu0 0.0
    %393 = vmatmul.mubr.f32.gmra.mxu0 %v283
    %v394 = vpop.f32.mrf.mxu0
    %v395 = vadd.f32 %v243, %v394
    %v396 = vpop.f32.mrf.mxu0
    %397 = vmatprep.mubr.f32.mxu0 0.0
    %398 = vmatmul.mubr.f32.gmra.mxu0 %v285
    %v399 = vpop.f32.mrf.mxu0
    %v400 = vadd.f32 %v248, %v399
    %v401 = vpop.f32.mrf.mxu0
    %402 = vmatprep.mubr.f32.mxu0 0.0
    %403 = vmatmul.mubr.f32.gmra.mxu0 %v287
    %v404 = vpop.f32.mrf.mxu0
    %v405 = vadd.f32 %v253, %v404
    %v406 = vpop.f32.mrf.mxu0
    %407 = vmatprep.mubr.f32.mxu0 0.0
    %408 = vmatmul.mubr.f32.gmra.mxu0 %v289
    %v409 = vpop.f32.mrf.mxu0
    %v410 = vadd.f32 %v258, %v409
    %v411 = vpop.f32.mrf.mxu0
    %412 = vmatprep.mubr.f32.mxu0 0.0
    %413 = vmatmul.mubr.f32.gmra.mxu0 %v291
    %v414 = vpop.f32.mrf.mxu0
    %v415 = vadd.f32 %v263, %v414
    %v416 = vpop.f32.mrf.mxu0
    %417 = vmatprep.mubr.f32.mxu0 0.0
    %418 = vmatmul.mubr.f32.gmra.mxu0 %v293
    %v419 = vpop.f32.mrf.mxu0
    %v420 = vadd.f32 %v268, %v419
    %v421 = vpop.f32.mrf.mxu0
    %422 = vdwg.mxu0
    %s423 = scalar_lea.vmem %s1, 8
    %v424 = vld [vmem:[%s423] sm:$0x7]
    %vm426 = vcmask 1040384
    %v427 = vrot.slane %v65, 7
    %v428 = vrot.slane %v66, 7
    %v429 = vsel %vm426, %v427, %v428
    %v430 = vrot.slane %v67, 7
    %v431 = vsel %vm426, %v428, %v430
    %v432 = vrot.slane %v68, 7
    %v433 = vsel %vm426, %v430, %v432
    %v434 = vrot.slane %v69, 7
    %v435 = vsel %vm426, %v432, %v434
    %v436 = vrot.slane %v70, 7
    %v437 = vsel %vm426, %v434, %v436
    %v438 = vrot.slane %v71, 7
    %v439 = vsel %vm426, %v436, %v438
    %v440 = vrot.slane %v72, 7
    %v441 = vsel %vm426, %v438, %v440
    %v442 = vrot.slane %v73, 7
    %v443 = vsel %vm426, %v440, %v442
    %v444 = vrot.slane %v74, 7
    %v445 = vsel %vm426, %v442, %v444
    %v446 = vrot.slane %v75, 7
    %v447 = vsel %vm426, %v444, %v446
    %v448 = vrot.slane %v76, 7
    %v449 = vsel %vm426, %v446, %v448
    %v450 = vrot.slane %v77, 7
    %v451 = vsel %vm426, %v448, %v450
    %v452 = vsel %vm117, %v429, 0
    %v454 = vsel %vm117, %v431, 0
    %v456 = vsel %vm117, %v433, 0
    %v458 = vsel %vm117, %v435, 0
    %v460 = vsel %vm117, %v437, 0
    %v462 = vsel %vm117, %v439, 0
    %v464 = vsel %vm117, %v441, 0
    %v466 = vsel %vm117, %v443, 0
    %v468 = vsel %vm117, %v445, 0
    %v470 = vsel %vm117, %v447, 0
    %v472 = vsel %vm117, %v449, 0
    %v474 = vsel %vm117, %v451, 0
    %v477 = vsel %vm142, %v424, 0
    %479 = vmatprep.subr.mxu0 0.0
    %480 = vmatpush1.msra.mxu0 0.0
    %481 = vmatprep.subr.mxu0 0.0
    %482 = vmatpush1.msra.mxu0 0.0
    %483 = vmatprep.subr.mxu0 0.0
    %484 = vmatpush1.msra.mxu0 0.0
    %485 = vmatprep.subr.mxu0 0.0
    %486 = vmatpush1.msra.mxu0 0.0
    %487 = vmatprep.subr.mxu0 0.0
    %488 = vmatpush1.msra.mxu0 0.0
    %489 = vmatprep.subr.mxu0 0.0
    %490 = vmatpush1.msra.mxu0 0.0
    %491 = vmatprep.subr.mxu0 0.0
    %492 = vmatpush1.msra.mxu0 0.0
    %493 = vmatprep.subr.mxu0 0.0
    %494 = vmatpush1.msra.mxu0 0.0
    %495 = vmatprep.subr.mxu0 0.0
    %496 = vmatpush1.msra.mxu0 0.0
    %497 = vmatprep.subr.mxu0 0.0
    %498 = vmatpush1.msra.mxu0 0.0
    %499 = vmatprep.subr.mxu0 0.0
    %500 = vmatpush1.msra.mxu0 0.0
    %501 = vmatprep.subr.mxu0 0.0
    %502 = vmatpush1.msra.mxu0 0.0
    %503 = vmatprep.subr.mxu0 0.0
    %504 = vmatpush1.msra.mxu0 0.0
    %505 = vmatprep.subr.mxu0 0.0
    %506 = vmatpush1.msra.mxu0 0.0
    %507 = vmatprep.subr.mxu0 0.0
    %508 = vmatpush1.msra.mxu0 0.0
    %509 = vmatprep.subr.mxu0 0.0
    %510 = vmatpush1.msra.mxu0 %v477
    %511 = vmatprep.subr.mxu0 0.0
    %512 = vmatpush2.msra.mxu0 0.0
    %513 = vmatprep.subr.mxu0 0.0
    %514 = vmatpush2.msra.mxu0 0.0
    %515 = vmatprep.subr.mxu0 0.0
    %516 = vmatpush2.msra.mxu0 0.0
    %517 = vmatprep.subr.mxu0 0.0
    %518 = vmatpush2.msra.mxu0 0.0
    %519 = vmatprep.subr.mxu0 0.0
    %520 = vmatpush2.msra.mxu0 0.0
    %521 = vmatprep.subr.mxu0 0.0
    %522 = vmatpush2.msra.mxu0 0.0
    %523 = vmatprep.subr.mxu0 0.0
    %524 = vmatpush2.msra.mxu0 0.0
    %525 = vmatprep.subr.mxu0 0.0
    %526 = vmatpush2.msra.mxu0 0.0
    %527 = vmatprep.subr.mxu0 0.0
    %528 = vmatpush2.msra.mxu0 0.0
    %529 = vmatprep.subr.mxu0 0.0
    %530 = vmatpush2.msra.mxu0 0.0
    %531 = vmatprep.subr.mxu0 0.0
    %532 = vmatpush2.msra.mxu0 0.0
    %533 = vmatprep.subr.mxu0 0.0
    %534 = vmatpush2.msra.mxu0 0.0
    %535 = vmatprep.subr.mxu0 0.0
    %536 = vmatpush2.msra.mxu0 0.0
    %537 = vmatprep.subr.mxu0 0.0
    %538 = vmatpush2.msra.mxu0 0.0
    %539 = vmatprep.subr.mxu0 0.0
    %540 = vmatpush2.msra.mxu0 0.0
    %541 = vmatprep.subr.mxu0 0.0
    %542 = vmatpush2.msra.mxu0 0.0
    %543 = vmatprep.mubr.f32.mxu0 0.0
    %544 = vmatmul.mubr.f32.gmra.mxu0 %v452
    %v545 = vpop.f32.mrf.mxu0
    %v546 = vadd.f32 0.0, %v545
    %v547 = vpop.f32.mrf.mxu0
    %548 = vmatprep.mubr.f32.mxu0 0.0
    %549 = vmatmul.mubr.f32.gmra.mxu0 %v454
    %v550 = vpop.f32.mrf.mxu0
    %v551 = vadd.f32 0.0, %v550
    %v552 = vpop.f32.mrf.mxu0
    %553 = vmatprep.mubr.f32.mxu0 0.0
    %554 = vmatmul.mubr.f32.gmra.mxu0 %v456
    %v555 = vpop.f32.mrf.mxu0
    %v556 = vadd.f32 0.0, %v555
    %v557 = vpop.f32.mrf.mxu0
    %558 = vmatprep.mubr.f32.mxu0 0.0
    %559 = vmatmul.mubr.f32.gmra.mxu0 %v458
    %v560 = vpop.f32.mrf.mxu0
    %v561 = vadd.f32 0.0, %v560
    %v562 = vpop.f32.mrf.mxu0
    %563 = vmatprep.mubr.f32.mxu0 0.0
    %564 = vmatmul.mubr.f32.gmra.mxu0 %v460
    %v565 = vpop.f32.mrf.mxu0
    %v566 = vadd.f32 0.0, %v565
    %v567 = vpop.f32.mrf.mxu0
    %568 = vmatprep.mubr.f32.mxu0 0.0
    %569 = vmatmul.mubr.f32.gmra.mxu0 %v462
    %v570 = vpop.f32.mrf.mxu0
    %v571 = vadd.f32 0.0, %v570
    %v572 = vpop.f32.mrf.mxu0
    %573 = vmatprep.mubr.f32.mxu0 0.0
    %574 = vmatmul.mubr.f32.gmra.mxu0 %v464
    %v575 = vpop.f32.mrf.mxu0
    %v576 = vadd.f32 0.0, %v575
    %v577 = vpop.f32.mrf.mxu0
    %578 = vmatprep.mubr.f32.mxu0 0.0
    %579 = vmatmul.mubr.f32.gmra.mxu0 %v466
    %v580 = vpop.f32.mrf.mxu0
    %v581 = vadd.f32 0.0, %v580
    %v582 = vpop.f32.mrf.mxu0
    %583 = vmatprep.mubr.f32.mxu0 0.0
    %584 = vmatmul.mubr.f32.gmra.mxu0 %v468
    %v585 = vpop.f32.mrf.mxu0
    %v586 = vadd.f32 0.0, %v585
    %v587 = vpop.f32.mrf.mxu0
    %588 = vmatprep.mubr.f32.mxu0 0.0
    %589 = vmatmul.mubr.f32.gmra.mxu0 %v470
    %v590 = vpop.f32.mrf.mxu0
    %v591 = vadd.f32 0.0, %v590
    %v592 = vpop.f32.mrf.mxu0
    %593 = vmatprep.mubr.f32.mxu0 0.0
    %594 = vmatmul.mubr.f32.gmra.mxu0 %v472
    %v595 = vpop.f32.mrf.mxu0
    %v596 = vadd.f32 0.0, %v595
    %v597 = vpop.f32.mrf.mxu0
    %598 = vmatprep.mubr.f32.mxu0 0.0
    %599 = vmatmul.mubr.f32.gmra.mxu0 %v474
    %v600 = vpop.f32.mrf.mxu0
    %v601 = vadd.f32 0.0, %v600
    %v602 = vpop.f32.mrf.mxu0
    %603 = vdwg.mxu0
    %v604 = vadd.f32 %v365, %v546
    %v605 = vadd.f32 %v370, %v551
    %v606 = vadd.f32 %v375, %v556
    %v607 = vadd.f32 %v380, %v561
    %v608 = vadd.f32 %v385, %v566
    %v609 = vadd.f32 %v390, %v571
    %v610 = vadd.f32 %v395, %v576
    %v611 = vadd.f32 %v400, %v581
    %v612 = vadd.f32 %v405, %v586
    %v613 = vadd.f32 %v410, %v591
    %v614 = vadd.f32 %v415, %v596
    %v615 = vadd.f32 %v420, %v601
    %s616 = scalar_lea.vmem %s1, 12
    %v617 = vld [vmem:[%s616] sm:$0x7]
    %v618 = vsel %vm117, %v77, 0
    %v621 = vsel %vm142, %v617, 0
    %623 = vmatprep.subr.mxu0 0.0
    %624 = vmatpush1.msra.mxu0 0.0
    %625 = vmatprep.subr.mxu0 0.0
    %626 = vmatpush1.msra.mxu0 0.0
    %627 = vmatprep.subr.mxu0 0.0
    %628 = vmatpush1.msra.mxu0 0.0
    %629 = vmatprep.subr.mxu0 0.0
    %630 = vmatpush1.msra.mxu0 0.0
    %631 = vmatprep.subr.mxu0 0.0
    %632 = vmatpush1.msra.mxu0 0.0
    %633 = vmatprep.subr.mxu0 0.0
    %634 = vmatpush1.msra.mxu0 0.0
    %635 = vmatprep.subr.mxu0 0.0
    %636 = vmatpush1.msra.mxu0 0.0
    %637 = vmatprep.subr.mxu0 0.0
    %638 = vmatpush1.msra.mxu0 0.0
    %639 = vmatprep.subr.mxu0 0.0
    %640 = vmatpush1.msra.mxu0 0.0
    %641 = vmatprep.subr.mxu0 0.0
    %642 = vmatpush1.msra.mxu0 0.0
    %643 = vmatprep.subr.mxu0 0.0
    %644 = vmatpush1.msra.mxu0 0.0
    %645 = vmatprep.subr.mxu0 0.0
    %646 = vmatpush1.msra.mxu0 0.0
    %647 = vmatprep.subr.mxu0 0.0
    %648 = vmatpush1.msra.mxu0 0.0
    %649 = vmatprep.subr.mxu0 0.0
    %650 = vmatpush1.msra.mxu0 0.0
    %651 = vmatprep.subr.mxu0 0.0
    %652 = vmatpush1.msra.mxu0 0.0
    %653 = vmatprep.subr.mxu0 0.0
    %654 = vmatpush1.msra.mxu0 %v621
    %655 = vmatprep.subr.mxu0 0.0
    %656 = vmatpush2.msra.mxu0 0.0
    %657 = vmatprep.subr.mxu0 0.0
    %658 = vmatpush2.msra.mxu0 0.0
    %659 = vmatprep.subr.mxu0 0.0
    %660 = vmatpush2.msra.mxu0 0.0
    %661 = vmatprep.subr.mxu0 0.0
    %662 = vmatpush2.msra.mxu0 0.0
    %663 = vmatprep.subr.mxu0 0.0
    %664 = vmatpush2.msra.mxu0 0.0
    %665 = vmatprep.subr.mxu0 0.0
    %666 = vmatpush2.msra.mxu0 0.0
    %667 = vmatprep.subr.mxu0 0.0
    %668 = vmatpush2.msra.mxu0 0.0
    %669 = vmatprep.subr.mxu0 0.0
    %670 = vmatpush2.msra.mxu0 0.0
    %671 = vmatprep.subr.mxu0 0.0
    %672 = vmatpush2.msra.mxu0 0.0
    %673 = vmatprep.subr.mxu0 0.0
    %674 = vmatpush2.msra.mxu0 0.0
    %675 = vmatprep.subr.mxu0 0.0
    %676 = vmatpush2.msra.mxu0 0.0
    %677 = vmatprep.subr.mxu0 0.0
    %678 = vmatpush2.msra.mxu0 0.0
    %679 = vmatprep.subr.mxu0 0.0
    %680 = vmatpush2.msra.mxu0 0.0
    %681 = vmatprep.subr.mxu0 0.0
    %682 = vmatpush2.msra.mxu0 0.0
    %683 = vmatprep.subr.mxu0 0.0
    %684 = vmatpush2.msra.mxu0 0.0
    %685 = vmatprep.subr.mxu0 0.0
    %686 = vmatpush2.msra.mxu0 0.0
    %687 = vmatprep.mubr.f32.mxu0 0.0
    %688 = vmatmul.mubr.f32.gmra.mxu0 %v273
    %v689 = vpop.f32.mrf.mxu0
    %v690 = vadd.f32 0.0, %v689
    %v691 = vpop.f32.mrf.mxu0
    %692 = vmatprep.mubr.f32.mxu0 0.0
    %693 = vmatmul.mubr.f32.gmra.mxu0 %v275
    %v694 = vpop.f32.mrf.mxu0
    %v695 = vadd.f32 0.0, %v694
    %v696 = vpop.f32.mrf.mxu0
    %697 = vmatprep.mubr.f32.mxu0 0.0
    %698 = vmatmul.mubr.f32.gmra.mxu0 %v277
    %v699 = vpop.f32.mrf.mxu0
    %v700 = vadd.f32 0.0, %v699
    %v701 = vpop.f32.mrf.mxu0
    %702 = vmatprep.mubr.f32.mxu0 0.0
    %703 = vmatmul.mubr.f32.gmra.mxu0 %v279
    %v704 = vpop.f32.mrf.mxu0
    %v705 = vadd.f32 0.0, %v704
    %v706 = vpop.f32.mrf.mxu0
    %707 = vmatprep.mubr.f32.mxu0 0.0
    %708 = vmatmul.mubr.f32.gmra.mxu0 %v281
    %v709 = vpop.f32.mrf.mxu0
    %v710 = vadd.f32 0.0, %v709
    %v711 = vpop.f32.mrf.mxu0
    %712 = vmatprep.mubr.f32.mxu0 0.0
    %713 = vmatmul.mubr.f32.gmra.mxu0 %v283
    %v714 = vpop.f32.mrf.mxu0
    %v715 = vadd.f32 0.0, %v714
    %v716 = vpop.f32.mrf.mxu0
    %717 = vmatprep.mubr.f32.mxu0 0.0
    %718 = vmatmul.mubr.f32.gmra.mxu0 %v285
    %v719 = vpop.f32.mrf.mxu0
    %v720 = vadd.f32 0.0, %v719
    %v721 = vpop.f32.mrf.mxu0
    %722 = vmatprep.mubr.f32.mxu0 0.0
    %723 = vmatmul.mubr.f32.gmra.mxu0 %v287
    %v724 = vpop.f32.mrf.mxu0
    %v725 = vadd.f32 0.0, %v724
    %v726 = vpop.f32.mrf.mxu0
    %727 = vmatprep.mubr.f32.mxu0 0.0
    %728 = vmatmul.mubr.f32.gmra.mxu0 %v289
    %v729 = vpop.f32.mrf.mxu0
    %v730 = vadd.f32 0.0, %v729
    %v731 = vpop.f32.mrf.mxu0
    %732 = vmatprep.mubr.f32.mxu0 0.0
    %733 = vmatmul.mubr.f32.gmra.mxu0 %v291
    %v734 = vpop.f32.mrf.mxu0
    %v735 = vadd.f32 0.0, %v734
    %v736 = vpop.f32.mrf.mxu0
    %737 = vmatprep.mubr.f32.mxu0 0.0
    %738 = vmatmul.mubr.f32.gmra.mxu0 %v293
    %v739 = vpop.f32.mrf.mxu0
    %v740 = vadd.f32 0.0, %v739
    %v741 = vpop.f32.mrf.mxu0
    %742 = vmatprep.mubr.f32.mxu0 0.0
    %743 = vmatmul.mubr.f32.gmra.mxu0 %v618
    %v744 = vpop.f32.mrf.mxu0
    %v745 = vadd.f32 0.0, %v744
    %v746 = vpop.f32.mrf.mxu0
    %747 = vdwg.mxu0
    %v748 = vadd.f32 %v604, %v690
    %v749 = vadd.f32 %v605, %v695
    %v750 = vadd.f32 %v606, %v700
    %v751 = vadd.f32 %v607, %v705
    %v752 = vadd.f32 %v608, %v710
    %v753 = vadd.f32 %v609, %v715
    %v754 = vadd.f32 %v610, %v720
    %v755 = vadd.f32 %v611, %v725
    %v756 = vadd.f32 %v612, %v730
    %v757 = vadd.f32 %v613, %v735
    %v758 = vadd.f32 %v614, %v740
    %v759 = vadd.f32 %v615, %v745
    %v760 = vld [vmem:[%s2] sm:$0x1]
    %v762 = vlaneseq
    %v763 = vshrl.u32 %v762, 7
    %v764 = vsub.s32 0, %v763
    %v765 = vrot.slane %v760, %v764
    %v767 = vadd.f32 %v748, %v765
    %v768 = vadd.f32 %v749, %v765
    %v769 = vadd.f32 %v750, %v765
    %v770 = vadd.f32 %v751, %v765
    %v771 = vadd.f32 %v752, %v765
    %v772 = vadd.f32 %v753, %v765
    %v773 = vadd.f32 %v754, %v765
    %v774 = vadd.f32 %v755, %v765
    %v775 = vadd.f32 %v756, %v765
    %v776 = vadd.f32 %v757, %v765
    %v777 = vadd.f32 %v758, %v765
    %v778 = vadd.f32 %v759, %v765
    %v779 = vmax.f32 %v767, 0.0
    %v780 = vmax.f32 %v768, 0.0
    %v781 = vmax.f32 %v769, 0.0
    %v782 = vmax.f32 %v770, 0.0
    %v783 = vmax.f32 %v771, 0.0
    %v784 = vmax.f32 %v772, 0.0
    %v785 = vmax.f32 %v773, 0.0
    %v786 = vmax.f32 %v774, 0.0
    %v787 = vmax.f32 %v775, 0.0
    %v788 = vmax.f32 %v776, 0.0
    %v789 = vmax.f32 %v777, 0.0
    %v790 = vmax.f32 %v778, 0.0
    %v791 = vld [vmem:[%s3] sm:$0xff]
    %v792 = vld [vmem:[%s3 + $0x8] sm:$0xff]
    %s793 = scalar_lea.vmem %s3, 16
    %v794 = vld [vmem:[%s793] sm:$0xff]
    %v795 = vld [vmem:[%s793 + $0x8] sm:$0xff]
    %v807 = vrot.slane %v779, 1
    %v808 = vrot.slane %v780, 1
    %v809 = vsel %vm93, %v807, %v808
    %v810 = vrot.slane %v781, 1
    %v811 = vsel %vm93, %v808, %v810
    %v812 = vrot.slane %v782, 1
    %v813 = vsel %vm93, %v810, %v812
    %v814 = vrot.slane %v783, 1
    %v815 = vsel %vm93, %v812, %v814
    %v816 = vrot.slane %v784, 1
    %v817 = vsel %vm93, %v814, %v816
    %v818 = vrot.slane %v785, 1
    %v819 = vsel %vm93, %v816, %v818
    %v820 = vrot.slane %v786, 1
    %v821 = vsel %vm93, %v818, %v820
    %v822 = vrot.slane %v787, 1
    %v823 = vsel %vm93, %v820, %v822
    %v824 = vrot.slane %v788, 1
    %v825 = vsel %vm93, %v822, %v824
    %v826 = vrot.slane %v789, 1
    %v827 = vsel %vm93, %v824, %v826
    %vm828 = vcmask 130048
    %v829 = vsel %vm828, %v809, 0
    %v831 = vsel %vm828, %v811, 0
    %v833 = vsel %vm828, %v813, 0
    %v835 = vsel %vm828, %v815, 0
    %v837 = vsel %vm828, %v817, 0
    %v839 = vsel %vm828, %v819, 0
    %v841 = vsel %vm828, %v821, 0
    %v843 = vsel %vm828, %v823, 0
    %v845 = vsel %vm828, %v825, 0
    %v847 = vsel %vm828, %v827, 0
    %v849 = vsel %vm828, %v826, 0
    %851 = vmatprep.subr.mxu0 0.0
    %852 = vmatpush1.msra.mxu0 0.0
    %853 = vmatprep.subr.mxu0 0.0
    %854 = vmatpush1.msra.mxu0 0.0
    %855 = vmatprep.subr.mxu0 0.0
    %856 = vmatpush1.msra.mxu0 0.0
    %857 = vmatprep.subr.mxu0 0.0
    %858 = vmatpush1.msra.mxu0 0.0
    %859 = vmatprep.subr.mxu0 0.0
    %860 = vmatpush1.msra.mxu0 0.0
    %861 = vmatprep.subr.mxu0 0.0
    %862 = vmatpush1.msra.mxu0 0.0
    %863 = vmatprep.subr.mxu0 0.0
    %864 = vmatpush1.msra.mxu0 0.0
    %865 = vmatprep.subr.mxu0 0.0
    %866 = vmatpush1.msra.mxu0 0.0
    %867 = vmatprep.subr.mxu0 0.0
    %868 = vmatpush1.msra.mxu0 0.0
    %869 = vmatprep.subr.mxu0 0.0
    %870 = vmatpush1.msra.mxu0 0.0
    %871 = vmatprep.subr.mxu0 0.0
    %872 = vmatpush1.msra.mxu0 0.0
    %873 = vmatprep.subr.mxu0 0.0
    %874 = vmatpush1.msra.mxu0 0.0
    %875 = vmatprep.subr.mxu0 0.0
    %876 = vmatpush1.msra.mxu0 0.0
    %877 = vmatprep.subr.mxu0 0.0
    %878 = vmatpush1.msra.mxu0 0.0
    %879 = vmatprep.subr.mxu0 0.0
    %880 = vmatpush1.msra.mxu0 %v795
    %881 = vmatprep.subr.mxu0 0.0
    %882 = vmatpush1.msra.mxu0 %v794
    %883 = vmatprep.subr.mxu0 0.0
    %884 = vmatpush2.msra.mxu0 0.0
    %885 = vmatprep.subr.mxu0 0.0
    %886 = vmatpush2.msra.mxu0 0.0
    %887 = vmatprep.subr.mxu0 0.0
    %888 = vmatpush2.msra.mxu0 0.0
    %889 = vmatprep.subr.mxu0 0.0
    %890 = vmatpush2.msra.mxu0 0.0
    %891 = vmatprep.subr.mxu0 0.0
    %892 = vmatpush2.msra.mxu0 0.0
    %893 = vmatprep.subr.mxu0 0.0
    %894 = vmatpush2.msra.mxu0 0.0
    %895 = vmatprep.subr.mxu0 0.0
    %896 = vmatpush2.msra.mxu0 0.0
    %897 = vmatprep.subr.mxu0 0.0
    %898 = vmatpush2.msra.mxu0 0.0
    %899 = vmatprep.subr.mxu0 0.0
    %900 = vmatpush2.msra.mxu0 0.0
    %901 = vmatprep.subr.mxu0 0.0
    %902 = vmatpush2.msra.mxu0 0.0
    %903 = vmatprep.subr.mxu0 0.0
    %904 = vmatpush2.msra.mxu0 0.0
    %905 = vmatprep.subr.mxu0 0.0
    %906 = vmatpush2.msra.mxu0 0.0
    %907 = vmatprep.subr.mxu0 0.0
    %908 = vmatpush2.msra.mxu0 0.0
    %909 = vmatprep.subr.mxu0 0.0
    %910 = vmatpush2.msra.mxu0 0.0
    %911 = vmatprep.subr.mxu0 0.0
    %912 = vmatpush2.msra.mxu0 0.0
    %913 = vmatprep.subr.mxu0 0.0
    %914 = vmatpush2.msra.mxu0 0.0
    %915 = vmatprep.mubr.f32.mxu0 0.0
    %916 = vmatmul.mubr.f32.gmra.mxu0 %v829
    %v917 = vpop.f32.mrf.mxu0
    %v918 = vadd.f32 0.0, %v917
    %v919 = vpop.f32.mrf.mxu0
    %920 = vmatprep.mubr.f32.mxu0 0.0
    %921 = vmatmul.mubr.f32.gmra.mxu0 %v831
    %v922 = vpop.f32.mrf.mxu0
    %v923 = vadd.f32 0.0, %v922
    %v924 = vpop.f32.mrf.mxu0
    %925 = vmatprep.mubr.f32.mxu0 0.0
    %926 = vmatmul.mubr.f32.gmra.mxu0 %v833
    %v927 = vpop.f32.mrf.mxu0
    %v928 = vadd.f32 0.0, %v927
    %v929 = vpop.f32.mrf.mxu0
    %930 = vmatprep.mubr.f32.mxu0 0.0
    %931 = vmatmul.mubr.f32.gmra.mxu0 %v835
    %v932 = vpop.f32.mrf.mxu0
    %v933 = vadd.f32 0.0, %v932
    %v934 = vpop.f32.mrf.mxu0
    %935 = vmatprep.mubr.f32.mxu0 0.0
    %936 = vmatmul.mubr.f32.gmra.mxu0 %v837
    %v937 = vpop.f32.mrf.mxu0
    %v938 = vadd.f32 0.0, %v937
    %v939 = vpop.f32.mrf.mxu0
    %940 = vmatprep.mubr.f32.mxu0 0.0
    %941 = vmatmul.mubr.f32.gmra.mxu0 %v839
    %v942 = vpop.f32.mrf.mxu0
    %v943 = vadd.f32 0.0, %v942
    %v944 = vpop.f32.mrf.mxu0
    %945 = vmatprep.mubr.f32.mxu0 0.0
    %946 = vmatmul.mubr.f32.gmra.mxu0 %v841
    %v947 = vpop.f32.mrf.mxu0
    %v948 = vadd.f32 0.0, %v947
    %v949 = vpop.f32.mrf.mxu0
    %950 = vmatprep.mubr.f32.mxu0 0.0
    %951 = vmatmul.mubr.f32.gmra.mxu0 %v843
    %v952 = vpop.f32.mrf.mxu0
    %v953 = vadd.f32 0.0, %v952
    %v954 = vpop.f32.mrf.mxu0
    %955 = vmatprep.mubr.f32.mxu0 0.0
    %956 = vmatmul.mubr.f32.gmra.mxu0 %v845
    %v957 = vpop.f32.mrf.mxu0
    %v958 = vadd.f32 0.0, %v957
    %v959 = vpop.f32.mrf.mxu0
    %960 = vmatprep.mubr.f32.mxu0 0.0
    %961 = vmatmul.mubr.f32.gmra.mxu0 %v847
    %v962 = vpop.f32.mrf.mxu0
    %v963 = vadd.f32 0.0, %v962
    %v964 = vpop.f32.mrf.mxu0
    %965 = vmatprep.mubr.f32.mxu0 0.0
    %966 = vmatmul.mubr.f32.gmra.mxu0 %v849
    %v967 = vpop.f32.mrf.mxu0
    %v968 = vadd.f32 0.0, %v967
    %v969 = vpop.f32.mrf.mxu0
    %970 = vdwg.mxu0
    %v971 = vsel %vm828, %v779, 0
    %v973 = vsel %vm828, %v780, 0
    %v975 = vsel %vm828, %v781, 0
    %v977 = vsel %vm828, %v782, 0
    %v979 = vsel %vm828, %v783, 0
    %v981 = vsel %vm828, %v784, 0
    %v983 = vsel %vm828, %v785, 0
    %v985 = vsel %vm828, %v786, 0
    %v987 = vsel %vm828, %v787, 0
    %v989 = vsel %vm828, %v788, 0
    %v991 = vsel %vm828, %v789, 0
    %993 = vmatprep.subr.mxu0 0.0
    %994 = vmatpush1.msra.mxu0 0.0
    %995 = vmatprep.subr.mxu0 0.0
    %996 = vmatpush1.msra.mxu0 0.0
    %997 = vmatprep.subr.mxu0 0.0
    %998 = vmatpush1.msra.mxu0 0.0
    %999 = vmatprep.subr.mxu0 0.0
    %1000 = vmatpush1.msra.mxu0 0.0
    %1001 = vmatprep.subr.mxu0 0.0
    %1002 = vmatpush1.msra.mxu0 0.0
    %1003 = vmatprep.subr.mxu0 0.0
    %1004 = vmatpush1.msra.mxu0 0.0
    %1005 = vmatprep.subr.mxu0 0.0
    %1006 = vmatpush1.msra.mxu0 0.0
    %1007 = vmatprep.subr.mxu0 0.0
    %1008 = vmatpush1.msra.mxu0 0.0
    %1009 = vmatprep.subr.mxu0 0.0
    %1010 = vmatpush1.msra.mxu0 0.0
    %1011 = vmatprep.subr.mxu0 0.0
    %1012 = vmatpush1.msra.mxu0 0.0
    %1013 = vmatprep.subr.mxu0 0.0
    %1014 = vmatpush1.msra.mxu0 0.0
    %1015 = vmatprep.subr.mxu0 0.0
    %1016 = vmatpush1.msra.mxu0 0.0
    %1017 = vmatprep.subr.mxu0 0.0
    %1018 = vmatpush1.msra.mxu0 0.0
    %1019 = vmatprep.subr.mxu0 0.0
    %1020 = vmatpush1.msra.mxu0 0.0
    %1021 = vmatprep.subr.mxu0 0.0
    %1022 = vmatpush1.msra.mxu0 %v792
    %1023 = vmatprep.subr.mxu0 0.0
    %1024 = vmatpush1.msra.mxu0 %v791
    %1025 = vmatprep.subr.mxu0 0.0
    %1026 = vmatpush2.msra.mxu0 0.0
    %1027 = vmatprep.subr.mxu0 0.0
    %1028 = vmatpush2.msra.mxu0 0.0
    %1029 = vmatprep.subr.mxu0 0.0
    %1030 = vmatpush2.msra.mxu0 0.0
    %1031 = vmatprep.subr.mxu0 0.0
    %1032 = vmatpush2.msra.mxu0 0.0
    %1033 = vmatprep.subr.mxu0 0.0
    %1034 = vmatpush2.msra.mxu0 0.0
    %1035 = vmatprep.subr.mxu0 0.0
    %1036 = vmatpush2.msra.mxu0 0.0
    %1037 = vmatprep.subr.mxu0 0.0
    %1038 = vmatpush2.msra.mxu0 0.0
    %1039 = vmatprep.subr.mxu0 0.0
    %1040 = vmatpush2.msra.mxu0 0.0
    %1041 = vmatprep.subr.mxu0 0.0
    %1042 = vmatpush2.msra.mxu0 0.0
    %1043 = vmatprep.subr.mxu0 0.0
    %1044 = vmatpush2.msra.mxu0 0.0
    %1045 = vmatprep.subr.mxu0 0.0
    %1046 = vmatpush2.msra.mxu0 0.0
    %1047 = vmatprep.subr.mxu0 0.0
    %1048 = vmatpush2.msra.mxu0 0.0
    %1049 = vmatprep.subr.mxu0 0.0
    %1050 = vmatpush2.msra.mxu0 0.0
    %1051 = vmatprep.subr.mxu0 0.0
    %1052 = vmatpush2.msra.mxu0 0.0
    %1053 = vmatprep.subr.mxu0 0.0
    %1054 = vmatpush2.msra.mxu0 0.0
    %1055 = vmatprep.subr.mxu0 0.0
    %1056 = vmatpush2.msra.mxu0 0.0
    %1057 = vmatprep.mubr.f32.mxu0 0.0
    %1058 = vmatmul.mubr.f32.gmra.mxu0 %v971
    %v1059 = vpop.f32.mrf.mxu0
    %v1060 = vadd.f32 %v918, %v1059
    %v1061 = vpop.f32.mrf.mxu0
    %1062 = vmatprep.mubr.f32.mxu0 0.0
    %1063 = vmatmul.mubr.f32.gmra.mxu0 %v973
    %v1064 = vpop.f32.mrf.mxu0
    %v1065 = vadd.f32 %v923, %v1064
    %v1066 = vpop.f32.mrf.mxu0
    %1067 = vmatprep.mubr.f32.mxu0 0.0
    %1068 = vmatmul.mubr.f32.gmra.mxu0 %v975
    %v1069 = vpop.f32.mrf.mxu0
    %v1070 = vadd.f32 %v928, %v1069
    %v1071 = vpop.f32.mrf.mxu0
    %1072 = vmatprep.mubr.f32.mxu0 0.0
    %1073 = vmatmul.mubr.f32.gmra.mxu0 %v977
    %v1074 = vpop.f32.mrf.mxu0
    %v1075 = vadd.f32 %v933, %v1074
    %v1076 = vpop.f32.mrf.mxu0
    %1077 = vmatprep.mubr.f32.mxu0 0.0
    %1078 = vmatmul.mubr.f32.gmra.mxu0 %v979
    %v1079 = vpop.f32.mrf.mxu0
    %v1080 = vadd.f32 %v938, %v1079
    %v1081 = vpop.f32.mrf.mxu0
    %1082 = vmatprep.mubr.f32.mxu0 0.0
    %1083 = vmatmul.mubr.f32.gmra.mxu0 %v981
    %v1084 = vpop.f32.mrf.mxu0
    %v1085 = vadd.f32 %v943, %v1084
    %v1086 = vpop.f32.mrf.mxu0
    %1087 = vmatprep.mubr.f32.mxu0 0.0
    %1088 = vmatmul.mubr.f32.gmra.mxu0 %v983
    %v1089 = vpop.f32.mrf.mxu0
    %v1090 = vadd.f32 %v948, %v1089
    %v1091 = vpop.f32.mrf.mxu0
    %1092 = vmatprep.mubr.f32.mxu0 0.0
    %1093 = vmatmul.mubr.f32.gmra.mxu0 %v985
    %v1094 = vpop.f32.mrf.mxu0
    %v1095 = vadd.f32 %v953, %v1094
    %v1096 = vpop.f32.mrf.mxu0
    %1097 = vmatprep.mubr.f32.mxu0 0.0
    %1098 = vmatmul.mubr.f32.gmra.mxu0 %v987
    %v1099 = vpop.f32.mrf.mxu0
    %v1100 = vadd.f32 %v958, %v1099
    %v1101 = vpop.f32.mrf.mxu0
    %1102 = vmatprep.mubr.f32.mxu0 0.0
    %1103 = vmatmul.mubr.f32.gmra.mxu0 %v989
    %v1104 = vpop.f32.mrf.mxu0
    %v1105 = vadd.f32 %v963, %v1104
    %v1106 = vpop.f32.mrf.mxu0
    %1107 = vmatprep.mubr.f32.mxu0 0.0
    %1108 = vmatmul.mubr.f32.gmra.mxu0 %v991
    %v1109 = vpop.f32.mrf.mxu0
    %v1110 = vadd.f32 %v968, %v1109
    %v1111 = vpop.f32.mrf.mxu0
    %1112 = vdwg.mxu0
    %s1113 = scalar_lea.vmem %s3, 32
    %v1114 = vld [vmem:[%s1113] sm:$0xff]
    %v1115 = vld [vmem:[%s1113 + $0x8] sm:$0xff]
    %v1117 = vrot.slane %v779, 7
    %v1118 = vrot.slane %v780, 7
    %v1119 = vsel %vm426, %v1117, %v1118
    %v1120 = vrot.slane %v781, 7
    %v1121 = vsel %vm426, %v1118, %v1120
    %v1122 = vrot.slane %v782, 7
    %v1123 = vsel %vm426, %v1120, %v1122
    %v1124 = vrot.slane %v783, 7
    %v1125 = vsel %vm426, %v1122, %v1124
    %v1126 = vrot.slane %v784, 7
    %v1127 = vsel %vm426, %v1124, %v1126
    %v1128 = vrot.slane %v785, 7
    %v1129 = vsel %vm426, %v1126, %v1128
    %v1130 = vrot.slane %v786, 7
    %v1131 = vsel %vm426, %v1128, %v1130
    %v1132 = vrot.slane %v787, 7
    %v1133 = vsel %vm426, %v1130, %v1132
    %v1134 = vrot.slane %v788, 7
    %v1135 = vsel %vm426, %v1132, %v1134
    %v1136 = vrot.slane %v789, 7
    %v1137 = vsel %vm426, %v1134, %v1136
    %v1138 = vrot.slane %v790, 7
    %v1139 = vsel %vm426, %v1136, %v1138
    %v1140 = vsel %vm828, %v1119, 0
    %v1142 = vsel %vm828, %v1121, 0
    %v1144 = vsel %vm828, %v1123, 0
    %v1146 = vsel %vm828, %v1125, 0
    %v1148 = vsel %vm828, %v1127, 0
    %v1150 = vsel %vm828, %v1129, 0
    %v1152 = vsel %vm828, %v1131, 0
    %v1154 = vsel %vm828, %v1133, 0
    %v1156 = vsel %vm828, %v1135, 0
    %v1158 = vsel %vm828, %v1137, 0
    %v1160 = vsel %vm828, %v1139, 0
    %1162 = vmatprep.subr.mxu0 0.0
    %1163 = vmatpush1.msra.mxu0 0.0
    %1164 = vmatprep.subr.mxu0 0.0
    %1165 = vmatpush1.msra.mxu0 0.0
    %1166 = vmatprep.subr.mxu0 0.0
    %1167 = vmatpush1.msra.mxu0 0.0
    %1168 = vmatprep.subr.mxu0 0.0
    %1169 = vmatpush1.msra.mxu0 0.0
    %1170 = vmatprep.subr.mxu0 0.0
    %1171 = vmatpush1.msra.mxu0 0.0
    %1172 = vmatprep.subr.mxu0 0.0
    %1173 = vmatpush1.msra.mxu0 0.0
    %1174 = vmatprep.subr.mxu0 0.0
    %1175 = vmatpush1.msra.mxu0 0.0
    %1176 = vmatprep.subr.mxu0 0.0
    %1177 = vmatpush1.msra.mxu0 0.0
    %1178 = vmatprep.subr.mxu0 0.0
    %1179 = vmatpush1.msra.mxu0 0.0
    %1180 = vmatprep.subr.mxu0 0.0
    %1181 = vmatpush1.msra.mxu0 0.0
    %1182 = vmatprep.subr.mxu0 0.0
    %1183 = vmatpush1.msra.mxu0 0.0
    %1184 = vmatprep.subr.mxu0 0.0
    %1185 = vmatpush1.msra.mxu0 0.0
    %1186 = vmatprep.subr.mxu0 0.0
    %1187 = vmatpush1.msra.mxu0 0.0
    %1188 = vmatprep.subr.mxu0 0.0
    %1189 = vmatpush1.msra.mxu0 0.0
    %1190 = vmatprep.subr.mxu0 0.0
    %1191 = vmatpush1.msra.mxu0 %v1115
    %1192 = vmatprep.subr.mxu0 0.0
    %1193 = vmatpush1.msra.mxu0 %v1114
    %1194 = vmatprep.subr.mxu0 0.0
    %1195 = vmatpush2.msra.mxu0 0.0
    %1196 = vmatprep.subr.mxu0 0.0
    %1197 = vmatpush2.msra.mxu0 0.0
    %1198 = vmatprep.subr.mxu0 0.0
    %1199 = vmatpush2.msra.mxu0 0.0
    %1200 = vmatprep.subr.mxu0 0.0
    %1201 = vmatpush2.msra.mxu0 0.0
    %1202 = vmatprep.subr.mxu0 0.0
    %1203 = vmatpush2.msra.mxu0 0.0
    %1204 = vmatprep.subr.mxu0 0.0
    %1205 = vmatpush2.msra.mxu0 0.0
    %1206 = vmatprep.subr.mxu0 0.0
    %1207 = vmatpush2.msra.mxu0 0.0
    %1208 = vmatprep.subr.mxu0 0.0
    %1209 = vmatpush2.msra.mxu0 0.0
    %1210 = vmatprep.subr.mxu0 0.0
    %1211 = vmatpush2.msra.mxu0 0.0
    %1212 = vmatprep.subr.mxu0 0.0
    %1213 = vmatpush2.msra.mxu0 0.0
    %1214 = vmatprep.subr.mxu0 0.0
    %1215 = vmatpush2.msra.mxu0 0.0
    %1216 = vmatprep.subr.mxu0 0.0
    %1217 = vmatpush2.msra.mxu0 0.0
    %1218 = vmatprep.subr.mxu0 0.0
    %1219 = vmatpush2.msra.mxu0 0.0
    %1220 = vmatprep.subr.mxu0 0.0
    %1221 = vmatpush2.msra.mxu0 0.0
    %1222 = vmatprep.subr.mxu0 0.0
    %1223 = vmatpush2.msra.mxu0 0.0
    %1224 = vmatprep.subr.mxu0 0.0
    %1225 = vmatpush2.msra.mxu0 0.0
    %1226 = vmatprep.mubr.f32.mxu0 0.0
    %1227 = vmatmul.mubr.f32.gmra.mxu0 %v1140
    %v1228 = vpop.f32.mrf.mxu0
    %v1229 = vadd.f32 0.0, %v1228
    %v1230 = vpop.f32.mrf.mxu0
    %1231 = vmatprep.mubr.f32.mxu0 0.0
    %1232 = vmatmul.mubr.f32.gmra.mxu0 %v1142
    %v1233 = vpop.f32.mrf.mxu0
    %v1234 = vadd.f32 0.0, %v1233
    %v1235 = vpop.f32.mrf.mxu0
    %1236 = vmatprep.mubr.f32.mxu0 0.0
    %1237 = vmatmul.mubr.f32.gmra.mxu0 %v1144
    %v1238 = vpop.f32.mrf.mxu0
    %v1239 = vadd.f32 0.0, %v1238
    %v1240 = vpop.f32.mrf.mxu0
    %1241 = vmatprep.mubr.f32.mxu0 0.0
    %1242 = vmatmul.mubr.f32.gmra.mxu0 %v1146
    %v1243 = vpop.f32.mrf.mxu0
    %v1244 = vadd.f32 0.0, %v1243
    %v1245 = vpop.f32.mrf.mxu0
    %1246 = vmatprep.mubr.f32.mxu0 0.0
    %1247 = vmatmul.mubr.f32.gmra.mxu0 %v1148
    %v1248 = vpop.f32.mrf.mxu0
    %v1249 = vadd.f32 0.0, %v1248
    %v1250 = vpop.f32.mrf.mxu0
    %1251 = vmatprep.mubr.f32.mxu0 0.0
    %1252 = vmatmul.mubr.f32.gmra.mxu0 %v1150
    %v1253 = vpop.f32.mrf.mxu0
    %v1254 = vadd.f32 0.0, %v1253
    %v1255 = vpop.f32.mrf.mxu0
    %1256 = vmatprep.mubr.f32.mxu0 0.0
    %1257 = vmatmul.mubr.f32.gmra.mxu0 %v1152
    %v1258 = vpop.f32.mrf.mxu0
    %v1259 = vadd.f32 0.0, %v1258
    %v1260 = vpop.f32.mrf.mxu0
    %1261 = vmatprep.mubr.f32.mxu0 0.0
    %1262 = vmatmul.mubr.f32.gmra.mxu0 %v1154
    %v1263 = vpop.f32.mrf.mxu0
    %v1264 = vadd.f32 0.0, %v1263
    %v1265 = vpop.f32.mrf.mxu0
    %1266 = vmatprep.mubr.f32.mxu0 0.0
    %1267 = vmatmul.mubr.f32.gmra.mxu0 %v1156
    %v1268 = vpop.f32.mrf.mxu0
    %v1269 = vadd.f32 0.0, %v1268
    %v1270 = vpop.f32.mrf.mxu0
    %1271 = vmatprep.mubr.f32.mxu0 0.0
    %1272 = vmatmul.mubr.f32.gmra.mxu0 %v1158
    %v1273 = vpop.f32.mrf.mxu0
    %v1274 = vadd.f32 0.0, %v1273
    %v1275 = vpop.f32.mrf.mxu0
    %1276 = vmatprep.mubr.f32.mxu0 0.0
    %1277 = vmatmul.mubr.f32.gmra.mxu0 %v1160
    %v1278 = vpop.f32.mrf.mxu0
    %v1279 = vadd.f32 0.0, %v1278
    %v1280 = vpop.f32.mrf.mxu0
    %1281 = vdwg.mxu0
    %v1282 = vadd.f32 %v1060, %v1229
    %v1283 = vadd.f32 %v1065, %v1234
    %v1284 = vadd.f32 %v1070, %v1239
    %v1285 = vadd.f32 %v1075, %v1244
    %v1286 = vadd.f32 %v1080, %v1249
    %v1287 = vadd.f32 %v1085, %v1254
    %v1288 = vadd.f32 %v1090, %v1259
    %v1289 = vadd.f32 %v1095, %v1264
    %v1290 = vadd.f32 %v1100, %v1269
    %v1291 = vadd.f32 %v1105, %v1274
    %v1292 = vadd.f32 %v1110, %v1279
    %s1293 = scalar_lea.vmem %s3, 48
    %v1294 = vld [vmem:[%s1293] sm:$0xff]
    %v1295 = vld [vmem:[%s1293 + $0x8] sm:$0xff]
    %v1296 = vsel %vm828, %v790, 0
    %1298 = vmatprep.subr.mxu0 0.0
    %1299 = vmatpush1.msra.mxu0 0.0
    %1300 = vmatprep.subr.mxu0 0.0
    %1301 = vmatpush1.msra.mxu0 0.0
    %1302 = vmatprep.subr.mxu0 0.0
    %1303 = vmatpush1.msra.mxu0 0.0
    %1304 = vmatprep.subr.mxu0 0.0
    %1305 = vmatpush1.msra.mxu0 0.0
    %1306 = vmatprep.subr.mxu0 0.0
    %1307 = vmatpush1.msra.mxu0 0.0
    %1308 = vmatprep.subr.mxu0 0.0
    %1309 = vmatpush1.msra.mxu0 0.0
    %1310 = vmatprep.subr.mxu0 0.0
    %1311 = vmatpush1.msra.mxu0 0.0
    %1312 = vmatprep.subr.mxu0 0.0
    %1313 = vmatpush1.msra.mxu0 0.0
    %1314 = vmatprep.subr.mxu0 0.0
    %1315 = vmatpush1.msra.mxu0 0.0
    %1316 = vmatprep.subr.mxu0 0.0
    %1317 = vmatpush1.msra.mxu0 0.0
    %1318 = vmatprep.subr.mxu0 0.0
    %1319 = vmatpush1.msra.mxu0 0.0
    %1320 = vmatprep.subr.mxu0 0.0
    %1321 = vmatpush1.msra.mxu0 0.0
    %1322 = vmatprep.subr.mxu0 0.0
    %1323 = vmatpush1.msra.mxu0 0.0
    %1324 = vmatprep.subr.mxu0 0.0
    %1325 = vmatpush1.msra.mxu0 0.0
    %1326 = vmatprep.subr.mxu0 0.0
    %1327 = vmatpush1.msra.mxu0 %v1295
    %1328 = vmatprep.subr.mxu0 0.0
    %1329 = vmatpush1.msra.mxu0 %v1294
    %1330 = vmatprep.subr.mxu0 0.0
    %1331 = vmatpush2.msra.mxu0 0.0
    %1332 = vmatprep.subr.mxu0 0.0
    %1333 = vmatpush2.msra.mxu0 0.0
    %1334 = vmatprep.subr.mxu0 0.0
    %1335 = vmatpush2.msra.mxu0 0.0
    %1336 = vmatprep.subr.mxu0 0.0
    %1337 = vmatpush2.msra.mxu0 0.0
    %1338 = vmatprep.subr.mxu0 0.0
    %1339 = vmatpush2.msra.mxu0 0.0
    %1340 = vmatprep.subr.mxu0 0.0
    %1341 = vmatpush2.msra.mxu0 0.0
    %1342 = vmatprep.subr.mxu0 0.0
    %1343 = vmatpush2.msra.mxu0 0.0
    %1344 = vmatprep.subr.mxu0 0.0
    %1345 = vmatpush2.msra.mxu0 0.0
    %1346 = vmatprep.subr.mxu0 0.0
    %1347 = vmatpush2.msra.mxu0 0.0
    %1348 = vmatprep.subr.mxu0 0.0
    %1349 = vmatpush2.msra.mxu0 0.0
    %1350 = vmatprep.subr.mxu0 0.0
    %1351 = vmatpush2.msra.mxu0 0.0
    %1352 = vmatprep.subr.mxu0 0.0
    %1353 = vmatpush2.msra.mxu0 0.0
    %1354 = vmatprep.subr.mxu0 0.0
    %1355 = vmatpush2.msra.mxu0 0.0
    %1356 = vmatprep.subr.mxu0 0.0
    %1357 = vmatpush2.msra.mxu0 0.0
    %1358 = vmatprep.subr.mxu0 0.0
    %1359 = vmatpush2.msra.mxu0 0.0
    %1360 = vmatprep.subr.mxu0 0.0
    %1361 = vmatpush2.msra.mxu0 0.0
    %1362 = vmatprep.mubr.f32.mxu0 0.0
    %1363 = vmatmul.mubr.f32.gmra.mxu0 %v973
    %v1364 = vpop.f32.mrf.mxu0
    %v1365 = vadd.f32 0.0, %v1364
    %v1366 = vpop.f32.mrf.mxu0
    %1367 = vmatprep.mubr.f32.mxu0 0.0
    %1368 = vmatmul.mubr.f32.gmra.mxu0 %v975
    %v1369 = vpop.f32.mrf.mxu0
    %v1370 = vadd.f32 0.0, %v1369
    %v1371 = vpop.f32.mrf.mxu0
    %1372 = vmatprep.mubr.f32.mxu0 0.0
    %1373 = vmatmul.mubr.f32.gmra.mxu0 %v977
    %v1374 = vpop.f32.mrf.mxu0
    %v1375 = vadd.f32 0.0, %v1374
    %v1376 = vpop.f32.mrf.mxu0
    %1377 = vmatprep.mubr.f32.mxu0 0.0
    %1378 = vmatmul.mubr.f32.gmra.mxu0 %v979
    %v1379 = vpop.f32.mrf.mxu0
    %v1380 = vadd.f32 0.0, %v1379
    %v1381 = vpop.f32.mrf.mxu0
    %1382 = vmatprep.mubr.f32.mxu0 0.0
    %1383 = vmatmul.mubr.f32.gmra.mxu0 %v981
    %v1384 = vpop.f32.mrf.mxu0
    %v1385 = vadd.f32 0.0, %v1384
    %v1386 = vpop.f32.mrf.mxu0
    %1387 = vmatprep.mubr.f32.mxu0 0.0
    %1388 = vmatmul.mubr.f32.gmra.mxu0 %v983
    %v1389 = vpop.f32.mrf.mxu0
    %v1390 = vadd.f32 0.0, %v1389
    %v1391 = vpop.f32.mrf.mxu0
    %1392 = vmatprep.mubr.f32.mxu0 0.0
    %1393 = vmatmul.mubr.f32.gmra.mxu0 %v985
    %v1394 = vpop.f32.mrf.mxu0
    %v1395 = vadd.f32 0.0, %v1394
    %v1396 = vpop.f32.mrf.mxu0
    %1397 = vmatprep.mubr.f32.mxu0 0.0
    %1398 = vmatmul.mubr.f32.gmra.mxu0 %v987
    %v1399 = vpop.f32.mrf.mxu0
    %v1400 = vadd.f32 0.0, %v1399
    %v1401 = vpop.f32.mrf.mxu0
    %1402 = vmatprep.mubr.f32.mxu0 0.0
    %1403 = vmatmul.mubr.f32.gmra.mxu0 %v989
    %v1404 = vpop.f32.mrf.mxu0
    %v1405 = vadd.f32 0.0, %v1404
    %v1406 = vpop.f32.mrf.mxu0
    %1407 = vmatprep.mubr.f32.mxu0 0.0
    %1408 = vmatmul.mubr.f32.gmra.mxu0 %v991
    %v1409 = vpop.f32.mrf.mxu0
    %v1410 = vadd.f32 0.0, %v1409
    %v1411 = vpop.f32.mrf.mxu0
    %1412 = vmatprep.mubr.f32.mxu0 0.0
    %1413 = vmatmul.mubr.f32.gmra.mxu0 %v1296
    %v1414 = vpop.f32.mrf.mxu0
    %v1415 = vadd.f32 0.0, %v1414
    %v1416 = vpop.f32.mrf.mxu0
    %1417 = vdwg.mxu0
    %v1418 = vadd.f32 %v1282, %v1365
    %v1419 = vadd.f32 %v1283, %v1370
    %v1420 = vadd.f32 %v1284, %v1375
    %v1421 = vadd.f32 %v1285, %v1380
    %v1422 = vadd.f32 %v1286, %v1385
    %v1423 = vadd.f32 %v1287, %v1390
    %v1424 = vadd.f32 %v1288, %v1395
    %v1425 = vadd.f32 %v1289, %v1400
    %v1426 = vadd.f32 %v1290, %v1405
    %v1427 = vadd.f32 %v1291, %v1410
    %v1428 = vadd.f32 %v1292, %v1415
    %v1429 = vld [vmem:[%s4] sm:$0x1]
    %v1431 = vlaneseq
    %v1432 = vshrl.u32 %v1431, 7
    %v1433 = vsub.s32 0, %v1432
    %v1434 = vrot.slane %v1429, %v1433
    %v1436 = vadd.f32 %v1418, %v1434
    %v1437 = vadd.f32 %v1419, %v1434
    %v1438 = vadd.f32 %v1420, %v1434
    %v1439 = vadd.f32 %v1421, %v1434
    %v1440 = vadd.f32 %v1422, %v1434
    %v1441 = vadd.f32 %v1423, %v1434
    %v1442 = vadd.f32 %v1424, %v1434
    %v1443 = vadd.f32 %v1425, %v1434
    %v1444 = vadd.f32 %v1426, %v1434
    %v1445 = vadd.f32 %v1427, %v1434
    %v1446 = vadd.f32 %v1428, %v1434
    %v1447 = vmax.f32 %v1436, 0.0
    %v1448 = vmax.f32 %v1437, 0.0
    %v1449 = vmax.f32 %v1438, 0.0
    %v1450 = vmax.f32 %v1439, 0.0
    %v1451 = vmax.f32 %v1440, 0.0
    %v1452 = vmax.f32 %v1441, 0.0
    %v1453 = vmax.f32 %v1442, 0.0
    %v1454 = vmax.f32 %v1443, 0.0
    %v1455 = vmax.f32 %v1444, 0.0
    %v1456 = vmax.f32 %v1445, 0.0
    %v1457 = vmax.f32 %v1446, 0.0
    %v1458 = vld [vmem:[%s5] sm:$0xff]
    %v1459 = vld [vmem:[%s5 + $0x8] sm:$0xff]
    %v1460 = vld [vmem:[%s5 + $0x10] sm:$0xff]
    %v1461 = vld [vmem:[%s5 + $0x18] sm:$0xff]
    %s1462 = scalar_lea.vmem %s5, 32
    %v1463 = vld [vmem:[%s1462] sm:$0xff]
    %v1464 = vld [vmem:[%s1462 + $0x8] sm:$0xff]
    %v1465 = vld [vmem:[%s1462 + $0x10] sm:$0xff]
    %v1466 = vld [vmem:[%s1462 + $0x18] sm:$0xff]
    %v1477 = vrot.slane %v1447, 1
    %v1478 = vrot.slane %v1448, 1
    %v1479 = vsel %vm93, %v1477, %v1478
    %v1480 = vrot.slane %v1449, 1
    %v1481 = vsel %vm93, %v1478, %v1480
    %v1482 = vrot.slane %v1450, 1
    %v1483 = vsel %vm93, %v1480, %v1482
    %v1484 = vrot.slane %v1451, 1
    %v1485 = vsel %vm93, %v1482, %v1484
    %v1486 = vrot.slane %v1452, 1
    %v1487 = vsel %vm93, %v1484, %v1486
    %v1488 = vrot.slane %v1453, 1
    %v1489 = vsel %vm93, %v1486, %v1488
    %v1490 = vrot.slane %v1454, 1
    %v1491 = vsel %vm93, %v1488, %v1490
    %v1492 = vrot.slane %v1455, 1
    %v1493 = vsel %vm93, %v1490, %v1492
    %v1494 = vrot.slane %v1456, 1
    %v1495 = vsel %vm93, %v1492, %v1494
    %vm1496 = vcmask 261120
    %v1497 = vsel %vm1496, %v1479, 0
    %v1499 = vsel %vm1496, %v1481, 0
    %v1501 = vsel %vm1496, %v1483, 0
    %v1503 = vsel %vm1496, %v1485, 0
    %v1505 = vsel %vm1496, %v1487, 0
    %v1507 = vsel %vm1496, %v1489, 0
    %v1509 = vsel %vm1496, %v1491, 0
    %v1511 = vsel %vm1496, %v1493, 0
    %v1513 = vsel %vm1496, %v1495, 0
    %v1515 = vsel %vm1496, %v1494, 0
    %1517 = vmatprep.subr.mxu0 0.0
    %1518 = vmatpush1.msra.mxu0 0.0
    %1519 = vmatprep.subr.mxu0 0.0
    %1520 = vmatpush1.msra.mxu0 0.0
    %1521 = vmatprep.subr.mxu0 0.0
    %1522 = vmatpush1.msra.mxu0 0.0
    %1523 = vmatprep.subr.mxu0 0.0
    %1524 = vmatpush1.msra.mxu0 0.0
    %1525 = vmatprep.subr.mxu0 0.0
    %1526 = vmatpush1.msra.mxu0 0.0
    %1527 = vmatprep.subr.mxu0 0.0
    %1528 = vmatpush1.msra.mxu0 0.0
    %1529 = vmatprep.subr.mxu0 0.0
    %1530 = vmatpush1.msra.mxu0 0.0
    %1531 = vmatprep.subr.mxu0 0.0
    %1532 = vmatpush1.msra.mxu0 0.0
    %1533 = vmatprep.subr.mxu0 0.0
    %1534 = vmatpush1.msra.mxu0 0.0
    %1535 = vmatprep.subr.mxu0 0.0
    %1536 = vmatpush1.msra.mxu0 0.0
    %1537 = vmatprep.subr.mxu0 0.0
    %1538 = vmatpush1.msra.mxu0 0.0
    %1539 = vmatprep.subr.mxu0 0.0
    %1540 = vmatpush1.msra.mxu0 0.0
    %1541 = vmatprep.subr.mxu0 0.0
    %1542 = vmatpush1.msra.mxu0 %v1466
    %1543 = vmatprep.subr.mxu0 0.0
    %1544 = vmatpush1.msra.mxu0 %v1465
    %1545 = vmatprep.subr.mxu0 0.0
    %1546 = vmatpush1.msra.mxu0 %v1464
    %1547 = vmatprep.subr.mxu0 0.0
    %1548 = vmatpush1.msra.mxu0 %v1463
    %1549 = vmatprep.subr.mxu0 0.0
    %1550 = vmatpush2.msra.mxu0 0.0
    %1551 = vmatprep.subr.mxu0 0.0
    %1552 = vmatpush2.msra.mxu0 0.0
    %1553 = vmatprep.subr.mxu0 0.0
    %1554 = vmatpush2.msra.mxu0 0.0
    %1555 = vmatprep.subr.mxu0 0.0
    %1556 = vmatpush2.msra.mxu0 0.0
    %1557 = vmatprep.subr.mxu0 0.0
    %1558 = vmatpush2.msra.mxu0 0.0
    %1559 = vmatprep.subr.mxu0 0.0
    %1560 = vmatpush2.msra.mxu0 0.0
    %1561 = vmatprep.subr.mxu0 0.0
    %1562 = vmatpush2.msra.mxu0 0.0
    %1563 = vmatprep.subr.mxu0 0.0
    %1564 = vmatpush2.msra.mxu0 0.0
    %1565 = vmatprep.subr.mxu0 0.0
    %1566 = vmatpush2.msra.mxu0 0.0
    %1567 = vmatprep.subr.mxu0 0.0
    %1568 = vmatpush2.msra.mxu0 0.0
    %1569 = vmatprep.subr.mxu0 0.0
    %1570 = vmatpush2.msra.mxu0 0.0
    %1571 = vmatprep.subr.mxu0 0.0
    %1572 = vmatpush2.msra.mxu0 0.0
    %1573 = vmatprep.subr.mxu0 0.0
    %1574 = vmatpush2.msra.mxu0 0.0
    %1575 = vmatprep.subr.mxu0 0.0
    %1576 = vmatpush2.msra.mxu0 0.0
    %1577 = vmatprep.subr.mxu0 0.0
    %1578 = vmatpush2.msra.mxu0 0.0
    %1579 = vmatprep.subr.mxu0 0.0
    %1580 = vmatpush2.msra.mxu0 0.0
    %1581 = vmatprep.mubr.f32.mxu0 0.0
    %1582 = vmatmul.mubr.f32.gmra.mxu0 %v1497
    %v1583 = vpop.f32.mrf.mxu0
    %v1584 = vadd.f32 0.0, %v1583
    %v1585 = vpop.f32.mrf.mxu0
    %1586 = vmatprep.mubr.f32.mxu0 0.0
    %1587 = vmatmul.mubr.f32.gmra.mxu0 %v1499
    %v1588 = vpop.f32.mrf.mxu0
    %v1589 = vadd.f32 0.0, %v1588
    %v1590 = vpop.f32.mrf.mxu0
    %1591 = vmatprep.mubr.f32.mxu0 0.0
    %1592 = vmatmul.mubr.f32.gmra.mxu0 %v1501
    %v1593 = vpop.f32.mrf.mxu0
    %v1594 = vadd.f32 0.0, %v1593
    %v1595 = vpop.f32.mrf.mxu0
    %1596 = vmatprep.mubr.f32.mxu0 0.0
    %1597 = vmatmul.mubr.f32.gmra.mxu0 %v1503
    %v1598 = vpop.f32.mrf.mxu0
    %v1599 = vadd.f32 0.0, %v1598
    %v1600 = vpop.f32.mrf.mxu0
    %1601 = vmatprep.mubr.f32.mxu0 0.0
    %1602 = vmatmul.mubr.f32.gmra.mxu0 %v1505
    %v1603 = vpop.f32.mrf.mxu0
    %v1604 = vpop.f32.mrf.mxu0
    %1605 = vmatprep.mubr.f32.mxu0 0.0
    %1606 = vmatmul.mubr.f32.gmra.mxu0 %v1507
    %v1607 = vpop.f32.mrf.mxu0
    %v1608 = vpop.f32.mrf.mxu0
    %1609 = vmatprep.mubr.f32.mxu0 0.0
    %1610 = vmatmul.mubr.f32.gmra.mxu0 %v1509
    %v1611 = vpop.f32.mrf.mxu0
    %v1612 = vadd.f32 0.0, %v1611
    %v1613 = vpop.f32.mrf.mxu0
    %1614 = vmatprep.mubr.f32.mxu0 0.0
    %1615 = vmatmul.mubr.f32.gmra.mxu0 %v1511
    %v1616 = vpop.f32.mrf.mxu0
    %v1617 = vadd.f32 0.0, %v1616
    %v1618 = vpop.f32.mrf.mxu0
    %1619 = vmatprep.mubr.f32.mxu0 0.0
    %1620 = vmatmul.mubr.f32.gmra.mxu0 %v1513
    %v1621 = vpop.f32.mrf.mxu0
    %v1622 = vadd.f32 0.0, %v1621
    %v1623 = vpop.f32.mrf.mxu0
    %1624 = vmatprep.mubr.f32.mxu0 0.0
    %1625 = vmatmul.mubr.f32.gmra.mxu0 %v1515
    %v1626 = vpop.f32.mrf.mxu0
    %v1627 = vadd.f32 0.0, %v1626
    %v1628 = vpop.f32.mrf.mxu0
    %1629 = vdwg.mxu0
    %v1630 = vsel %vm1496, %v1447, 0
    %v1632 = vsel %vm1496, %v1448, 0
    %v1634 = vsel %vm1496, %v1449, 0
    %v1636 = vsel %vm1496, %v1450, 0
    %v1638 = vsel %vm1496, %v1451, 0
    %v1640 = vsel %vm1496, %v1452, 0
    %v1642 = vsel %vm1496, %v1453, 0
    %v1644 = vsel %vm1496, %v1454, 0
    %v1646 = vsel %vm1496, %v1455, 0
    %v1648 = vsel %vm1496, %v1456, 0
    %1650 = vmatprep.subr.mxu0 0.0
    %1651 = vmatpush1.msra.mxu0 0.0
    %1652 = vmatprep.subr.mxu0 0.0
    %1653 = vmatpush1.msra.mxu0 0.0
    %1654 = vmatprep.subr.mxu0 0.0
    %1655 = vmatpush1.msra.mxu0 0.0
    %1656 = vmatprep.subr.mxu0 0.0
    %1657 = vmatpush1.msra.mxu0 0.0
    %1658 = vmatprep.subr.mxu0 0.0
    %1659 = vmatpush1.msra.mxu0 0.0
    %1660 = vmatprep.subr.mxu0 0.0
    %1661 = vmatpush1.msra.mxu0 0.0
    %1662 = vmatprep.subr.mxu0 0.0
    %1663 = vmatpush1.msra.mxu0 0.0
    %1664 = vmatprep.subr.mxu0 0.0
    %1665 = vmatpush1.msra.mxu0 0.0
    %1666 = vmatprep.subr.mxu0 0.0
    %1667 = vmatpush1.msra.mxu0 0.0
    %1668 = vmatprep.subr.mxu0 0.0
    %1669 = vmatpush1.msra.mxu0 0.0
    %1670 = vmatprep.subr.mxu0 0.0
    %1671 = vmatpush1.msra.mxu0 0.0
    %1672 = vmatprep.subr.mxu0 0.0
    %1673 = vmatpush1.msra.mxu0 0.0
    %1674 = vmatprep.subr.mxu0 0.0
    %1675 = vmatpush1.msra.mxu0 %v1461
    %1676 = vmatprep.subr.mxu0 0.0
    %1677 = vmatpush1.msra.mxu0 %v1460
    %1678 = vmatprep.subr.mxu0 0.0
    %1679 = vmatpush1.msra.mxu0 %v1459
    %1680 = vmatprep.subr.mxu0 0.0
    %1681 = vmatpush1.msra.mxu0 %v1458
    %1682 = vmatprep.subr.mxu0 0.0
    %1683 = vmatpush2.msra.mxu0 0.0
    %1684 = vmatprep.subr.mxu0 0.0
    %1685 = vmatpush2.msra.mxu0 0.0
    %1686 = vmatprep.subr.mxu0 0.0
    %1687 = vmatpush2.msra.mxu0 0.0
    %1688 = vmatprep.subr.mxu0 0.0
    %1689 = vmatpush2.msra.mxu0 0.0
    %1690 = vmatprep.subr.mxu0 0.0
    %1691 = vmatpush2.msra.mxu0 0.0
    %1692 = vmatprep.subr.mxu0 0.0
    %1693 = vmatpush2.msra.mxu0 0.0
    %1694 = vmatprep.subr.mxu0 0.0
    %1695 = vmatpush2.msra.mxu0 0.0
    %1696 = vmatprep.subr.mxu0 0.0
    %1697 = vmatpush2.msra.mxu0 0.0
    %1698 = vmatprep.subr.mxu0 0.0
    %1699 = vmatpush2.msra.mxu0 0.0
    %1700 = vmatprep.subr.mxu0 0.0
    %1701 = vmatpush2.msra.mxu0 0.0
    %1702 = vmatprep.subr.mxu0 0.0
    %1703 = vmatpush2.msra.mxu0 0.0
    %1704 = vmatprep.subr.mxu0 0.0
    %1705 = vmatpush2.msra.mxu0 0.0
    %1706 = vmatprep.subr.mxu0 0.0
    %1707 = vmatpush2.msra.mxu0 0.0
    %1708 = vmatprep.subr.mxu0 0.0
    %1709 = vmatpush2.msra.mxu0 0.0
    %1710 = vmatprep.subr.mxu0 0.0
    %1711 = vmatpush2.msra.mxu0 0.0
    %1712 = vmatprep.subr.mxu0 0.0
    %1713 = vmatpush2.msra.mxu0 0.0
    %1714 = vmatprep.mubr.f32.mxu0 0.0
    %1715 = vmatmul.mubr.f32.gmra.mxu0 %v1630
    %v1716 = vpop.f32.mrf.mxu0
    %v1717 = vadd.f32 %v1584, %v1716
    %v1718 = vpop.f32.mrf.mxu0
    %1719 = vmatprep.mubr.f32.mxu0 0.0
    %1720 = vmatmul.mubr.f32.gmra.mxu0 %v1632
    %v1721 = vpop.f32.mrf.mxu0
    %v1722 = vadd.f32 %v1589, %v1721
    %v1723 = vpop.f32.mrf.mxu0
    %1724 = vmatprep.mubr.f32.mxu0 0.0
    %1725 = vmatmul.mubr.f32.gmra.mxu0 %v1634
    %v1726 = vpop.f32.mrf.mxu0
    %v1727 = vadd.f32 %v1594, %v1726
    %v1728 = vpop.f32.mrf.mxu0
    %1729 = vmatprep.mubr.f32.mxu0 0.0
    %1730 = vmatmul.mubr.f32.gmra.mxu0 %v1636
    %v1731 = vpop.f32.mrf.mxu0
    %v1732 = vadd.f32 %v1599, %v1731
    %v1733 = vpop.f32.mrf.mxu0
    %1734 = vmatprep.mubr.f32.mxu0 0.0
    %1735 = vmatmul.mubr.f32.gmra.mxu0 %v1638
    %v1736 = vpop.f32.mrf.mxu0
    %v1737 = vpop.f32.mrf.mxu0
    %1738 = vmatprep.mubr.f32.mxu0 0.0
    %1739 = vmatmul.mubr.f32.gmra.mxu0 %v1640
    %v1740 = vpop.f32.mrf.mxu0
    %v1741 = vpop.f32.mrf.mxu0
    %1742 = vmatprep.mubr.f32.mxu0 0.0
    %1743 = vmatmul.mubr.f32.gmra.mxu0 %v1642
    %v1744 = vpop.f32.mrf.mxu0
    %v1745 = vadd.f32 %v1612, %v1744
    %v1746 = vpop.f32.mrf.mxu0
    %1747 = vmatprep.mubr.f32.mxu0 0.0
    %1748 = vmatmul.mubr.f32.gmra.mxu0 %v1644
    %v1749 = vpop.f32.mrf.mxu0
    %v1750 = vadd.f32 %v1617, %v1749
    %v1751 = vpop.f32.mrf.mxu0
    %1752 = vmatprep.mubr.f32.mxu0 0.0
    %1753 = vmatmul.mubr.f32.gmra.mxu0 %v1646
    %v1754 = vpop.f32.mrf.mxu0
    %v1755 = vadd.f32 %v1622, %v1754
    %v1756 = vpop.f32.mrf.mxu0
    %1757 = vmatprep.mubr.f32.mxu0 0.0
    %1758 = vmatmul.mubr.f32.gmra.mxu0 %v1648
    %v1759 = vpop.f32.mrf.mxu0
    %v1760 = vadd.f32 %v1627, %v1759
    %v1761 = vpop.f32.mrf.mxu0
    %1762 = vdwg.mxu0
    %s1763 = scalar_lea.vmem %s5, 64
    %v1764 = vld [vmem:[%s1763] sm:$0xff]
    %v1765 = vld [vmem:[%s1763 + $0x8] sm:$0xff]
    %v1766 = vld [vmem:[%s1763 + $0x10] sm:$0xff]
    %v1767 = vld [vmem:[%s1763 + $0x18] sm:$0xff]
    %v1769 = vrot.slane %v1447, 7
    %v1770 = vrot.slane %v1448, 7
    %v1771 = vsel %vm426, %v1769, %v1770
    %v1772 = vrot.slane %v1449, 7
    %v1773 = vsel %vm426, %v1770, %v1772
    %v1774 = vrot.slane %v1450, 7
    %v1775 = vsel %vm426, %v1772, %v1774
    %v1776 = vrot.slane %v1451, 7
    %v1777 = vsel %vm426, %v1774, %v1776
    %v1778 = vrot.slane %v1452, 7
    %v1779 = vsel %vm426, %v1776, %v1778
    %v1780 = vrot.slane %v1453, 7
    %v1781 = vsel %vm426, %v1778, %v1780
    %v1782 = vrot.slane %v1454, 7
    %v1783 = vsel %vm426, %v1780, %v1782
    %v1784 = vrot.slane %v1455, 7
    %v1785 = vsel %vm426, %v1782, %v1784
    %v1786 = vrot.slane %v1456, 7
    %v1787 = vsel %vm426, %v1784, %v1786
    %v1788 = vrot.slane %v1457, 7
    %v1789 = vsel %vm426, %v1786, %v1788
    %v1790 = vsel %vm1496, %v1771, 0
    %v1792 = vsel %vm1496, %v1773, 0
    %v1794 = vsel %vm1496, %v1775, 0
    %v1796 = vsel %vm1496, %v1777, 0
    %v1798 = vsel %vm1496, %v1779, 0
    %v1800 = vsel %vm1496, %v1781, 0
    %v1802 = vsel %vm1496, %v1783, 0
    %v1804 = vsel %vm1496, %v1785, 0
    %v1806 = vsel %vm1496, %v1787, 0
    %v1808 = vsel %vm1496, %v1789, 0
    %1810 = vmatprep.subr.mxu0 0.0
    %1811 = vmatpush1.msra.mxu0 0.0
    %1812 = vmatprep.subr.mxu0 0.0
    %1813 = vmatpush1.msra.mxu0 0.0
    %1814 = vmatprep.subr.mxu0 0.0
    %1815 = vmatpush1.msra.mxu0 0.0
    %1816 = vmatprep.subr.mxu0 0.0
    %1817 = vmatpush1.msra.mxu0 0.0
    %1818 = vmatprep.subr.mxu0 0.0
    %1819 = vmatpush1.msra.mxu0 0.0
    %1820 = vmatprep.subr.mxu0 0.0
    %1821 = vmatpush1.msra.mxu0 0.0
    %1822 = vmatprep.subr.mxu0 0.0
    %1823 = vmatpush1.msra.mxu0 0.0
    %1824 = vmatprep.subr.mxu0 0.0
    %1825 = vmatpush1.msra.mxu0 0.0
    %1826 = vmatprep.subr.mxu0 0.0
    %1827 = vmatpush1.msra.mxu0 0.0
    %1828 = vmatprep.subr.mxu0 0.0
    %1829 = vmatpush1.msra.mxu0 0.0
    %1830 = vmatprep.subr.mxu0 0.0
    %1831 = vmatpush1.msra.mxu0 0.0
    %1832 = vmatprep.subr.mxu0 0.0
    %1833 = vmatpush1.msra.mxu0 0.0
    %1834 = vmatprep.subr.mxu0 0.0
    %1835 = vmatpush1.msra.mxu0 %v1767
    %1836 = vmatprep.subr.mxu0 0.0
    %1837 = vmatpush1.msra.mxu0 %v1766
    %1838 = vmatprep.subr.mxu0 0.0
    %1839 = vmatpush1.msra.mxu0 %v1765
    %1840 = vmatprep.subr.mxu0 0.0
    %1841 = vmatpush1.msra.mxu0 %v1764
    %1842 = vmatprep.subr.mxu0 0.0
    %1843 = vmatpush2.msra.mxu0 0.0
    %1844 = vmatprep.subr.mxu0 0.0
    %1845 = vmatpush2.msra.mxu0 0.0
    %1846 = vmatprep.subr.mxu0 0.0
    %1847 = vmatpush2.msra.mxu0 0.0
    %1848 = vmatprep.subr.mxu0 0.0
    %1849 = vmatpush2.msra.mxu0 0.0
    %1850 = vmatprep.subr.mxu0 0.0
    %1851 = vmatpush2.msra.mxu0 0.0
    %1852 = vmatprep.subr.mxu0 0.0
    %1853 = vmatpush2.msra.mxu0 0.0
    %1854 = vmatprep.subr.mxu0 0.0
    %1855 = vmatpush2.msra.mxu0 0.0
    %1856 = vmatprep.subr.mxu0 0.0
    %1857 = vmatpush2.msra.mxu0 0.0
    %1858 = vmatprep.subr.mxu0 0.0
    %1859 = vmatpush2.msra.mxu0 0.0
    %1860 = vmatprep.subr.mxu0 0.0
    %1861 = vmatpush2.msra.mxu0 0.0
    %1862 = vmatprep.subr.mxu0 0.0
    %1863 = vmatpush2.msra.mxu0 0.0
    %1864 = vmatprep.subr.mxu0 0.0
    %1865 = vmatpush2.msra.mxu0 0.0
    %1866 = vmatprep.subr.mxu0 0.0
    %1867 = vmatpush2.msra.mxu0 0.0
    %1868 = vmatprep.subr.mxu0 0.0
    %1869 = vmatpush2.msra.mxu0 0.0
    %1870 = vmatprep.subr.mxu0 0.0
    %1871 = vmatpush2.msra.mxu0 0.0
    %1872 = vmatprep.subr.mxu0 0.0
    %1873 = vmatpush2.msra.mxu0 0.0
    %1874 = vmatprep.mubr.f32.mxu0 0.0
    %1875 = vmatmul.mubr.f32.gmra.mxu0 %v1790
    %v1876 = vpop.f32.mrf.mxu0
    %v1877 = vadd.f32 0.0, %v1876
    %v1878 = vpop.f32.mrf.mxu0
    %1879 = vmatprep.mubr.f32.mxu0 0.0
    %1880 = vmatmul.mubr.f32.gmra.mxu0 %v1792
    %v1881 = vpop.f32.mrf.mxu0
    %v1882 = vadd.f32 0.0, %v1881
    %v1883 = vpop.f32.mrf.mxu0
    %1884 = vmatprep.mubr.f32.mxu0 0.0
    %1885 = vmatmul.mubr.f32.gmra.mxu0 %v1794
    %v1886 = vpop.f32.mrf.mxu0
    %v1887 = vadd.f32 0.0, %v1886
    %v1888 = vpop.f32.mrf.mxu0
    %1889 = vmatprep.mubr.f32.mxu0 0.0
    %1890 = vmatmul.mubr.f32.gmra.mxu0 %v1796
    %v1891 = vpop.f32.mrf.mxu0
    %v1892 = vadd.f32 0.0, %v1891
    %v1893 = vpop.f32.mrf.mxu0
    %1894 = vmatprep.mubr.f32.mxu0 0.0
    %1895 = vmatmul.mubr.f32.gmra.mxu0 %v1798
    %v1896 = vpop.f32.mrf.mxu0
    %v1897 = vpop.f32.mrf.mxu0
    %1898 = vmatprep.mubr.f32.mxu0 0.0
    %1899 = vmatmul.mubr.f32.gmra.mxu0 %v1800
    %v1900 = vpop.f32.mrf.mxu0
    %v1901 = vpop.f32.mrf.mxu0
    %1902 = vmatprep.mubr.f32.mxu0 0.0
    %1903 = vmatmul.mubr.f32.gmra.mxu0 %v1802
    %v1904 = vpop.f32.mrf.mxu0
    %v1905 = vadd.f32 0.0, %v1904
    %v1906 = vpop.f32.mrf.mxu0
    %1907 = vmatprep.mubr.f32.mxu0 0.0
    %1908 = vmatmul.mubr.f32.gmra.mxu0 %v1804
    %v1909 = vpop.f32.mrf.mxu0
    %v1910 = vadd.f32 0.0, %v1909
    %v1911 = vpop.f32.mrf.mxu0
    %1912 = vmatprep.mubr.f32.mxu0 0.0
    %1913 = vmatmul.mubr.f32.gmra.mxu0 %v1806
    %v1914 = vpop.f32.mrf.mxu0
    %v1915 = vadd.f32 0.0, %v1914
    %v1916 = vpop.f32.mrf.mxu0
    %1917 = vmatprep.mubr.f32.mxu0 0.0
    %1918 = vmatmul.mubr.f32.gmra.mxu0 %v1808
    %v1919 = vpop.f32.mrf.mxu0
    %v1920 = vadd.f32 0.0, %v1919
    %v1921 = vpop.f32.mrf.mxu0
    %1922 = vdwg.mxu0
    %v1923 = vadd.f32 %v1717, %v1877
    %v1924 = vadd.f32 %v1722, %v1882
    %v1925 = vadd.f32 %v1727, %v1887
    %v1926 = vadd.f32 %v1732, %v1892
    %v1927 = vadd.f32 %v1745, %v1905
    %v1928 = vadd.f32 %v1750, %v1910
    %v1929 = vadd.f32 %v1755, %v1915
    %v1930 = vadd.f32 %v1760, %v1920
    %s1931 = scalar_lea.vmem %s5, 96
    %v1932 = vld [vmem:[%s1931] sm:$0xff]
    %v1933 = vld [vmem:[%s1931 + $0x8] sm:$0xff]
    %v1934 = vld [vmem:[%s1931 + $0x10] sm:$0xff]
    %v1935 = vld [vmem:[%s1931 + $0x18] sm:$0xff]
    %v1936 = vsel %vm1496, %v1457, 0
    %1938 = vmatprep.subr.mxu0 0.0
    %1939 = vmatpush1.msra.mxu0 0.0
    %1940 = vmatprep.subr.mxu0 0.0
    %1941 = vmatpush1.msra.mxu0 0.0
    %1942 = vmatprep.subr.mxu0 0.0
    %1943 = vmatpush1.msra.mxu0 0.0
    %1944 = vmatprep.subr.mxu0 0.0
    %1945 = vmatpush1.msra.mxu0 0.0
    %1946 = vmatprep.subr.mxu0 0.0
    %1947 = vmatpush1.msra.mxu0 0.0
    %1948 = vmatprep.subr.mxu0 0.0
    %1949 = vmatpush1.msra.mxu0 0.0
    %1950 = vmatprep.subr.mxu0 0.0
    %1951 = vmatpush1.msra.mxu0 0.0
    %1952 = vmatprep.subr.mxu0 0.0
    %1953 = vmatpush1.msra.mxu0 0.0
    %1954 = vmatprep.subr.mxu0 0.0
    %1955 = vmatpush1.msra.mxu0 0.0
    %1956 = vmatprep.subr.mxu0 0.0
    %1957 = vmatpush1.msra.mxu0 0.0
    %1958 = vmatprep.subr.mxu0 0.0
    %1959 = vmatpush1.msra.mxu0 0.0
    %1960 = vmatprep.subr.mxu0 0.0
    %1961 = vmatpush1.msra.mxu0 0.0
    %1962 = vmatprep.subr.mxu0 0.0
    %1963 = vmatpush1.msra.mxu0 %v1935
    %1964 = vmatprep.subr.mxu0 0.0
    %1965 = vmatpush1.msra.mxu0 %v1934
    %1966 = vmatprep.subr.mxu0 0.0
    %1967 = vmatpush1.msra.mxu0 %v1933
    %1968 = vmatprep.subr.mxu0 0.0
    %1969 = vmatpush1.msra.mxu0 %v1932
    %1970 = vmatprep.subr.mxu0 0.0
    %1971 = vmatpush2.msra.mxu0 0.0
    %1972 = vmatprep.subr.mxu0 0.0
    %1973 = vmatpush2.msra.mxu0 0.0
    %1974 = vmatprep.subr.mxu0 0.0
    %1975 = vmatpush2.msra.mxu0 0.0
    %1976 = vmatprep.subr.mxu0 0.0
    %1977 = vmatpush2.msra.mxu0 0.0
    %1978 = vmatprep.subr.mxu0 0.0
    %1979 = vmatpush2.msra.mxu0 0.0
    %1980 = vmatprep.subr.mxu0 0.0
    %1981 = vmatpush2.msra.mxu0 0.0
    %1982 = vmatprep.subr.mxu0 0.0
    %1983 = vmatpush2.msra.mxu0 0.0
    %1984 = vmatprep.subr.mxu0 0.0
    %1985 = vmatpush2.msra.mxu0 0.0
    %1986 = vmatprep.subr.mxu0 0.0
    %1987 = vmatpush2.msra.mxu0 0.0
    %1988 = vmatprep.subr.mxu0 0.0
    %1989 = vmatpush2.msra.mxu0 0.0
    %1990 = vmatprep.subr.mxu0 0.0
    %1991 = vmatpush2.msra.mxu0 0.0
    %1992 = vmatprep.subr.mxu0 0.0
    %1993 = vmatpush2.msra.mxu0 0.0
    %1994 = vmatprep.subr.mxu0 0.0
    %1995 = vmatpush2.msra.mxu0 0.0
    %1996 = vmatprep.subr.mxu0 0.0
    %1997 = vmatpush2.msra.mxu0 0.0
    %1998 = vmatprep.subr.mxu0 0.0
    %1999 = vmatpush2.msra.mxu0 0.0
    %2000 = vmatprep.subr.mxu0 0.0
    %2001 = vmatpush2.msra.mxu0 0.0
    %2002 = vmatprep.mubr.f32.mxu0 0.0
    %2003 = vmatmul.mubr.f32.gmra.mxu0 %v1632
    %v2004 = vpop.f32.mrf.mxu0
    %v2005 = vadd.f32 0.0, %v2004
    %v2006 = vpop.f32.mrf.mxu0
    %2007 = vmatprep.mubr.f32.mxu0 0.0
    %2008 = vmatmul.mubr.f32.gmra.mxu0 %v1634
    %v2009 = vpop.f32.mrf.mxu0
    %v2010 = vadd.f32 0.0, %v2009
    %v2011 = vpop.f32.mrf.mxu0
    %2012 = vmatprep.mubr.f32.mxu0 0.0
    %2013 = vmatmul.mubr.f32.gmra.mxu0 %v1636
    %v2014 = vpop.f32.mrf.mxu0
    %v2015 = vadd.f32 0.0, %v2014
    %v2016 = vpop.f32.mrf.mxu0
    %2017 = vmatprep.mubr.f32.mxu0 0.0
    %2018 = vmatmul.mubr.f32.gmra.mxu0 %v1638
    %v2019 = vpop.f32.mrf.mxu0
    %v2020 = vadd.f32 0.0, %v2019
    %v2021 = vpop.f32.mrf.mxu0
    %2022 = vmatprep.mubr.f32.mxu0 0.0
    %2023 = vmatmul.mubr.f32.gmra.mxu0 %v1640
    %v2024 = vpop.f32.mrf.mxu0
    %v2025 = vpop.f32.mrf.mxu0
    %2026 = vmatprep.mubr.f32.mxu0 0.0
    %2027 = vmatmul.mubr.f32.gmra.mxu0 %v1642
    %v2028 = vpop.f32.mrf.mxu0
    %v2029 = vpop.f32.mrf.mxu0
    %2030 = vmatprep.mubr.f32.mxu0 0.0
    %2031 = vmatmul.mubr.f32.gmra.mxu0 %v1644
    %v2032 = vpop.f32.mrf.mxu0
    %v2033 = vadd.f32 0.0, %v2032
    %v2034 = vpop.f32.mrf.mxu0
    %2035 = vmatprep.mubr.f32.mxu0 0.0
    %2036 = vmatmul.mubr.f32.gmra.mxu0 %v1646
    %v2037 = vpop.f32.mrf.mxu0
    %v2038 = vadd.f32 0.0, %v2037
    %v2039 = vpop.f32.mrf.mxu0
    %2040 = vmatprep.mubr.f32.mxu0 0.0
    %2041 = vmatmul.mubr.f32.gmra.mxu0 %v1648
    %v2042 = vpop.f32.mrf.mxu0
    %v2043 = vadd.f32 0.0, %v2042
    %v2044 = vpop.f32.mrf.mxu0
    %2045 = vmatprep.mubr.f32.mxu0 0.0
    %2046 = vmatmul.mubr.f32.gmra.mxu0 %v1936
    %v2047 = vpop.f32.mrf.mxu0
    %v2048 = vadd.f32 0.0, %v2047
    %v2049 = vpop.f32.mrf.mxu0
    %2050 = vdwg.mxu0
    %v2051 = vadd.f32 %v1923, %v2005
    %v2052 = vadd.f32 %v1924, %v2010
    %v2053 = vadd.f32 %v1925, %v2015
    %v2054 = vadd.f32 %v1926, %v2020
    %v2055 = vadd.f32 %v1927, %v2033
    %v2056 = vadd.f32 %v1928, %v2038
    %v2057 = vadd.f32 %v1929, %v2043
    %v2058 = vadd.f32 %v1930, %v2048
    %v2059 = vld [vmem:[%s6] sm:$0x1]
    %v2061 = vlaneseq
    %v2062 = vshrl.u32 %v2061, 7
    %v2063 = vsub.s32 0, %v2062
    %v2064 = vrot.slane %v2059, %v2063
    %v2066 = vadd.f32 %v2051, %v2064
    %v2067 = vadd.f32 %v2052, %v2064
    %v2068 = vadd.f32 %v2053, %v2064
    %v2069 = vadd.f32 %v2054, %v2064
    %v2070 = vadd.f32 %v2055, %v2064
    %v2071 = vadd.f32 %v2056, %v2064
    %v2072 = vadd.f32 %v2057, %v2064
    %v2073 = vadd.f32 %v2058, %v2064
    %v2074 = vmax.f32 %v2066, 0.0
    %v2075 = vmax.f32 %v2067, 0.0
    %v2076 = vmax.f32 %v2068, 0.0
    %v2077 = vmax.f32 %v2069, 0.0
    %v2078 = vmax.f32 %v2070, 0.0
    %v2079 = vmax.f32 %v2071, 0.0
    %v2080 = vmax.f32 %v2072, 0.0
    %v2081 = vmax.f32 %v2073, 0.0
    %v2082 = vld [vmem:[%s8] sm:$0x1]
    %v2083 = vld [vmem:[#allocation2] sm:$0xff]
    %v2084 = vld [vmem:[#allocation2 + $0x8] sm:$0xff]
    %v2085 = vld [vmem:[#allocation2 + $0x10] sm:$0xff]
    %v2086 = vld [vmem:[#allocation2 + $0x18] sm:$0xff]
    %v2087 = vld [vmem:[#allocation2 + $0x20] sm:$0xff]
    %v2088 = vld [vmem:[#allocation2 + $0x28] sm:$0xff]
    %v2089 = vld [vmem:[#allocation2 + $0x30] sm:$0xff]
    %v2090 = vld [vmem:[#allocation2 + $0x38] sm:$0xff]
    %vm2091 = vcmask 523264
    %v2093 = vsel %vm2091, %v2074, 0
    %2095 = vmatprep.subr.mxu0 0.0
    %2096 = vmatpush1.msra.mxu0 0.0
    %2097 = vmatprep.subr.mxu0 0.0
    %2098 = vmatpush1.msra.mxu0 0.0
    %2099 = vmatprep.subr.mxu0 0.0
    %2100 = vmatpush1.msra.mxu0 0.0
    %2101 = vmatprep.subr.mxu0 0.0
    %2102 = vmatpush1.msra.mxu0 0.0
    %2103 = vmatprep.subr.mxu0 0.0
    %2104 = vmatpush1.msra.mxu0 0.0
    %2105 = vmatprep.subr.mxu0 0.0
    %2106 = vmatpush1.msra.mxu0 0.0
    %2107 = vmatprep.subr.mxu0 0.0
    %2108 = vmatpush1.msra.mxu0 0.0
    %2109 = vmatprep.subr.mxu0 0.0
    %2110 = vmatpush1.msra.mxu0 0.0
    %2111 = vmatprep.subr.mxu0 0.0
    %2112 = vmatpush1.msra.mxu0 %v2090
    %2113 = vmatprep.subr.mxu0 0.0
    %2114 = vmatpush1.msra.mxu0 %v2089
    %2115 = vmatprep.subr.mxu0 0.0
    %2116 = vmatpush1.msra.mxu0 %v2088
    %2117 = vmatprep.subr.mxu0 0.0
    %2118 = vmatpush1.msra.mxu0 %v2087
    %2119 = vmatprep.subr.mxu0 0.0
    %2120 = vmatpush1.msra.mxu0 %v2086
    %2121 = vmatprep.subr.mxu0 0.0
    %2122 = vmatpush1.msra.mxu0 %v2085
    %2123 = vmatprep.subr.mxu0 0.0
    %2124 = vmatpush1.msra.mxu0 %v2084
    %2125 = vmatprep.subr.mxu0 0.0
    %2126 = vmatpush1.msra.mxu0 %v2083
    %2127 = vmatprep.subr.mxu0 0.0
    %2128 = vmatpush2.msra.mxu0 0.0
    %2129 = vmatprep.subr.mxu0 0.0
    %2130 = vmatpush2.msra.mxu0 0.0
    %2131 = vmatprep.subr.mxu0 0.0
    %2132 = vmatpush2.msra.mxu0 0.0
    %2133 = vmatprep.subr.mxu0 0.0
    %2134 = vmatpush2.msra.mxu0 0.0
    %2135 = vmatprep.subr.mxu0 0.0
    %2136 = vmatpush2.msra.mxu0 0.0
    %2137 = vmatprep.subr.mxu0 0.0
    %2138 = vmatpush2.msra.mxu0 0.0
    %2139 = vmatprep.subr.mxu0 0.0
    %2140 = vmatpush2.msra.mxu0 0.0
    %2141 = vmatprep.subr.mxu0 0.0
    %2142 = vmatpush2.msra.mxu0 0.0
    %2143 = vmatprep.subr.mxu0 0.0
    %2144 = vmatpush2.msra.mxu0 0.0
    %2145 = vmatprep.subr.mxu0 0.0
    %2146 = vmatpush2.msra.mxu0 0.0
    %2147 = vmatprep.subr.mxu0 0.0
    %2148 = vmatpush2.msra.mxu0 0.0
    %2149 = vmatprep.subr.mxu0 0.0
    %2150 = vmatpush2.msra.mxu0 0.0
    %2151 = vmatprep.subr.mxu0 0.0
    %2152 = vmatpush2.msra.mxu0 0.0
    %2153 = vmatprep.subr.mxu0 0.0
    %2154 = vmatpush2.msra.mxu0 0.0
    %2155 = vmatprep.subr.mxu0 0.0
    %2156 = vmatpush2.msra.mxu0 0.0
    %2157 = vmatprep.subr.mxu0 0.0
    %2158 = vmatpush2.msra.mxu0 0.0
    %2159 = vmatprep.mubr.f32.mxu0 0.0
    %2160 = vmatmul.mubr.f32.gmra.mxu0 %v2093
    %v2161 = vpop.f32.mrf.mxu0
    %v2162 = vadd.f32 0.0, %v2161
    %v2163 = vpop.f32.mrf.mxu0
    %2164 = vdwg.mxu0
    %v2165 = vadd.f32 %v2082, %v2162
    %s2166 = scalar_lea.vmem [#allocation2], 64
    %v2167 = vld [vmem:[%s2166] sm:$0xff]
    %v2168 = vld [vmem:[%s2166 + $0x8] sm:$0xff]
    %v2169 = vld [vmem:[%s2166 + $0x10] sm:$0xff]
    %v2170 = vld [vmem:[%s2166 + $0x18] sm:$0xff]
    %v2171 = vld [vmem:[%s2166 + $0x20] sm:$0xff]
    %v2172 = vld [vmem:[%s2166 + $0x28] sm:$0xff]
    %v2173 = vld [vmem:[%s2166 + $0x30] sm:$0xff]
    %v2174 = vld [vmem:[%s2166 + $0x38] sm:$0xff]
    %v2175 = vrot.slane %v2074, 1
    %v2176 = vsel %vm2091, %v2175, 0
    %2178 = vmatprep.subr.mxu0 0.0
    %2179 = vmatpush1.msra.mxu0 0.0
    %2180 = vmatprep.subr.mxu0 0.0
    %2181 = vmatpush1.msra.mxu0 0.0
    %2182 = vmatprep.subr.mxu0 0.0
    %2183 = vmatpush1.msra.mxu0 0.0
    %2184 = vmatprep.subr.mxu0 0.0
    %2185 = vmatpush1.msra.mxu0 0.0
    %2186 = vmatprep.subr.mxu0 0.0
    %2187 = vmatpush1.msra.mxu0 0.0
    %2188 = vmatprep.subr.mxu0 0.0
    %2189 = vmatpush1.msra.mxu0 0.0
    %2190 = vmatprep.subr.mxu0 0.0
    %2191 = vmatpush1.msra.mxu0 0.0
    %2192 = vmatprep.subr.mxu0 0.0
    %2193 = vmatpush1.msra.mxu0 0.0
    %2194 = vmatprep.subr.mxu0 0.0
    %2195 = vmatpush1.msra.mxu0 %v2174
    %2196 = vmatprep.subr.mxu0 0.0
    %2197 = vmatpush1.msra.mxu0 %v2173
    %2198 = vmatprep.subr.mxu0 0.0
    %2199 = vmatpush1.msra.mxu0 %v2172
    %2200 = vmatprep.subr.mxu0 0.0
    %2201 = vmatpush1.msra.mxu0 %v2171
    %2202 = vmatprep.subr.mxu0 0.0
    %2203 = vmatpush1.msra.mxu0 %v2170
    %2204 = vmatprep.subr.mxu0 0.0
    %2205 = vmatpush1.msra.mxu0 %v2169
    %2206 = vmatprep.subr.mxu0 0.0
    %2207 = vmatpush1.msra.mxu0 %v2168
    %2208 = vmatprep.subr.mxu0 0.0
    %2209 = vmatpush1.msra.mxu0 %v2167
    %2210 = vmatprep.subr.mxu0 0.0
    %2211 = vmatpush2.msra.mxu0 0.0
    %2212 = vmatprep.subr.mxu0 0.0
    %2213 = vmatpush2.msra.mxu0 0.0
    %2214 = vmatprep.subr.mxu0 0.0
    %2215 = vmatpush2.msra.mxu0 0.0
    %2216 = vmatprep.subr.mxu0 0.0
    %2217 = vmatpush2.msra.mxu0 0.0
    %2218 = vmatprep.subr.mxu0 0.0
    %2219 = vmatpush2.msra.mxu0 0.0
    %2220 = vmatprep.subr.mxu0 0.0
    %2221 = vmatpush2.msra.mxu0 0.0
    %2222 = vmatprep.subr.mxu0 0.0
    %2223 = vmatpush2.msra.mxu0 0.0
    %2224 = vmatprep.subr.mxu0 0.0
    %2225 = vmatpush2.msra.mxu0 0.0
    %2226 = vmatprep.subr.mxu0 0.0
    %2227 = vmatpush2.msra.mxu0 0.0
    %2228 = vmatprep.subr.mxu0 0.0
    %2229 = vmatpush2.msra.mxu0 0.0
    %2230 = vmatprep.subr.mxu0 0.0
    %2231 = vmatpush2.msra.mxu0 0.0
    %2232 = vmatprep.subr.mxu0 0.0
    %2233 = vmatpush2.msra.mxu0 0.0
    %2234 = vmatprep.subr.mxu0 0.0
    %2235 = vmatpush2.msra.mxu0 0.0
    %2236 = vmatprep.subr.mxu0 0.0
    %2237 = vmatpush2.msra.mxu0 0.0
    %2238 = vmatprep.subr.mxu0 0.0
    %2239 = vmatpush2.msra.mxu0 0.0
    %2240 = vmatprep.subr.mxu0 0.0
    %2241 = vmatpush2.msra.mxu0 0.0
    %2242 = vmatprep.mubr.f32.mxu0 0.0
    %2243 = vmatmul.mubr.f32.gmra.mxu0 %v2176
    %v2244 = vpop.f32.mrf.mxu0
    %v2245 = vadd.f32 0.0, %v2244
    %v2246 = vpop.f32.mrf.mxu0
    %2247 = vdwg.mxu0
    %v2248 = vadd.f32 %v2165, %v2245
    %s2249 = scalar_lea.vmem [#allocation2], 128
    %v2250 = vld [vmem:[%s2249] sm:$0xff]
    %v2251 = vld [vmem:[%s2249 + $0x8] sm:$0xff]
    %v2252 = vld [vmem:[%s2249 + $0x10] sm:$0xff]
    %v2253 = vld [vmem:[%s2249 + $0x18] sm:$0xff]
    %v2254 = vld [vmem:[%s2249 + $0x20] sm:$0xff]
    %v2255 = vld [vmem:[%s2249 + $0x28] sm:$0xff]
    %v2256 = vld [vmem:[%s2249 + $0x30] sm:$0xff]
    %v2257 = vld [vmem:[%s2249 + $0x38] sm:$0xff]
    %v2258 = vrot.slane %v2074, 2
    %v2259 = vsel %vm2091, %v2258, 0
    %2261 = vmatprep.subr.mxu0 0.0
    %2262 = vmatpush1.msra.mxu0 0.0
    %2263 = vmatprep.subr.mxu0 0.0
    %2264 = vmatpush1.msra.mxu0 0.0
    %2265 = vmatprep.subr.mxu0 0.0
    %2266 = vmatpush1.msra.mxu0 0.0
    %2267 = vmatprep.subr.mxu0 0.0
    %2268 = vmatpush1.msra.mxu0 0.0
    %2269 = vmatprep.subr.mxu0 0.0
    %2270 = vmatpush1.msra.mxu0 0.0
    %2271 = vmatprep.subr.mxu0 0.0
    %2272 = vmatpush1.msra.mxu0 0.0
    %2273 = vmatprep.subr.mxu0 0.0
    %2274 = vmatpush1.msra.mxu0 0.0
    %2275 = vmatprep.subr.mxu0 0.0
    %2276 = vmatpush1.msra.mxu0 0.0
    %2277 = vmatprep.subr.mxu0 0.0
    %2278 = vmatpush1.msra.mxu0 %v2257
    %2279 = vmatprep.subr.mxu0 0.0
    %2280 = vmatpush1.msra.mxu0 %v2256
    %2281 = vmatprep.subr.mxu0 0.0
    %2282 = vmatpush1.msra.mxu0 %v2255
    %2283 = vmatprep.subr.mxu0 0.0
    %2284 = vmatpush1.msra.mxu0 %v2254
    %2285 = vmatprep.subr.mxu0 0.0
    %2286 = vmatpush1.msra.mxu0 %v2253
    %2287 = vmatprep.subr.mxu0 0.0
    %2288 = vmatpush1.msra.mxu0 %v2252
    %2289 = vmatprep.subr.mxu0 0.0
    %2290 = vmatpush1.msra.mxu0 %v2251
    %2291 = vmatprep.subr.mxu0 0.0
    %2292 = vmatpush1.msra.mxu0 %v2250
    %2293 = vmatprep.subr.mxu0 0.0
    %2294 = vmatpush2.msra.mxu0 0.0
    %2295 = vmatprep.subr.mxu0 0.0
    %2296 = vmatpush2.msra.mxu0 0.0
    %2297 = vmatprep.subr.mxu0 0.0
    %2298 = vmatpush2.msra.mxu0 0.0
    %2299 = vmatprep.subr.mxu0 0.0
    %2300 = vmatpush2.msra.mxu0 0.0
    %2301 = vmatprep.subr.mxu0 0.0
    %2302 = vmatpush2.msra.mxu0 0.0
    %2303 = vmatprep.subr.mxu0 0.0
    %2304 = vmatpush2.msra.mxu0 0.0
    %2305 = vmatprep.subr.mxu0 0.0
    %2306 = vmatpush2.msra.mxu0 0.0
    %2307 = vmatprep.subr.mxu0 0.0
    %2308 = vmatpush2.msra.mxu0 0.0
    %2309 = vmatprep.subr.mxu0 0.0
    %2310 = vmatpush2.msra.mxu0 0.0
    %2311 = vmatprep.subr.mxu0 0.0
    %2312 = vmatpush2.msra.mxu0 0.0
    %2313 = vmatprep.subr.mxu0 0.0
    %2314 = vmatpush2.msra.mxu0 0.0
    %2315 = vmatprep.subr.mxu0 0.0
    %2316 = vmatpush2.msra.mxu0 0.0
    %2317 = vmatprep.subr.mxu0 0.0
    %2318 = vmatpush2.msra.mxu0 0.0
    %2319 = vmatprep.subr.mxu0 0.0
    %2320 = vmatpush2.msra.mxu0 0.0
    %2321 = vmatprep.subr.mxu0 0.0
    %2322 = vmatpush2.msra.mxu0 0.0
    %2323 = vmatprep.subr.mxu0 0.0
    %2324 = vmatpush2.msra.mxu0 0.0
    %2325 = vmatprep.mubr.f32.mxu0 0.0
    %2326 = vmatmul.mubr.f32.gmra.mxu0 %v2259
    %v2327 = vpop.f32.mrf.mxu0
    %v2328 = vadd.f32 0.0, %v2327
    %v2329 = vpop.f32.mrf.mxu0
    %2330 = vdwg.mxu0
    %v2331 = vadd.f32 %v2248, %v2328
    %s2332 = scalar_lea.vmem [#allocation2], 192
    %v2333 = vld [vmem:[%s2332] sm:$0xff]
    %v2334 = vld [vmem:[%s2332 + $0x8] sm:$0xff]
    %v2335 = vld [vmem:[%s2332 + $0x10] sm:$0xff]
    %v2336 = vld [vmem:[%s2332 + $0x18] sm:$0xff]
    %v2337 = vld [vmem:[%s2332 + $0x20] sm:$0xff]
    %v2338 = vld [vmem:[%s2332 + $0x28] sm:$0xff]
    %v2339 = vld [vmem:[%s2332 + $0x30] sm:$0xff]
    %v2340 = vld [vmem:[%s2332 + $0x38] sm:$0xff]
    %v2341 = vrot.slane %v2074, 3
    %v2342 = vsel %vm2091, %v2341, 0
    %2344 = vmatprep.subr.mxu0 0.0
    %2345 = vmatpush1.msra.mxu0 0.0
    %2346 = vmatprep.subr.mxu0 0.0
    %2347 = vmatpush1.msra.mxu0 0.0
    %2348 = vmatprep.subr.mxu0 0.0
    %2349 = vmatpush1.msra.mxu0 0.0
    %2350 = vmatprep.subr.mxu0 0.0
    %2351 = vmatpush1.msra.mxu0 0.0
    %2352 = vmatprep.subr.mxu0 0.0
    %2353 = vmatpush1.msra.mxu0 0.0
    %2354 = vmatprep.subr.mxu0 0.0
    %2355 = vmatpush1.msra.mxu0 0.0
    %2356 = vmatprep.subr.mxu0 0.0
    %2357 = vmatpush1.msra.mxu0 0.0
    %2358 = vmatprep.subr.mxu0 0.0
    %2359 = vmatpush1.msra.mxu0 0.0
    %2360 = vmatprep.subr.mxu0 0.0
    %2361 = vmatpush1.msra.mxu0 %v2340
    %2362 = vmatprep.subr.mxu0 0.0
    %2363 = vmatpush1.msra.mxu0 %v2339
    %2364 = vmatprep.subr.mxu0 0.0
    %2365 = vmatpush1.msra.mxu0 %v2338
    %2366 = vmatprep.subr.mxu0 0.0
    %2367 = vmatpush1.msra.mxu0 %v2337
    %2368 = vmatprep.subr.mxu0 0.0
    %2369 = vmatpush1.msra.mxu0 %v2336
    %2370 = vmatprep.subr.mxu0 0.0
    %2371 = vmatpush1.msra.mxu0 %v2335
    %2372 = vmatprep.subr.mxu0 0.0
    %2373 = vmatpush1.msra.mxu0 %v2334
    %2374 = vmatprep.subr.mxu0 0.0
    %2375 = vmatpush1.msra.mxu0 %v2333
    %2376 = vmatprep.subr.mxu0 0.0
    %2377 = vmatpush2.msra.mxu0 0.0
    %2378 = vmatprep.subr.mxu0 0.0
    %2379 = vmatpush2.msra.mxu0 0.0
    %2380 = vmatprep.subr.mxu0 0.0
    %2381 = vmatpush2.msra.mxu0 0.0
    %2382 = vmatprep.subr.mxu0 0.0
    %2383 = vmatpush2.msra.mxu0 0.0
    %2384 = vmatprep.subr.mxu0 0.0
    %2385 = vmatpush2.msra.mxu0 0.0
    %2386 = vmatprep.subr.mxu0 0.0
    %2387 = vmatpush2.msra.mxu0 0.0
    %2388 = vmatprep.subr.mxu0 0.0
    %2389 = vmatpush2.msra.mxu0 0.0
    %2390 = vmatprep.subr.mxu0 0.0
    %2391 = vmatpush2.msra.mxu0 0.0
    %2392 = vmatprep.subr.mxu0 0.0
    %2393 = vmatpush2.msra.mxu0 0.0
    %2394 = vmatprep.subr.mxu0 0.0
    %2395 = vmatpush2.msra.mxu0 0.0
    %2396 = vmatprep.subr.mxu0 0.0
    %2397 = vmatpush2.msra.mxu0 0.0
    %2398 = vmatprep.subr.mxu0 0.0
    %2399 = vmatpush2.msra.mxu0 0.0
    %2400 = vmatprep.subr.mxu0 0.0
    %2401 = vmatpush2.msra.mxu0 0.0
    %2402 = vmatprep.subr.mxu0 0.0
    %2403 = vmatpush2.msra.mxu0 0.0
    %2404 = vmatprep.subr.mxu0 0.0
    %2405 = vmatpush2.msra.mxu0 0.0
    %2406 = vmatprep.subr.mxu0 0.0
    %2407 = vmatpush2.msra.mxu0 0.0
    %2408 = vmatprep.mubr.f32.mxu0 0.0
    %2409 = vmatmul.mubr.f32.gmra.mxu0 %v2342
    %v2410 = vpop.f32.mrf.mxu0
    %v2411 = vadd.f32 0.0, %v2410
    %v2412 = vpop.f32.mrf.mxu0
    %2413 = vdwg.mxu0
    %v2414 = vadd.f32 %v2331, %v2411
    %s2415 = scalar_lea.vmem [#allocation2], 256
    %v2416 = vld [vmem:[%s2415] sm:$0xff]
    %v2417 = vld [vmem:[%s2415 + $0x8] sm:$0xff]
    %v2418 = vld [vmem:[%s2415 + $0x10] sm:$0xff]
    %v2419 = vld [vmem:[%s2415 + $0x18] sm:$0xff]
    %v2420 = vld [vmem:[%s2415 + $0x20] sm:$0xff]
    %v2421 = vld [vmem:[%s2415 + $0x28] sm:$0xff]
    %v2422 = vld [vmem:[%s2415 + $0x30] sm:$0xff]
    %v2423 = vld [vmem:[%s2415 + $0x38] sm:$0xff]
    %v2424 = vrot.slane %v2074, 7
    %v2425 = vsel %vm2091, %v2424, 0
    %2427 = vmatprep.subr.mxu0 0.0
    %2428 = vmatpush1.msra.mxu0 0.0
    %2429 = vmatprep.subr.mxu0 0.0
    %2430 = vmatpush1.msra.mxu0 0.0
    %2431 = vmatprep.subr.mxu0 0.0
    %2432 = vmatpush1.msra.mxu0 0.0
    %2433 = vmatprep.subr.mxu0 0.0
    %2434 = vmatpush1.msra.mxu0 0.0
    %2435 = vmatprep.subr.mxu0 0.0
    %2436 = vmatpush1.msra.mxu0 0.0
    %2437 = vmatprep.subr.mxu0 0.0
    %2438 = vmatpush1.msra.mxu0 0.0
    %2439 = vmatprep.subr.mxu0 0.0
    %2440 = vmatpush1.msra.mxu0 0.0
    %2441 = vmatprep.subr.mxu0 0.0
    %2442 = vmatpush1.msra.mxu0 0.0
    %2443 = vmatprep.subr.mxu0 0.0
    %2444 = vmatpush1.msra.mxu0 %v2423
    %2445 = vmatprep.subr.mxu0 0.0
    %2446 = vmatpush1.msra.mxu0 %v2422
    %2447 = vmatprep.subr.mxu0 0.0
    %2448 = vmatpush1.msra.mxu0 %v2421
    %2449 = vmatprep.subr.mxu0 0.0
    %2450 = vmatpush1.msra.mxu0 %v2420
    %2451 = vmatprep.subr.mxu0 0.0
    %2452 = vmatpush1.msra.mxu0 %v2419
    %2453 = vmatprep.subr.mxu0 0.0
    %2454 = vmatpush1.msra.mxu0 %v2418
    %2455 = vmatprep.subr.mxu0 0.0
    %2456 = vmatpush1.msra.mxu0 %v2417
    %2457 = vmatprep.subr.mxu0 0.0
    %2458 = vmatpush1.msra.mxu0 %v2416
    %2459 = vmatprep.subr.mxu0 0.0
    %2460 = vmatpush2.msra.mxu0 0.0
    %2461 = vmatprep.subr.mxu0 0.0
    %2462 = vmatpush2.msra.mxu0 0.0
    %2463 = vmatprep.subr.mxu0 0.0
    %2464 = vmatpush2.msra.mxu0 0.0
    %2465 = vmatprep.subr.mxu0 0.0
    %2466 = vmatpush2.msra.mxu0 0.0
    %2467 = vmatprep.subr.mxu0 0.0
    %2468 = vmatpush2.msra.mxu0 0.0
    %2469 = vmatprep.subr.mxu0 0.0
    %2470 = vmatpush2.msra.mxu0 0.0
    %2471 = vmatprep.subr.mxu0 0.0
    %2472 = vmatpush2.msra.mxu0 0.0
    %2473 = vmatprep.subr.mxu0 0.0
    %2474 = vmatpush2.msra.mxu0 0.0
    %2475 = vmatprep.subr.mxu0 0.0
    %2476 = vmatpush2.msra.mxu0 0.0
    %2477 = vmatprep.subr.mxu0 0.0
    %2478 = vmatpush2.msra.mxu0 0.0
    %2479 = vmatprep.subr.mxu0 0.0
    %2480 = vmatpush2.msra.mxu0 0.0
    %2481 = vmatprep.subr.mxu0 0.0
    %2482 = vmatpush2.msra.mxu0 0.0
    %2483 = vmatprep.subr.mxu0 0.0
    %2484 = vmatpush2.msra.mxu0 0.0
    %2485 = vmatprep.subr.mxu0 0.0
    %2486 = vmatpush2.msra.mxu0 0.0
    %2487 = vmatprep.subr.mxu0 0.0
    %2488 = vmatpush2.msra.mxu0 0.0
    %2489 = vmatprep.subr.mxu0 0.0
    %2490 = vmatpush2.msra.mxu0 0.0
    %2491 = vmatprep.mubr.f32.mxu0 0.0
    %2492 = vmatmul.mubr.f32.gmra.mxu0 %v2425
    %v2493 = vpop.f32.mrf.mxu0
    %v2494 = vadd.f32 0.0, %v2493
    %v2495 = vpop.f32.mrf.mxu0
    %2496 = vdwg.mxu0
    %v2497 = vadd.f32 %v2414, %v2494
    %s2498 = scalar_lea.vmem [#allocation2], 320
    %v2499 = vld [vmem:[%s2498] sm:$0xff]
    %v2500 = vld [vmem:[%s2498 + $0x8] sm:$0xff]
    %v2501 = vld [vmem:[%s2498 + $0x10] sm:$0xff]
    %v2502 = vld [vmem:[%s2498 + $0x18] sm:$0xff]
    %v2503 = vld [vmem:[%s2498 + $0x20] sm:$0xff]
    %v2504 = vld [vmem:[%s2498 + $0x28] sm:$0xff]
    %v2505 = vld [vmem:[%s2498 + $0x30] sm:$0xff]
    %v2506 = vld [vmem:[%s2498 + $0x38] sm:$0xff]
    %v2508 = vsel %vm2091, %v2075, 0
    %2510 = vmatprep.subr.mxu0 0.0
    %2511 = vmatpush1.msra.mxu0 0.0
    %2512 = vmatprep.subr.mxu0 0.0
    %2513 = vmatpush1.msra.mxu0 0.0
    %2514 = vmatprep.subr.mxu0 0.0
    %2515 = vmatpush1.msra.mxu0 0.0
    %2516 = vmatprep.subr.mxu0 0.0
    %2517 = vmatpush1.msra.mxu0 0.0
    %2518 = vmatprep.subr.mxu0 0.0
    %2519 = vmatpush1.msra.mxu0 0.0
    %2520 = vmatprep.subr.mxu0 0.0
    %2521 = vmatpush1.msra.mxu0 0.0
    %2522 = vmatprep.subr.mxu0 0.0
    %2523 = vmatpush1.msra.mxu0 0.0
    %2524 = vmatprep.subr.mxu0 0.0
    %2525 = vmatpush1.msra.mxu0 0.0
    %2526 = vmatprep.subr.mxu0 0.0
    %2527 = vmatpush1.msra.mxu0 %v2506
    %2528 = vmatprep.subr.mxu0 0.0
    %2529 = vmatpush1.msra.mxu0 %v2505
    %2530 = vmatprep.subr.mxu0 0.0
    %2531 = vmatpush1.msra.mxu0 %v2504
    %2532 = vmatprep.subr.mxu0 0.0
    %2533 = vmatpush1.msra.mxu0 %v2503
    %2534 = vmatprep.subr.mxu0 0.0
    %2535 = vmatpush1.msra.mxu0 %v2502
    %2536 = vmatprep.subr.mxu0 0.0
    %2537 = vmatpush1.msra.mxu0 %v2501
    %2538 = vmatprep.subr.mxu0 0.0
    %2539 = vmatpush1.msra.mxu0 %v2500
    %2540 = vmatprep.subr.mxu0 0.0
    %2541 = vmatpush1.msra.mxu0 %v2499
    %2542 = vmatprep.subr.mxu0 0.0
    %2543 = vmatpush2.msra.mxu0 0.0
    %2544 = vmatprep.subr.mxu0 0.0
    %2545 = vmatpush2.msra.mxu0 0.0
    %2546 = vmatprep.subr.mxu0 0.0
    %2547 = vmatpush2.msra.mxu0 0.0
    %2548 = vmatprep.subr.mxu0 0.0
    %2549 = vmatpush2.msra.mxu0 0.0
    %2550 = vmatprep.subr.mxu0 0.0
    %2551 = vmatpush2.msra.mxu0 0.0
    %2552 = vmatprep.subr.mxu0 0.0
    %2553 = vmatpush2.msra.mxu0 0.0
    %2554 = vmatprep.subr.mxu0 0.0
    %2555 = vmatpush2.msra.mxu0 0.0
    %2556 = vmatprep.subr.mxu0 0.0
    %2557 = vmatpush2.msra.mxu0 0.0
    %2558 = vmatprep.subr.mxu0 0.0
    %2559 = vmatpush2.msra.mxu0 0.0
    %2560 = vmatprep.subr.mxu0 0.0
    %2561 = vmatpush2.msra.mxu0 0.0
    %2562 = vmatprep.subr.mxu0 0.0
    %2563 = vmatpush2.msra.mxu0 0.0
    %2564 = vmatprep.subr.mxu0 0.0
    %2565 = vmatpush2.msra.mxu0 0.0
    %2566 = vmatprep.subr.mxu0 0.0
    %2567 = vmatpush2.msra.mxu0 0.0
    %2568 = vmatprep.subr.mxu0 0.0
    %2569 = vmatpush2.msra.mxu0 0.0
    %2570 = vmatprep.subr.mxu0 0.0
    %2571 = vmatpush2.msra.mxu0 0.0
    %2572 = vmatprep.subr.mxu0 0.0
    %2573 = vmatpush2.msra.mxu0 0.0
    %2574 = vmatprep.mubr.f32.mxu0 0.0
    %2575 = vmatmul.mubr.f32.gmra.mxu0 %v2508
    %v2576 = vpop.f32.mrf.mxu0
    %v2577 = vadd.f32 0.0, %v2576
    %v2578 = vpop.f32.mrf.mxu0
    %2579 = vdwg.mxu0
    %v2580 = vadd.f32 %v2497, %v2577
    %s2581 = scalar_lea.vmem [#allocation2], 384
    %v2582 = vld [vmem:[%s2581] sm:$0xff]
    %v2583 = vld [vmem:[%s2581 + $0x8] sm:$0xff]
    %v2584 = vld [vmem:[%s2581 + $0x10] sm:$0xff]
    %v2585 = vld [vmem:[%s2581 + $0x18] sm:$0xff]
    %v2586 = vld [vmem:[%s2581 + $0x20] sm:$0xff]
    %v2587 = vld [vmem:[%s2581 + $0x28] sm:$0xff]
    %v2588 = vld [vmem:[%s2581 + $0x30] sm:$0xff]
    %v2589 = vld [vmem:[%s2581 + $0x38] sm:$0xff]
    %v2590 = vrot.slane %v2075, 1
    %v2591 = vsel %vm2091, %v2590, 0
    %2593 = vmatprep.subr.mxu0 0.0
    %2594 = vmatpush1.msra.mxu0 0.0
    %2595 = vmatprep.subr.mxu0 0.0
    %2596 = vmatpush1.msra.mxu0 0.0
    %2597 = vmatprep.subr.mxu0 0.0
    %2598 = vmatpush1.msra.mxu0 0.0
    %2599 = vmatprep.subr.mxu0 0.0
    %2600 = vmatpush1.msra.mxu0 0.0
    %2601 = vmatprep.subr.mxu0 0.0
    %2602 = vmatpush1.msra.mxu0 0.0
    %2603 = vmatprep.subr.mxu0 0.0
    %2604 = vmatpush1.msra.mxu0 0.0
    %2605 = vmatprep.subr.mxu0 0.0
    %2606 = vmatpush1.msra.mxu0 0.0
    %2607 = vmatprep.subr.mxu0 0.0
    %2608 = vmatpush1.msra.mxu0 0.0
    %2609 = vmatprep.subr.mxu0 0.0
    %2610 = vmatpush1.msra.mxu0 %v2589
    %2611 = vmatprep.subr.mxu0 0.0
    %2612 = vmatpush1.msra.mxu0 %v2588
    %2613 = vmatprep.subr.mxu0 0.0
    %2614 = vmatpush1.msra.mxu0 %v2587
    %2615 = vmatprep.subr.mxu0 0.0
    %2616 = vmatpush1.msra.mxu0 %v2586
    %2617 = vmatprep.subr.mxu0 0.0
    %2618 = vmatpush1.msra.mxu0 %v2585
    %2619 = vmatprep.subr.mxu0 0.0
    %2620 = vmatpush1.msra.mxu0 %v2584
    %2621 = vmatprep.subr.mxu0 0.0
    %2622 = vmatpush1.msra.mxu0 %v2583
    %2623 = vmatprep.subr.mxu0 0.0
    %2624 = vmatpush1.msra.mxu0 %v2582
    %2625 = vmatprep.subr.mxu0 0.0
    %2626 = vmatpush2.msra.mxu0 0.0
    %2627 = vmatprep.subr.mxu0 0.0
    %2628 = vmatpush2.msra.mxu0 0.0
    %2629 = vmatprep.subr.mxu0 0.0
    %2630 = vmatpush2.msra.mxu0 0.0
    %2631 = vmatprep.subr.mxu0 0.0
    %2632 = vmatpush2.msra.mxu0 0.0
    %2633 = vmatprep.subr.mxu0 0.0
    %2634 = vmatpush2.msra.mxu0 0.0
    %2635 = vmatprep.subr.mxu0 0.0
    %2636 = vmatpush2.msra.mxu0 0.0
    %2637 = vmatprep.subr.mxu0 0.0
    %2638 = vmatpush2.msra.mxu0 0.0
    %2639 = vmatprep.subr.mxu0 0.0
    %2640 = vmatpush2.msra.mxu0 0.0
    %2641 = vmatprep.subr.mxu0 0.0
    %2642 = vmatpush2.msra.mxu0 0.0
    %2643 = vmatprep.subr.mxu0 0.0
    %2644 = vmatpush2.msra.mxu0 0.0
    %2645 = vmatprep.subr.mxu0 0.0
    %2646 = vmatpush2.msra.mxu0 0.0
    %2647 = vmatprep.subr.mxu0 0.0
    %2648 = vmatpush2.msra.mxu0 0.0
    %2649 = vmatprep.subr.mxu0 0.0
    %2650 = vmatpush2.msra.mxu0 0.0
    %2651 = vmatprep.subr.mxu0 0.0
    %2652 = vmatpush2.msra.mxu0 0.0
    %2653 = vmatprep.subr.mxu0 0.0
    %2654 = vmatpush2.msra.mxu0 0.0
    %2655 = vmatprep.subr.mxu0 0.0
    %2656 = vmatpush2.msra.mxu0 0.0
    %2657 = vmatprep.mubr.f32.mxu0 0.0
    %2658 = vmatmul.mubr.f32.gmra.mxu0 %v2591
    %v2659 = vpop.f32.mrf.mxu0
    %v2660 = vadd.f32 0.0, %v2659
    %v2661 = vpop.f32.mrf.mxu0
    %2662 = vdwg.mxu0
    %v2663 = vadd.f32 %v2580, %v2660
    %s2664 = scalar_lea.vmem [#allocation2], 448
    %v2665 = vld [vmem:[%s2664] sm:$0xff]
    %v2666 = vld [vmem:[%s2664 + $0x8] sm:$0xff]
    %v2667 = vld [vmem:[%s2664 + $0x10] sm:$0xff]
    %v2668 = vld [vmem:[%s2664 + $0x18] sm:$0xff]
    %v2669 = vld [vmem:[%s2664 + $0x20] sm:$0xff]
    %v2670 = vld [vmem:[%s2664 + $0x28] sm:$0xff]
    %v2671 = vld [vmem:[%s2664 + $0x30] sm:$0xff]
    %v2672 = vld [vmem:[%s2664 + $0x38] sm:$0xff]
    %v2673 = vrot.slane %v2075, 2
    %v2674 = vsel %vm2091, %v2673, 0
    %2676 = vmatprep.subr.mxu0 0.0
    %2677 = vmatpush1.msra.mxu0 0.0
    %2678 = vmatprep.subr.mxu0 0.0
    %2679 = vmatpush1.msra.mxu0 0.0
    %2680 = vmatprep.subr.mxu0 0.0
    %2681 = vmatpush1.msra.mxu0 0.0
    %2682 = vmatprep.subr.mxu0 0.0
    %2683 = vmatpush1.msra.mxu0 0.0
    %2684 = vmatprep.subr.mxu0 0.0
    %2685 = vmatpush1.msra.mxu0 0.0
    %2686 = vmatprep.subr.mxu0 0.0
    %2687 = vmatpush1.msra.mxu0 0.0
    %2688 = vmatprep.subr.mxu0 0.0
    %2689 = vmatpush1.msra.mxu0 0.0
    %2690 = vmatprep.subr.mxu0 0.0
    %2691 = vmatpush1.msra.mxu0 0.0
    %2692 = vmatprep.subr.mxu0 0.0
    %2693 = vmatpush1.msra.mxu0 %v2672
    %2694 = vmatprep.subr.mxu0 0.0
    %2695 = vmatpush1.msra.mxu0 %v2671
    %2696 = vmatprep.subr.mxu0 0.0
    %2697 = vmatpush1.msra.mxu0 %v2670
    %2698 = vmatprep.subr.mxu0 0.0
    %2699 = vmatpush1.msra.mxu0 %v2669
    %2700 = vmatprep.subr.mxu0 0.0
    %2701 = vmatpush1.msra.mxu0 %v2668
    %2702 = vmatprep.subr.mxu0 0.0
    %2703 = vmatpush1.msra.mxu0 %v2667
    %2704 = vmatprep.subr.mxu0 0.0
    %2705 = vmatpush1.msra.mxu0 %v2666
    %2706 = vmatprep.subr.mxu0 0.0
    %2707 = vmatpush1.msra.mxu0 %v2665
    %2708 = vmatprep.subr.mxu0 0.0
    %2709 = vmatpush2.msra.mxu0 0.0
    %2710 = vmatprep.subr.mxu0 0.0
    %2711 = vmatpush2.msra.mxu0 0.0
    %2712 = vmatprep.subr.mxu0 0.0
    %2713 = vmatpush2.msra.mxu0 0.0
    %2714 = vmatprep.subr.mxu0 0.0
    %2715 = vmatpush2.msra.mxu0 0.0
    %2716 = vmatprep.subr.mxu0 0.0
    %2717 = vmatpush2.msra.mxu0 0.0
    %2718 = vmatprep.subr.mxu0 0.0
    %2719 = vmatpush2.msra.mxu0 0.0
    %2720 = vmatprep.subr.mxu0 0.0
    %2721 = vmatpush2.msra.mxu0 0.0
    %2722 = vmatprep.subr.mxu0 0.0
    %2723 = vmatpush2.msra.mxu0 0.0
    %2724 = vmatprep.subr.mxu0 0.0
    %2725 = vmatpush2.msra.mxu0 0.0
    %2726 = vmatprep.subr.mxu0 0.0
    %2727 = vmatpush2.msra.mxu0 0.0
    %2728 = vmatprep.subr.mxu0 0.0
    %2729 = vmatpush2.msra.mxu0 0.0
    %2730 = vmatprep.subr.mxu0 0.0
    %2731 = vmatpush2.msra.mxu0 0.0
    %2732 = vmatprep.subr.mxu0 0.0
    %2733 = vmatpush2.msra.mxu0 0.0
    %2734 = vmatprep.subr.mxu0 0.0
    %2735 = vmatpush2.msra.mxu0 0.0
    %2736 = vmatprep.subr.mxu0 0.0
    %2737 = vmatpush2.msra.mxu0 0.0
    %2738 = vmatprep.subr.mxu0 0.0
    %2739 = vmatpush2.msra.mxu0 0.0
    %2740 = vmatprep.mubr.f32.mxu0 0.0
    %2741 = vmatmul.mubr.f32.gmra.mxu0 %v2674
    %v2742 = vpop.f32.mrf.mxu0
    %v2743 = vadd.f32 0.0, %v2742
    %v2744 = vpop.f32.mrf.mxu0
    %2745 = vdwg.mxu0
    %v2746 = vadd.f32 %v2663, %v2743
    %s2747 = scalar_lea.vmem [#allocation2], 512
    %v2748 = vld [vmem:[%s2747] sm:$0xff]
    %v2749 = vld [vmem:[%s2747 + $0x8] sm:$0xff]
    %v2750 = vld [vmem:[%s2747 + $0x10] sm:$0xff]
    %v2751 = vld [vmem:[%s2747 + $0x18] sm:$0xff]
    %v2752 = vld [vmem:[%s2747 + $0x20] sm:$0xff]
    %v2753 = vld [vmem:[%s2747 + $0x28] sm:$0xff]
    %v2754 = vld [vmem:[%s2747 + $0x30] sm:$0xff]
    %v2755 = vld [vmem:[%s2747 + $0x38] sm:$0xff]
    %v2756 = vrot.slane %v2075, 6
    %v2757 = vsel %vm2091, %v2756, 0
    %2759 = vmatprep.subr.mxu0 0.0
    %2760 = vmatpush1.msra.mxu0 0.0
    %2761 = vmatprep.subr.mxu0 0.0
    %2762 = vmatpush1.msra.mxu0 0.0
    %2763 = vmatprep.subr.mxu0 0.0
    %2764 = vmatpush1.msra.mxu0 0.0
    %2765 = vmatprep.subr.mxu0 0.0
    %2766 = vmatpush1.msra.mxu0 0.0
    %2767 = vmatprep.subr.mxu0 0.0
    %2768 = vmatpush1.msra.mxu0 0.0
    %2769 = vmatprep.subr.mxu0 0.0
    %2770 = vmatpush1.msra.mxu0 0.0
    %2771 = vmatprep.subr.mxu0 0.0
    %2772 = vmatpush1.msra.mxu0 0.0
    %2773 = vmatprep.subr.mxu0 0.0
    %2774 = vmatpush1.msra.mxu0 0.0
    %2775 = vmatprep.subr.mxu0 0.0
    %2776 = vmatpush1.msra.mxu0 %v2755
    %2777 = vmatprep.subr.mxu0 0.0
    %2778 = vmatpush1.msra.mxu0 %v2754
    %2779 = vmatprep.subr.mxu0 0.0
    %2780 = vmatpush1.msra.mxu0 %v2753
    %2781 = vmatprep.subr.mxu0 0.0
    %2782 = vmatpush1.msra.mxu0 %v2752
    %2783 = vmatprep.subr.mxu0 0.0
    %2784 = vmatpush1.msra.mxu0 %v2751
    %2785 = vmatprep.subr.mxu0 0.0
    %2786 = vmatpush1.msra.mxu0 %v2750
    %2787 = vmatprep.subr.mxu0 0.0
    %2788 = vmatpush1.msra.mxu0 %v2749
    %2789 = vmatprep.subr.mxu0 0.0
    %2790 = vmatpush1.msra.mxu0 %v2748
    %2791 = vmatprep.subr.mxu0 0.0
    %2792 = vmatpush2.msra.mxu0 0.0
    %2793 = vmatprep.subr.mxu0 0.0
    %2794 = vmatpush2.msra.mxu0 0.0
    %2795 = vmatprep.subr.mxu0 0.0
    %2796 = vmatpush2.msra.mxu0 0.0
    %2797 = vmatprep.subr.mxu0 0.0
    %2798 = vmatpush2.msra.mxu0 0.0
    %2799 = vmatprep.subr.mxu0 0.0
    %2800 = vmatpush2.msra.mxu0 0.0
    %2801 = vmatprep.subr.mxu0 0.0
    %2802 = vmatpush2.msra.mxu0 0.0
    %2803 = vmatprep.subr.mxu0 0.0
    %2804 = vmatpush2.msra.mxu0 0.0
    %2805 = vmatprep.subr.mxu0 0.0
    %2806 = vmatpush2.msra.mxu0 0.0
    %2807 = vmatprep.subr.mxu0 0.0
    %2808 = vmatpush2.msra.mxu0 0.0
    %2809 = vmatprep.subr.mxu0 0.0
    %2810 = vmatpush2.msra.mxu0 0.0
    %2811 = vmatprep.subr.mxu0 0.0
    %2812 = vmatpush2.msra.mxu0 0.0
    %2813 = vmatprep.subr.mxu0 0.0
    %2814 = vmatpush2.msra.mxu0 0.0
    %2815 = vmatprep.subr.mxu0 0.0
    %2816 = vmatpush2.msra.mxu0 0.0
    %2817 = vmatprep.subr.mxu0 0.0
    %2818 = vmatpush2.msra.mxu0 0.0
    %2819 = vmatprep.subr.mxu0 0.0
    %2820 = vmatpush2.msra.mxu0 0.0
    %2821 = vmatprep.subr.mxu0 0.0
    %2822 = vmatpush2.msra.mxu0 0.0
    %2823 = vmatprep.mubr.f32.mxu0 0.0
    %2824 = vmatmul.mubr.f32.gmra.mxu0 %v2757
    %v2825 = vpop.f32.mrf.mxu0
    %v2826 = vadd.f32 0.0, %v2825
    %v2827 = vpop.f32.mrf.mxu0
    %2828 = vdwg.mxu0
    %v2829 = vadd.f32 %v2746, %v2826
    %s2830 = scalar_lea.vmem [#allocation2], 576
    %v2831 = vld [vmem:[%s2830] sm:$0xff]
    %v2832 = vld [vmem:[%s2830 + $0x8] sm:$0xff]
    %v2833 = vld [vmem:[%s2830 + $0x10] sm:$0xff]
    %v2834 = vld [vmem:[%s2830 + $0x18] sm:$0xff]
    %v2835 = vld [vmem:[%s2830 + $0x20] sm:$0xff]
    %v2836 = vld [vmem:[%s2830 + $0x28] sm:$0xff]
    %v2837 = vld [vmem:[%s2830 + $0x30] sm:$0xff]
    %v2838 = vld [vmem:[%s2830 + $0x38] sm:$0xff]
    %v2839 = vrot.slane %v2075, 7
    %v2840 = vsel %vm2091, %v2839, 0
    %2842 = vmatprep.subr.mxu0 0.0
    %2843 = vmatpush1.msra.mxu0 0.0
    %2844 = vmatprep.subr.mxu0 0.0
    %2845 = vmatpush1.msra.mxu0 0.0
    %2846 = vmatprep.subr.mxu0 0.0
    %2847 = vmatpush1.msra.mxu0 0.0
    %2848 = vmatprep.subr.mxu0 0.0
    %2849 = vmatpush1.msra.mxu0 0.0
    %2850 = vmatprep.subr.mxu0 0.0
    %2851 = vmatpush1.msra.mxu0 0.0
    %2852 = vmatprep.subr.mxu0 0.0
    %2853 = vmatpush1.msra.mxu0 0.0
    %2854 = vmatprep.subr.mxu0 0.0
    %2855 = vmatpush1.msra.mxu0 0.0
    %2856 = vmatprep.subr.mxu0 0.0
    %2857 = vmatpush1.msra.mxu0 0.0
    %2858 = vmatprep.subr.mxu0 0.0
    %2859 = vmatpush1.msra.mxu0 %v2838
    %2860 = vmatprep.subr.mxu0 0.0
    %2861 = vmatpush1.msra.mxu0 %v2837
    %2862 = vmatprep.subr.mxu0 0.0
    %2863 = vmatpush1.msra.mxu0 %v2836
    %2864 = vmatprep.subr.mxu0 0.0
    %2865 = vmatpush1.msra.mxu0 %v2835
    %2866 = vmatprep.subr.mxu0 0.0
    %2867 = vmatpush1.msra.mxu0 %v2834
    %2868 = vmatprep.subr.mxu0 0.0
    %2869 = vmatpush1.msra.mxu0 %v2833
    %2870 = vmatprep.subr.mxu0 0.0
    %2871 = vmatpush1.msra.mxu0 %v2832
    %2872 = vmatprep.subr.mxu0 0.0
    %2873 = vmatpush1.msra.mxu0 %v2831
    %2874 = vmatprep.subr.mxu0 0.0
    %2875 = vmatpush2.msra.mxu0 0.0
    %2876 = vmatprep.subr.mxu0 0.0
    %2877 = vmatpush2.msra.mxu0 0.0
    %2878 = vmatprep.subr.mxu0 0.0
    %2879 = vmatpush2.msra.mxu0 0.0
    %2880 = vmatprep.subr.mxu0 0.0
    %2881 = vmatpush2.msra.mxu0 0.0
    %2882 = vmatprep.subr.mxu0 0.0
    %2883 = vmatpush2.msra.mxu0 0.0
    %2884 = vmatprep.subr.mxu0 0.0
    %2885 = vmatpush2.msra.mxu0 0.0
    %2886 = vmatprep.subr.mxu0 0.0
    %2887 = vmatpush2.msra.mxu0 0.0
    %2888 = vmatprep.subr.mxu0 0.0
    %2889 = vmatpush2.msra.mxu0 0.0
    %2890 = vmatprep.subr.mxu0 0.0
    %2891 = vmatpush2.msra.mxu0 0.0
    %2892 = vmatprep.subr.mxu0 0.0
    %2893 = vmatpush2.msra.mxu0 0.0
    %2894 = vmatprep.subr.mxu0 0.0
    %2895 = vmatpush2.msra.mxu0 0.0
    %2896 = vmatprep.subr.mxu0 0.0
    %2897 = vmatpush2.msra.mxu0 0.0
    %2898 = vmatprep.subr.mxu0 0.0
    %2899 = vmatpush2.msra.mxu0 0.0
    %2900 = vmatprep.subr.mxu0 0.0
    %2901 = vmatpush2.msra.mxu0 0.0
    %2902 = vmatprep.subr.mxu0 0.0
    %2903 = vmatpush2.msra.mxu0 0.0
    %2904 = vmatprep.subr.mxu0 0.0
    %2905 = vmatpush2.msra.mxu0 0.0
    %2906 = vmatprep.mubr.f32.mxu0 0.0
    %2907 = vmatmul.mubr.f32.gmra.mxu0 %v2840
    %v2908 = vpop.f32.mrf.mxu0
    %v2909 = vadd.f32 0.0, %v2908
    %v2910 = vpop.f32.mrf.mxu0
    %2911 = vdwg.mxu0
    %v2912 = vadd.f32 %v2829, %v2909
    %s2913 = scalar_lea.vmem [#allocation2], 640
    %v2914 = vld [vmem:[%s2913] sm:$0xff]
    %v2915 = vld [vmem:[%s2913 + $0x8] sm:$0xff]
    %v2916 = vld [vmem:[%s2913 + $0x10] sm:$0xff]
    %v2917 = vld [vmem:[%s2913 + $0x18] sm:$0xff]
    %v2918 = vld [vmem:[%s2913 + $0x20] sm:$0xff]
    %v2919 = vld [vmem:[%s2913 + $0x28] sm:$0xff]
    %v2920 = vld [vmem:[%s2913 + $0x30] sm:$0xff]
    %v2921 = vld [vmem:[%s2913 + $0x38] sm:$0xff]
    %v2923 = vsel %vm2091, %v2076, 0
    %2925 = vmatprep.subr.mxu0 0.0
    %2926 = vmatpush1.msra.mxu0 0.0
    %2927 = vmatprep.subr.mxu0 0.0
    %2928 = vmatpush1.msra.mxu0 0.0
    %2929 = vmatprep.subr.mxu0 0.0
    %2930 = vmatpush1.msra.mxu0 0.0
    %2931 = vmatprep.subr.mxu0 0.0
    %2932 = vmatpush1.msra.mxu0 0.0
    %2933 = vmatprep.subr.mxu0 0.0
    %2934 = vmatpush1.msra.mxu0 0.0
    %2935 = vmatprep.subr.mxu0 0.0
    %2936 = vmatpush1.msra.mxu0 0.0
    %2937 = vmatprep.subr.mxu0 0.0
    %2938 = vmatpush1.msra.mxu0 0.0
    %2939 = vmatprep.subr.mxu0 0.0
    %2940 = vmatpush1.msra.mxu0 0.0
    %2941 = vmatprep.subr.mxu0 0.0
    %2942 = vmatpush1.msra.mxu0 %v2921
    %2943 = vmatprep.subr.mxu0 0.0
    %2944 = vmatpush1.msra.mxu0 %v2920
    %2945 = vmatprep.subr.mxu0 0.0
    %2946 = vmatpush1.msra.mxu0 %v2919
    %2947 = vmatprep.subr.mxu0 0.0
    %2948 = vmatpush1.msra.mxu0 %v2918
    %2949 = vmatprep.subr.mxu0 0.0
    %2950 = vmatpush1.msra.mxu0 %v2917
    %2951 = vmatprep.subr.mxu0 0.0
    %2952 = vmatpush1.msra.mxu0 %v2916
    %2953 = vmatprep.subr.mxu0 0.0
    %2954 = vmatpush1.msra.mxu0 %v2915
    %2955 = vmatprep.subr.mxu0 0.0
    %2956 = vmatpush1.msra.mxu0 %v2914
    %2957 = vmatprep.subr.mxu0 0.0
    %2958 = vmatpush2.msra.mxu0 0.0
    %2959 = vmatprep.subr.mxu0 0.0
    %2960 = vmatpush2.msra.mxu0 0.0
    %2961 = vmatprep.subr.mxu0 0.0
    %2962 = vmatpush2.msra.mxu0 0.0
    %2963 = vmatprep.subr.mxu0 0.0
    %2964 = vmatpush2.msra.mxu0 0.0
    %2965 = vmatprep.subr.mxu0 0.0
    %2966 = vmatpush2.msra.mxu0 0.0
    %2967 = vmatprep.subr.mxu0 0.0
    %2968 = vmatpush2.msra.mxu0 0.0
    %2969 = vmatprep.subr.mxu0 0.0
    %2970 = vmatpush2.msra.mxu0 0.0
    %2971 = vmatprep.subr.mxu0 0.0
    %2972 = vmatpush2.msra.mxu0 0.0
    %2973 = vmatprep.subr.mxu0 0.0
    %2974 = vmatpush2.msra.mxu0 0.0
    %2975 = vmatprep.subr.mxu0 0.0
    %2976 = vmatpush2.msra.mxu0 0.0
    %2977 = vmatprep.subr.mxu0 0.0
    %2978 = vmatpush2.msra.mxu0 0.0
    %2979 = vmatprep.subr.mxu0 0.0
    %2980 = vmatpush2.msra.mxu0 0.0
    %2981 = vmatprep.subr.mxu0 0.0
    %2982 = vmatpush2.msra.mxu0 0.0
    %2983 = vmatprep.subr.mxu0 0.0
    %2984 = vmatpush2.msra.mxu0 0.0
    %2985 = vmatprep.subr.mxu0 0.0
    %2986 = vmatpush2.msra.mxu0 0.0
    %2987 = vmatprep.subr.mxu0 0.0
    %2988 = vmatpush2.msra.mxu0 0.0
    %2989 = vmatprep.mubr.f32.mxu0 0.0
    %2990 = vmatmul.mubr.f32.gmra.mxu0 %v2923
    %v2991 = vpop.f32.mrf.mxu0
    %v2992 = vadd.f32 0.0, %v2991
    %v2993 = vpop.f32.mrf.mxu0
    %2994 = vdwg.mxu0
    %v2995 = vadd.f32 %v2912, %v2992
    %s2996 = scalar_lea.vmem [#allocation2], 704
    %v2997 = vld [vmem:[%s2996] sm:$0xff]
    %v2998 = vld [vmem:[%s2996 + $0x8] sm:$0xff]
    %v2999 = vld [vmem:[%s2996 + $0x10] sm:$0xff]
    %v3000 = vld [vmem:[%s2996 + $0x18] sm:$0xff]
    %v3001 = vld [vmem:[%s2996 + $0x20] sm:$0xff]
    %v3002 = vld [vmem:[%s2996 + $0x28] sm:$0xff]
    %v3003 = vld [vmem:[%s2996 + $0x30] sm:$0xff]
    %v3004 = vld [vmem:[%s2996 + $0x38] sm:$0xff]
    %v3005 = vrot.slane %v2076, 1
    %v3006 = vsel %vm2091, %v3005, 0
    %3008 = vmatprep.subr.mxu0 0.0
    %3009 = vmatpush1.msra.mxu0 0.0
    %3010 = vmatprep.subr.mxu0 0.0
    %3011 = vmatpush1.msra.mxu0 0.0
    %3012 = vmatprep.subr.mxu0 0.0
    %3013 = vmatpush1.msra.mxu0 0.0
    %3014 = vmatprep.subr.mxu0 0.0
    %3015 = vmatpush1.msra.mxu0 0.0
    %3016 = vmatprep.subr.mxu0 0.0
    %3017 = vmatpush1.msra.mxu0 0.0
    %3018 = vmatprep.subr.mxu0 0.0
    %3019 = vmatpush1.msra.mxu0 0.0
    %3020 = vmatprep.subr.mxu0 0.0
    %3021 = vmatpush1.msra.mxu0 0.0
    %3022 = vmatprep.subr.mxu0 0.0
    %3023 = vmatpush1.msra.mxu0 0.0
    %3024 = vmatprep.subr.mxu0 0.0
    %3025 = vmatpush1.msra.mxu0 %v3004
    %3026 = vmatprep.subr.mxu0 0.0
    %3027 = vmatpush1.msra.mxu0 %v3003
    %3028 = vmatprep.subr.mxu0 0.0
    %3029 = vmatpush1.msra.mxu0 %v3002
    %3030 = vmatprep.subr.mxu0 0.0
    %3031 = vmatpush1.msra.mxu0 %v3001
    %3032 = vmatprep.subr.mxu0 0.0
    %3033 = vmatpush1.msra.mxu0 %v3000
    %3034 = vmatprep.subr.mxu0 0.0
    %3035 = vmatpush1.msra.mxu0 %v2999
    %3036 = vmatprep.subr.mxu0 0.0
    %3037 = vmatpush1.msra.mxu0 %v2998
    %3038 = vmatprep.subr.mxu0 0.0
    %3039 = vmatpush1.msra.mxu0 %v2997
    %3040 = vmatprep.subr.mxu0 0.0
    %3041 = vmatpush2.msra.mxu0 0.0
    %3042 = vmatprep.subr.mxu0 0.0
    %3043 = vmatpush2.msra.mxu0 0.0
    %3044 = vmatprep.subr.mxu0 0.0
    %3045 = vmatpush2.msra.mxu0 0.0
    %3046 = vmatprep.subr.mxu0 0.0
    %3047 = vmatpush2.msra.mxu0 0.0
    %3048 = vmatprep.subr.mxu0 0.0
    %3049 = vmatpush2.msra.mxu0 0.0
    %3050 = vmatprep.subr.mxu0 0.0
    %3051 = vmatpush2.msra.mxu0 0.0
    %3052 = vmatprep.subr.mxu0 0.0
    %3053 = vmatpush2.msra.mxu0 0.0
    %3054 = vmatprep.subr.mxu0 0.0
    %3055 = vmatpush2.msra.mxu0 0.0
    %3056 = vmatprep.subr.mxu0 0.0
    %3057 = vmatpush2.msra.mxu0 0.0
    %3058 = vmatprep.subr.mxu0 0.0
    %3059 = vmatpush2.msra.mxu0 0.0
    %3060 = vmatprep.subr.mxu0 0.0
    %3061 = vmatpush2.msra.mxu0 0.0
    %3062 = vmatprep.subr.mxu0 0.0
    %3063 = vmatpush2.msra.mxu0 0.0
    %3064 = vmatprep.subr.mxu0 0.0
    %3065 = vmatpush2.msra.mxu0 0.0
    %3066 = vmatprep.subr.mxu0 0.0
    %3067 = vmatpush2.msra.mxu0 0.0
    %3068 = vmatprep.subr.mxu0 0.0
    %3069 = vmatpush2.msra.mxu0 0.0
    %3070 = vmatprep.subr.mxu0 0.0
    %3071 = vmatpush2.msra.mxu0 0.0
    %3072 = vmatprep.mubr.f32.mxu0 0.0
    %3073 = vmatmul.mubr.f32.gmra.mxu0 %v3006
    %v3074 = vpop.f32.mrf.mxu0
    %v3075 = vadd.f32 0.0, %v3074
    %v3076 = vpop.f32.mrf.mxu0
    %3077 = vdwg.mxu0
    %v3078 = vadd.f32 %v2995, %v3075
    %s3079 = scalar_lea.vmem [#allocation2], 768
    %v3080 = vld [vmem:[%s3079] sm:$0xff]
    %v3081 = vld [vmem:[%s3079 + $0x8] sm:$0xff]
    %v3082 = vld [vmem:[%s3079 + $0x10] sm:$0xff]
    %v3083 = vld [vmem:[%s3079 + $0x18] sm:$0xff]
    %v3084 = vld [vmem:[%s3079 + $0x20] sm:$0xff]
    %v3085 = vld [vmem:[%s3079 + $0x28] sm:$0xff]
    %v3086 = vld [vmem:[%s3079 + $0x30] sm:$0xff]
    %v3087 = vld [vmem:[%s3079 + $0x38] sm:$0xff]
    %v3088 = vrot.slane %v2076, 5
    %v3089 = vsel %vm2091, %v3088, 0
    %3091 = vmatprep.subr.mxu0 0.0
    %3092 = vmatpush1.msra.mxu0 0.0
    %3093 = vmatprep.subr.mxu0 0.0
    %3094 = vmatpush1.msra.mxu0 0.0
    %3095 = vmatprep.subr.mxu0 0.0
    %3096 = vmatpush1.msra.mxu0 0.0
    %3097 = vmatprep.subr.mxu0 0.0
    %3098 = vmatpush1.msra.mxu0 0.0
    %3099 = vmatprep.subr.mxu0 0.0
    %3100 = vmatpush1.msra.mxu0 0.0
    %3101 = vmatprep.subr.mxu0 0.0
    %3102 = vmatpush1.msra.mxu0 0.0
    %3103 = vmatprep.subr.mxu0 0.0
    %3104 = vmatpush1.msra.mxu0 0.0
    %3105 = vmatprep.subr.mxu0 0.0
    %3106 = vmatpush1.msra.mxu0 0.0
    %3107 = vmatprep.subr.mxu0 0.0
    %3108 = vmatpush1.msra.mxu0 %v3087
    %3109 = vmatprep.subr.mxu0 0.0
    %3110 = vmatpush1.msra.mxu0 %v3086
    %3111 = vmatprep.subr.mxu0 0.0
    %3112 = vmatpush1.msra.mxu0 %v3085
    %3113 = vmatprep.subr.mxu0 0.0
    %3114 = vmatpush1.msra.mxu0 %v3084
    %3115 = vmatprep.subr.mxu0 0.0
    %3116 = vmatpush1.msra.mxu0 %v3083
    %3117 = vmatprep.subr.mxu0 0.0
    %3118 = vmatpush1.msra.mxu0 %v3082
    %3119 = vmatprep.subr.mxu0 0.0
    %3120 = vmatpush1.msra.mxu0 %v3081
    %3121 = vmatprep.subr.mxu0 0.0
    %3122 = vmatpush1.msra.mxu0 %v3080
    %3123 = vmatprep.subr.mxu0 0.0
    %3124 = vmatpush2.msra.mxu0 0.0
    %3125 = vmatprep.subr.mxu0 0.0
    %3126 = vmatpush2.msra.mxu0 0.0
    %3127 = vmatprep.subr.mxu0 0.0
    %3128 = vmatpush2.msra.mxu0 0.0
    %3129 = vmatprep.subr.mxu0 0.0
    %3130 = vmatpush2.msra.mxu0 0.0
    %3131 = vmatprep.subr.mxu0 0.0
    %3132 = vmatpush2.msra.mxu0 0.0
    %3133 = vmatprep.subr.mxu0 0.0
    %3134 = vmatpush2.msra.mxu0 0.0
    %3135 = vmatprep.subr.mxu0 0.0
    %3136 = vmatpush2.msra.mxu0 0.0
    %3137 = vmatprep.subr.mxu0 0.0
    %3138 = vmatpush2.msra.mxu0 0.0
    %3139 = vmatprep.subr.mxu0 0.0
    %3140 = vmatpush2.msra.mxu0 0.0
    %3141 = vmatprep.subr.mxu0 0.0
    %3142 = vmatpush2.msra.mxu0 0.0
    %3143 = vmatprep.subr.mxu0 0.0
    %3144 = vmatpush2.msra.mxu0 0.0
    %3145 = vmatprep.subr.mxu0 0.0
    %3146 = vmatpush2.msra.mxu0 0.0
    %3147 = vmatprep.subr.mxu0 0.0
    %3148 = vmatpush2.msra.mxu0 0.0
    %3149 = vmatprep.subr.mxu0 0.0
    %3150 = vmatpush2.msra.mxu0 0.0
    %3151 = vmatprep.subr.mxu0 0.0
    %3152 = vmatpush2.msra.mxu0 0.0
    %3153 = vmatprep.subr.mxu0 0.0
    %3154 = vmatpush2.msra.mxu0 0.0
    %3155 = vmatprep.mubr.f32.mxu0 0.0
    %3156 = vmatmul.mubr.f32.gmra.mxu0 %v3089
    %v3157 = vpop.f32.mrf.mxu0
    %v3158 = vadd.f32 0.0, %v3157
    %v3159 = vpop.f32.mrf.mxu0
    %3160 = vdwg.mxu0
    %v3161 = vadd.f32 %v3078, %v3158
    %s3162 = scalar_lea.vmem [#allocation2], 832
    %v3163 = vld [vmem:[%s3162] sm:$0xff]
    %v3164 = vld [vmem:[%s3162 + $0x8] sm:$0xff]
    %v3165 = vld [vmem:[%s3162 + $0x10] sm:$0xff]
    %v3166 = vld [vmem:[%s3162 + $0x18] sm:$0xff]
    %v3167 = vld [vmem:[%s3162 + $0x20] sm:$0xff]
    %v3168 = vld [vmem:[%s3162 + $0x28] sm:$0xff]
    %v3169 = vld [vmem:[%s3162 + $0x30] sm:$0xff]
    %v3170 = vld [vmem:[%s3162 + $0x38] sm:$0xff]
    %v3171 = vrot.slane %v2076, 6
    %v3172 = vsel %vm2091, %v3171, 0
    %3174 = vmatprep.subr.mxu0 0.0
    %3175 = vmatpush1.msra.mxu0 0.0
    %3176 = vmatprep.subr.mxu0 0.0
    %3177 = vmatpush1.msra.mxu0 0.0
    %3178 = vmatprep.subr.mxu0 0.0
    %3179 = vmatpush1.msra.mxu0 0.0
    %3180 = vmatprep.subr.mxu0 0.0
    %3181 = vmatpush1.msra.mxu0 0.0
    %3182 = vmatprep.subr.mxu0 0.0
    %3183 = vmatpush1.msra.mxu0 0.0
    %3184 = vmatprep.subr.mxu0 0.0
    %3185 = vmatpush1.msra.mxu0 0.0
    %3186 = vmatprep.subr.mxu0 0.0
    %3187 = vmatpush1.msra.mxu0 0.0
    %3188 = vmatprep.subr.mxu0 0.0
    %3189 = vmatpush1.msra.mxu0 0.0
    %3190 = vmatprep.subr.mxu0 0.0
    %3191 = vmatpush1.msra.mxu0 %v3170
    %3192 = vmatprep.subr.mxu0 0.0
    %3193 = vmatpush1.msra.mxu0 %v3169
    %3194 = vmatprep.subr.mxu0 0.0
    %3195 = vmatpush1.msra.mxu0 %v3168
    %3196 = vmatprep.subr.mxu0 0.0
    %3197 = vmatpush1.msra.mxu0 %v3167
    %3198 = vmatprep.subr.mxu0 0.0
    %3199 = vmatpush1.msra.mxu0 %v3166
    %3200 = vmatprep.subr.mxu0 0.0
    %3201 = vmatpush1.msra.mxu0 %v3165
    %3202 = vmatprep.subr.mxu0 0.0
    %3203 = vmatpush1.msra.mxu0 %v3164
    %3204 = vmatprep.subr.mxu0 0.0
    %3205 = vmatpush1.msra.mxu0 %v3163
    %3206 = vmatprep.subr.mxu0 0.0
    %3207 = vmatpush2.msra.mxu0 0.0
    %3208 = vmatprep.subr.mxu0 0.0
    %3209 = vmatpush2.msra.mxu0 0.0
    %3210 = vmatprep.subr.mxu0 0.0
    %3211 = vmatpush2.msra.mxu0 0.0
    %3212 = vmatprep.subr.mxu0 0.0
    %3213 = vmatpush2.msra.mxu0 0.0
    %3214 = vmatprep.subr.mxu0 0.0
    %3215 = vmatpush2.msra.mxu0 0.0
    %3216 = vmatprep.subr.mxu0 0.0
    %3217 = vmatpush2.msra.mxu0 0.0
    %3218 = vmatprep.subr.mxu0 0.0
    %3219 = vmatpush2.msra.mxu0 0.0
    %3220 = vmatprep.subr.mxu0 0.0
    %3221 = vmatpush2.msra.mxu0 0.0
    %3222 = vmatprep.subr.mxu0 0.0
    %3223 = vmatpush2.msra.mxu0 0.0
    %3224 = vmatprep.subr.mxu0 0.0
    %3225 = vmatpush2.msra.mxu0 0.0
    %3226 = vmatprep.subr.mxu0 0.0
    %3227 = vmatpush2.msra.mxu0 0.0
    %3228 = vmatprep.subr.mxu0 0.0
    %3229 = vmatpush2.msra.mxu0 0.0
    %3230 = vmatprep.subr.mxu0 0.0
    %3231 = vmatpush2.msra.mxu0 0.0
    %3232 = vmatprep.subr.mxu0 0.0
    %3233 = vmatpush2.msra.mxu0 0.0
    %3234 = vmatprep.subr.mxu0 0.0
    %3235 = vmatpush2.msra.mxu0 0.0
    %3236 = vmatprep.subr.mxu0 0.0
    %3237 = vmatpush2.msra.mxu0 0.0
    %3238 = vmatprep.mubr.f32.mxu0 0.0
    %3239 = vmatmul.mubr.f32.gmra.mxu0 %v3172
    %v3240 = vpop.f32.mrf.mxu0
    %v3241 = vadd.f32 0.0, %v3240
    %v3242 = vpop.f32.mrf.mxu0
    %3243 = vdwg.mxu0
    %v3244 = vadd.f32 %v3161, %v3241
    %s3245 = scalar_lea.vmem [#allocation2], 896
    %v3246 = vld [vmem:[%s3245] sm:$0xff]
    %v3247 = vld [vmem:[%s3245 + $0x8] sm:$0xff]
    %v3248 = vld [vmem:[%s3245 + $0x10] sm:$0xff]
    %v3249 = vld [vmem:[%s3245 + $0x18] sm:$0xff]
    %v3250 = vld [vmem:[%s3245 + $0x20] sm:$0xff]
    %v3251 = vld [vmem:[%s3245 + $0x28] sm:$0xff]
    %v3252 = vld [vmem:[%s3245 + $0x30] sm:$0xff]
    %v3253 = vld [vmem:[%s3245 + $0x38] sm:$0xff]
    %v3254 = vrot.slane %v2076, 7
    %v3255 = vsel %vm2091, %v3254, 0
    %3257 = vmatprep.subr.mxu0 0.0
    %3258 = vmatpush1.msra.mxu0 0.0
    %3259 = vmatprep.subr.mxu0 0.0
    %3260 = vmatpush1.msra.mxu0 0.0
    %3261 = vmatprep.subr.mxu0 0.0
    %3262 = vmatpush1.msra.mxu0 0.0
    %3263 = vmatprep.subr.mxu0 0.0
    %3264 = vmatpush1.msra.mxu0 0.0
    %3265 = vmatprep.subr.mxu0 0.0
    %3266 = vmatpush1.msra.mxu0 0.0
    %3267 = vmatprep.subr.mxu0 0.0
    %3268 = vmatpush1.msra.mxu0 0.0
    %3269 = vmatprep.subr.mxu0 0.0
    %3270 = vmatpush1.msra.mxu0 0.0
    %3271 = vmatprep.subr.mxu0 0.0
    %3272 = vmatpush1.msra.mxu0 0.0
    %3273 = vmatprep.subr.mxu0 0.0
    %3274 = vmatpush1.msra.mxu0 %v3253
    %3275 = vmatprep.subr.mxu0 0.0
    %3276 = vmatpush1.msra.mxu0 %v3252
    %3277 = vmatprep.subr.mxu0 0.0
    %3278 = vmatpush1.msra.mxu0 %v3251
    %3279 = vmatprep.subr.mxu0 0.0
    %3280 = vmatpush1.msra.mxu0 %v3250
    %3281 = vmatprep.subr.mxu0 0.0
    %3282 = vmatpush1.msra.mxu0 %v3249
    %3283 = vmatprep.subr.mxu0 0.0
    %3284 = vmatpush1.msra.mxu0 %v3248
    %3285 = vmatprep.subr.mxu0 0.0
    %3286 = vmatpush1.msra.mxu0 %v3247
    %3287 = vmatprep.subr.mxu0 0.0
    %3288 = vmatpush1.msra.mxu0 %v3246
    %3289 = vmatprep.subr.mxu0 0.0
    %3290 = vmatpush2.msra.mxu0 0.0
    %3291 = vmatprep.subr.mxu0 0.0
    %3292 = vmatpush2.msra.mxu0 0.0
    %3293 = vmatprep.subr.mxu0 0.0
    %3294 = vmatpush2.msra.mxu0 0.0
    %3295 = vmatprep.subr.mxu0 0.0
    %3296 = vmatpush2.msra.mxu0 0.0
    %3297 = vmatprep.subr.mxu0 0.0
    %3298 = vmatpush2.msra.mxu0 0.0
    %3299 = vmatprep.subr.mxu0 0.0
    %3300 = vmatpush2.msra.mxu0 0.0
    %3301 = vmatprep.subr.mxu0 0.0
    %3302 = vmatpush2.msra.mxu0 0.0
    %3303 = vmatprep.subr.mxu0 0.0
    %3304 = vmatpush2.msra.mxu0 0.0
    %3305 = vmatprep.subr.mxu0 0.0
    %3306 = vmatpush2.msra.mxu0 0.0
    %3307 = vmatprep.subr.mxu0 0.0
    %3308 = vmatpush2.msra.mxu0 0.0
    %3309 = vmatprep.subr.mxu0 0.0
    %3310 = vmatpush2.msra.mxu0 0.0
    %3311 = vmatprep.subr.mxu0 0.0
    %3312 = vmatpush2.msra.mxu0 0.0
    %3313 = vmatprep.subr.mxu0 0.0
    %3314 = vmatpush2.msra.mxu0 0.0
    %3315 = vmatprep.subr.mxu0 0.0
    %3316 = vmatpush2.msra.mxu0 0.0
    %3317 = vmatprep.subr.mxu0 0.0
    %3318 = vmatpush2.msra.mxu0 0.0
    %3319 = vmatprep.subr.mxu0 0.0
    %3320 = vmatpush2.msra.mxu0 0.0
    %3321 = vmatprep.mubr.f32.mxu0 0.0
    %3322 = vmatmul.mubr.f32.gmra.mxu0 %v3255
    %v3323 = vpop.f32.mrf.mxu0
    %v3324 = vadd.f32 0.0, %v3323
    %v3325 = vpop.f32.mrf.mxu0
    %3326 = vdwg.mxu0
    %v3327 = vadd.f32 %v3244, %v3324
    %s3328 = scalar_lea.vmem [#allocation2], 960
    %v3329 = vld [vmem:[%s3328] sm:$0xff]
    %v3330 = vld [vmem:[%s3328 + $0x8] sm:$0xff]
    %v3331 = vld [vmem:[%s3328 + $0x10] sm:$0xff]
    %v3332 = vld [vmem:[%s3328 + $0x18] sm:$0xff]
    %v3333 = vld [vmem:[%s3328 + $0x20] sm:$0xff]
    %v3334 = vld [vmem:[%s3328 + $0x28] sm:$0xff]
    %v3335 = vld [vmem:[%s3328 + $0x30] sm:$0xff]
    %v3336 = vld [vmem:[%s3328 + $0x38] sm:$0xff]
    %v3338 = vsel %vm2091, %v2077, 0
    %3340 = vmatprep.subr.mxu0 0.0
    %3341 = vmatpush1.msra.mxu0 0.0
    %3342 = vmatprep.subr.mxu0 0.0
    %3343 = vmatpush1.msra.mxu0 0.0
    %3344 = vmatprep.subr.mxu0 0.0
    %3345 = vmatpush1.msra.mxu0 0.0
    %3346 = vmatprep.subr.mxu0 0.0
    %3347 = vmatpush1.msra.mxu0 0.0
    %3348 = vmatprep.subr.mxu0 0.0
    %3349 = vmatpush1.msra.mxu0 0.0
    %3350 = vmatprep.subr.mxu0 0.0
    %3351 = vmatpush1.msra.mxu0 0.0
    %3352 = vmatprep.subr.mxu0 0.0
    %3353 = vmatpush1.msra.mxu0 0.0
    %3354 = vmatprep.subr.mxu0 0.0
    %3355 = vmatpush1.msra.mxu0 0.0
    %3356 = vmatprep.subr.mxu0 0.0
    %3357 = vmatpush1.msra.mxu0 %v3336
    %3358 = vmatprep.subr.mxu0 0.0
    %3359 = vmatpush1.msra.mxu0 %v3335
    %3360 = vmatprep.subr.mxu0 0.0
    %3361 = vmatpush1.msra.mxu0 %v3334
    %3362 = vmatprep.subr.mxu0 0.0
    %3363 = vmatpush1.msra.mxu0 %v3333
    %3364 = vmatprep.subr.mxu0 0.0
    %3365 = vmatpush1.msra.mxu0 %v3332
    %3366 = vmatprep.subr.mxu0 0.0
    %3367 = vmatpush1.msra.mxu0 %v3331
    %3368 = vmatprep.subr.mxu0 0.0
    %3369 = vmatpush1.msra.mxu0 %v3330
    %3370 = vmatprep.subr.mxu0 0.0
    %3371 = vmatpush1.msra.mxu0 %v3329
    %3372 = vmatprep.subr.mxu0 0.0
    %3373 = vmatpush2.msra.mxu0 0.0
    %3374 = vmatprep.subr.mxu0 0.0
    %3375 = vmatpush2.msra.mxu0 0.0
    %3376 = vmatprep.subr.mxu0 0.0
    %3377 = vmatpush2.msra.mxu0 0.0
    %3378 = vmatprep.subr.mxu0 0.0
    %3379 = vmatpush2.msra.mxu0 0.0
    %3380 = vmatprep.subr.mxu0 0.0
    %3381 = vmatpush2.msra.mxu0 0.0
    %3382 = vmatprep.subr.mxu0 0.0
    %3383 = vmatpush2.msra.mxu0 0.0
    %3384 = vmatprep.subr.mxu0 0.0
    %3385 = vmatpush2.msra.mxu0 0.0
    %3386 = vmatprep.subr.mxu0 0.0
    %3387 = vmatpush2.msra.mxu0 0.0
    %3388 = vmatprep.subr.mxu0 0.0
    %3389 = vmatpush2.msra.mxu0 0.0
    %3390 = vmatprep.subr.mxu0 0.0
    %3391 = vmatpush2.msra.mxu0 0.0
    %3392 = vmatprep.subr.mxu0 0.0
    %3393 = vmatpush2.msra.mxu0 0.0
    %3394 = vmatprep.subr.mxu0 0.0
    %3395 = vmatpush2.msra.mxu0 0.0
    %3396 = vmatprep.subr.mxu0 0.0
    %3397 = vmatpush2.msra.mxu0 0.0
    %3398 = vmatprep.subr.mxu0 0.0
    %3399 = vmatpush2.msra.mxu0 0.0
    %3400 = vmatprep.subr.mxu0 0.0
    %3401 = vmatpush2.msra.mxu0 0.0
    %3402 = vmatprep.subr.mxu0 0.0
    %3403 = vmatpush2.msra.mxu0 0.0
    %3404 = vmatprep.mubr.f32.mxu0 0.0
    %3405 = vmatmul.mubr.f32.gmra.mxu0 %v3338
    %v3406 = vpop.f32.mrf.mxu0
    %v3407 = vadd.f32 0.0, %v3406
    %v3408 = vpop.f32.mrf.mxu0
    %3409 = vdwg.mxu0
    %v3410 = vadd.f32 %v3327, %v3407
    %v3411 = vmax.f32 %v3410, 0.0
    %v3412 = vld [vmem:[%s9] sm:$0xff]
    %v3413 = vld [vmem:[%s9 + $0x8] sm:$0xff]
    %v3414 = vld [vmem:[%s9 + $0x10] sm:$0xff]
    %v3415 = vld [vmem:[%s9 + $0x18] sm:$0xff]
    %v3416 = vld [vmem:[%s9 + $0x20] sm:$0xff]
    %v3417 = vld [vmem:[%s9 + $0x28] sm:$0xff]
    %v3418 = vld [vmem:[%s9 + $0x30] sm:$0xff]
    %v3419 = vld [vmem:[%s9 + $0x38] sm:$0xff]
    %v3420 = vld [vmem:[%s9 + $0x40] sm:$0xff]
    %v3421 = vld [vmem:[%s9 + $0x48] sm:$0xff]
    %v3422 = vld [vmem:[%s9 + $0x50] sm:$0xff]
    %v3423 = vld [vmem:[%s9 + $0x58] sm:$0xff]
    %v3424 = vld [vmem:[%s9 + $0x60] sm:$0xff]
    %v3425 = vld [vmem:[%s9 + $0x68] sm:$0xff]
    %v3426 = vld [vmem:[%s9 + $0x70] sm:$0xff]
    %v3427 = vld [vmem:[%s9 + $0x78] sm:$0xff]
    %v3428 = vld [vmem:[%s10] sm:$0x1]
    %3429 = vmatprep.subr.mxu0 0.0
    %3430 = vmatpush1.msra.mxu0 %v3427
    %3431 = vmatprep.subr.mxu0 0.0
    %3432 = vmatpush1.msra.mxu0 %v3426
    %3433 = vmatprep.subr.mxu0 0.0
    %3434 = vmatpush1.msra.mxu0 %v3425
    %3435 = vmatprep.subr.mxu0 0.0
    %3436 = vmatpush1.msra.mxu0 %v3424
    %3437 = vmatprep.subr.mxu0 0.0
    %3438 = vmatpush1.msra.mxu0 %v3423
    %3439 = vmatprep.subr.mxu0 0.0
    %3440 = vmatpush1.msra.mxu0 %v3422
    %3441 = vmatprep.subr.mxu0 0.0
    %3442 = vmatpush1.msra.mxu0 %v3421
    %3443 = vmatprep.subr.mxu0 0.0
    %3444 = vmatpush1.msra.mxu0 %v3420
    %3445 = vmatprep.subr.mxu0 0.0
    %3446 = vmatpush1.msra.mxu0 %v3419
    %3447 = vmatprep.subr.mxu0 0.0
    %3448 = vmatpush1.msra.mxu0 %v3418
    %3449 = vmatprep.subr.mxu0 0.0
    %3450 = vmatpush1.msra.mxu0 %v3417
    %3451 = vmatprep.subr.mxu0 0.0
    %3452 = vmatpush1.msra.mxu0 %v3416
    %3453 = vmatprep.subr.mxu0 0.0
    %3454 = vmatpush1.msra.mxu0 %v3415
    %3455 = vmatprep.subr.mxu0 0.0
    %3456 = vmatpush1.msra.mxu0 %v3414
    %3457 = vmatprep.subr.mxu0 0.0
    %3458 = vmatpush1.msra.mxu0 %v3413
    %3459 = vmatprep.subr.mxu0 0.0
    %3460 = vmatpush1.msra.mxu0 %v3412
    %3461 = vmatprep.subr.mxu0 0.0
    %3462 = vmatpush2.msra.mxu0 0.0
    %3463 = vmatprep.subr.mxu0 0.0
    %3464 = vmatpush2.msra.mxu0 0.0
    %3465 = vmatprep.subr.mxu0 0.0
    %3466 = vmatpush2.msra.mxu0 0.0
    %3467 = vmatprep.subr.mxu0 0.0
    %3468 = vmatpush2.msra.mxu0 0.0
    %3469 = vmatprep.subr.mxu0 0.0
    %3470 = vmatpush2.msra.mxu0 0.0
    %3471 = vmatprep.subr.mxu0 0.0
    %3472 = vmatpush2.msra.mxu0 0.0
    %3473 = vmatprep.subr.mxu0 0.0
    %3474 = vmatpush2.msra.mxu0 0.0
    %3475 = vmatprep.subr.mxu0 0.0
    %3476 = vmatpush2.msra.mxu0 0.0
    %3477 = vmatprep.subr.mxu0 0.0
    %3478 = vmatpush2.msra.mxu0 0.0
    %3479 = vmatprep.subr.mxu0 0.0
    %3480 = vmatpush2.msra.mxu0 0.0
    %3481 = vmatprep.subr.mxu0 0.0
    %3482 = vmatpush2.msra.mxu0 0.0
    %3483 = vmatprep.subr.mxu0 0.0
    %3484 = vmatpush2.msra.mxu0 0.0
    %3485 = vmatprep.subr.mxu0 0.0
    %3486 = vmatpush2.msra.mxu0 0.0
    %3487 = vmatprep.subr.mxu0 0.0
    %3488 = vmatpush2.msra.mxu0 0.0
    %3489 = vmatprep.subr.mxu0 0.0
    %3490 = vmatpush2.msra.mxu0 0.0
    %3491 = vmatprep.subr.mxu0 0.0
    %3492 = vmatpush2.msra.mxu0 0.0
    %3493 = vmatprep.mubr.f32.mxu0 0.0
    %3494 = vmatmul.mubr.f32.gmra.mxu0 %v3411
    %v3495 = vpop.f32.mrf.mxu0
    %v3496 = vadd.f32 %v3428, %v3495
    %v3497 = vpop.f32.mrf.mxu0
    %3498 = vdwg.mxu0
    %v3499 = vmax.f32 %v3496, 0.0
    %v3500 = vld [vmem:[%s11] sm:$0xff]
    %v3501 = vld [vmem:[%s11 + $0x8] sm:$0xff]
    %v3502 = vld [vmem:[%s11 + $0x10] sm:$0xff]
    %v3503 = vld [vmem:[%s11 + $0x18] sm:$0xff]
    %v3504 = vld [vmem:[%s11 + $0x20] sm:$0xff]
    %v3505 = vld [vmem:[%s11 + $0x28] sm:$0xff]
    %v3506 = vld [vmem:[%s11 + $0x30] sm:$0xff]
    %v3507 = vld [vmem:[%s11 + $0x38] sm:$0xff]
    %v3508 = vld [vmem:[%s12] sm:$0x1]
    %v3510 = vsel %vm2091, %v3499, 0
    %3512 = vmatprep.subr.mxu0 0.0
    %3513 = vmatpush1.msra.mxu0 0.0
    %3514 = vmatprep.subr.mxu0 0.0
    %3515 = vmatpush1.msra.mxu0 0.0
    %3516 = vmatprep.subr.mxu0 0.0
    %3517 = vmatpush1.msra.mxu0 0.0
    %3518 = vmatprep.subr.mxu0 0.0
    %3519 = vmatpush1.msra.mxu0 0.0
    %3520 = vmatprep.subr.mxu0 0.0
    %3521 = vmatpush1.msra.mxu0 0.0
    %3522 = vmatprep.subr.mxu0 0.0
    %3523 = vmatpush1.msra.mxu0 0.0
    %3524 = vmatprep.subr.mxu0 0.0
    %3525 = vmatpush1.msra.mxu0 0.0
    %3526 = vmatprep.subr.mxu0 0.0
    %3527 = vmatpush1.msra.mxu0 0.0
    %3528 = vmatprep.subr.mxu0 0.0
    %3529 = vmatpush1.msra.mxu0 %v3507
    %3530 = vmatprep.subr.mxu0 0.0
    %3531 = vmatpush1.msra.mxu0 %v3506
    %3532 = vmatprep.subr.mxu0 0.0
    %3533 = vmatpush1.msra.mxu0 %v3505
    %3534 = vmatprep.subr.mxu0 0.0
    %3535 = vmatpush1.msra.mxu0 %v3504
    %3536 = vmatprep.subr.mxu0 0.0
    %3537 = vmatpush1.msra.mxu0 %v3503
    %3538 = vmatprep.subr.mxu0 0.0
    %3539 = vmatpush1.msra.mxu0 %v3502
    %3540 = vmatprep.subr.mxu0 0.0
    %3541 = vmatpush1.msra.mxu0 %v3501
    %3542 = vmatprep.subr.mxu0 0.0
    %3543 = vmatpush1.msra.mxu0 %v3500
    %3544 = vmatprep.subr.mxu0 0.0
    %3545 = vmatpush2.msra.mxu0 0.0
    %3546 = vmatprep.subr.mxu0 0.0
    %3547 = vmatpush2.msra.mxu0 0.0
    %3548 = vmatprep.subr.mxu0 0.0
    %3549 = vmatpush2.msra.mxu0 0.0
    %3550 = vmatprep.subr.mxu0 0.0
    %3551 = vmatpush2.msra.mxu0 0.0
    %3552 = vmatprep.subr.mxu0 0.0
    %3553 = vmatpush2.msra.mxu0 0.0
    %3554 = vmatprep.subr.mxu0 0.0
    %3555 = vmatpush2.msra.mxu0 0.0
    %3556 = vmatprep.subr.mxu0 0.0
    %3557 = vmatpush2.msra.mxu0 0.0
    %3558 = vmatprep.subr.mxu0 0.0
    %3559 = vmatpush2.msra.mxu0 0.0
    %3560 = vmatprep.subr.mxu0 0.0
    %3561 = vmatpush2.msra.mxu0 0.0
    %3562 = vmatprep.subr.mxu0 0.0
    %3563 = vmatpush2.msra.mxu0 0.0
    %3564 = vmatprep.subr.mxu0 0.0
    %3565 = vmatpush2.msra.mxu0 0.0
    %3566 = vmatprep.subr.mxu0 0.0
    %3567 = vmatpush2.msra.mxu0 0.0
    %3568 = vmatprep.subr.mxu0 0.0
    %3569 = vmatpush2.msra.mxu0 0.0
    %3570 = vmatprep.subr.mxu0 0.0
    %3571 = vmatpush2.msra.mxu0 0.0
    %3572 = vmatprep.subr.mxu0 0.0
    %3573 = vmatpush2.msra.mxu0 0.0
    %3574 = vmatprep.subr.mxu0 0.0
    %3575 = vmatpush2.msra.mxu0 0.0
    %3576 = vmatprep.mubr.f32.mxu0 0.0
    %3577 = vmatmul.mubr.f32.gmra.mxu0 %v3510
    %v3578 = vpop.f32.mrf.mxu0
    %v3579 = vadd.f32 %v3508, %v3578
    %v3580 = vpop.f32.mrf.mxu0
    %3581 = vdwg.mxu0
    %v3582 = vmax.f32 %v3579, 0.0
    %v3583 = vld [vmem:[%s13] sm:$0xff]
    %v3584 = vld [vmem:[%s13 + $0x8] sm:$0xff]
    %v3585 = vld [vmem:[%s13 + $0x10] sm:$0xff]
    %v3586 = vld [vmem:[%s13 + $0x18] sm:$0xff]
    %v3587 = vld [vmem:[%s13 + $0x20] sm:$0xff]
    %v3588 = vld [vmem:[%s13 + $0x28] sm:$0xff]
    %v3589 = vld [vmem:[%s13 + $0x30] sm:$0xff]
    %v3590 = vld [vmem:[%s13 + $0x38] sm:$0xff]
    %v3591 = vld [vmem:[%s14] sm:$0x1]
    %v3593 = vsel %vm2091, %v3582, 0
    %3595 = vmatprep.subr.mxu0 0.0
    %3596 = vmatpush1.msra.mxu0 0.0
    %3597 = vmatprep.subr.mxu0 0.0
    %3598 = vmatpush1.msra.mxu0 0.0
    %3599 = vmatprep.subr.mxu0 0.0
    %3600 = vmatpush1.msra.mxu0 0.0
    %3601 = vmatprep.subr.mxu0 0.0
    %3602 = vmatpush1.msra.mxu0 0.0
    %3603 = vmatprep.subr.mxu0 0.0
    %3604 = vmatpush1.msra.mxu0 0.0
    %3605 = vmatprep.subr.mxu0 0.0
    %3606 = vmatpush1.msra.mxu0 0.0
    %3607 = vmatprep.subr.mxu0 0.0
    %3608 = vmatpush1.msra.mxu0 0.0
    %3609 = vmatprep.subr.mxu0 0.0
    %3610 = vmatpush1.msra.mxu0 0.0
    %3611 = vmatprep.subr.mxu0 0.0
    %3612 = vmatpush1.msra.mxu0 %v3590
    %3613 = vmatprep.subr.mxu0 0.0
    %3614 = vmatpush1.msra.mxu0 %v3589
    %3615 = vmatprep.subr.mxu0 0.0
    %3616 = vmatpush1.msra.mxu0 %v3588
    %3617 = vmatprep.subr.mxu0 0.0
    %3618 = vmatpush1.msra.mxu0 %v3587
    %3619 = vmatprep.subr.mxu0 0.0
    %3620 = vmatpush1.msra.mxu0 %v3586
    %3621 = vmatprep.subr.mxu0 0.0
    %3622 = vmatpush1.msra.mxu0 %v3585
    %3623 = vmatprep.subr.mxu0 0.0
    %3624 = vmatpush1.msra.mxu0 %v3584
    %3625 = vmatprep.subr.mxu0 0.0
    %3626 = vmatpush1.msra.mxu0 %v3583
    %3627 = vmatprep.subr.mxu0 0.0
    %3628 = vmatpush2.msra.mxu0 0.0
    %3629 = vmatprep.subr.mxu0 0.0
    %3630 = vmatpush2.msra.mxu0 0.0
    %3631 = vmatprep.subr.mxu0 0.0
    %3632 = vmatpush2.msra.mxu0 0.0
    %3633 = vmatprep.subr.mxu0 0.0
    %3634 = vmatpush2.msra.mxu0 0.0
    %3635 = vmatprep.subr.mxu0 0.0
    %3636 = vmatpush2.msra.mxu0 0.0
    %3637 = vmatprep.subr.mxu0 0.0
    %3638 = vmatpush2.msra.mxu0 0.0
    %3639 = vmatprep.subr.mxu0 0.0
    %3640 = vmatpush2.msra.mxu0 0.0
    %3641 = vmatprep.subr.mxu0 0.0
    %3642 = vmatpush2.msra.mxu0 0.0
    %3643 = vmatprep.subr.mxu0 0.0
    %3644 = vmatpush2.msra.mxu0 0.0
    %3645 = vmatprep.subr.mxu0 0.0
    %3646 = vmatpush2.msra.mxu0 0.0
    %3647 = vmatprep.subr.mxu0 0.0
    %3648 = vmatpush2.msra.mxu0 0.0
    %3649 = vmatprep.subr.mxu0 0.0
    %3650 = vmatpush2.msra.mxu0 0.0
    %3651 = vmatprep.subr.mxu0 0.0
    %3652 = vmatpush2.msra.mxu0 0.0
    %3653 = vmatprep.subr.mxu0 0.0
    %3654 = vmatpush2.msra.mxu0 0.0
    %3655 = vmatprep.subr.mxu0 0.0
    %3656 = vmatpush2.msra.mxu0 0.0
    %3657 = vmatprep.subr.mxu0 0.0
    %3658 = vmatpush2.msra.mxu0 0.0
    %3659 = vmatprep.mubr.f32.mxu0 0.0
    %3660 = vmatmul.mubr.f32.gmra.mxu0 %v3593
    %v3661 = vpop.f32.mrf.mxu0
    %v3662 = vadd.f32 %v3591, %v3661
    %v3663 = vpop.f32.mrf.mxu0
    %3664 = vdwg.mxu0
    %vm3665 = vcmask 49152
    %3666 = vst.msk [vmem:[#allocation5] sm:$0x1] %vm3665, %v3662
    %v3667 = vld [vmem:[%s8] sm:$0x1]
    %v3668 = vld [vmem:[#allocation2] sm:$0xff]
    %v3669 = vld [vmem:[#allocation2 + $0x8] sm:$0xff]
    %v3670 = vld [vmem:[#allocation2 + $0x10] sm:$0xff]
    %v3671 = vld [vmem:[#allocation2 + $0x18] sm:$0xff]
    %v3672 = vld [vmem:[#allocation2 + $0x20] sm:$0xff]
    %v3673 = vld [vmem:[#allocation2 + $0x28] sm:$0xff]
    %v3674 = vld [vmem:[#allocation2 + $0x30] sm:$0xff]
    %v3675 = vld [vmem:[#allocation2 + $0x38] sm:$0xff]
    %v3677 = vrot.slane %v2078, 1
    %v3678 = vsel %vm2091, %v3677, 0
    %3680 = vmatprep.subr.mxu0 0.0
    %3681 = vmatpush1.msra.mxu0 0.0
    %3682 = vmatprep.subr.mxu0 0.0
    %3683 = vmatpush1.msra.mxu0 0.0
    %3684 = vmatprep.subr.mxu0 0.0
    %3685 = vmatpush1.msra.mxu0 0.0
    %3686 = vmatprep.subr.mxu0 0.0
    %3687 = vmatpush1.msra.mxu0 0.0
    %3688 = vmatprep.subr.mxu0 0.0
    %3689 = vmatpush1.msra.mxu0 0.0
    %3690 = vmatprep.subr.mxu0 0.0
    %3691 = vmatpush1.msra.mxu0 0.0
    %3692 = vmatprep.subr.mxu0 0.0
    %3693 = vmatpush1.msra.mxu0 0.0
    %3694 = vmatprep.subr.mxu0 0.0
    %3695 = vmatpush1.msra.mxu0 0.0
    %3696 = vmatprep.subr.mxu0 0.0
    %3697 = vmatpush1.msra.mxu0 %v3675
    %3698 = vmatprep.subr.mxu0 0.0
    %3699 = vmatpush1.msra.mxu0 %v3674
    %3700 = vmatprep.subr.mxu0 0.0
    %3701 = vmatpush1.msra.mxu0 %v3673
    %3702 = vmatprep.subr.mxu0 0.0
    %3703 = vmatpush1.msra.mxu0 %v3672
    %3704 = vmatprep.subr.mxu0 0.0
    %3705 = vmatpush1.msra.mxu0 %v3671
    %3706 = vmatprep.subr.mxu0 0.0
    %3707 = vmatpush1.msra.mxu0 %v3670
    %3708 = vmatprep.subr.mxu0 0.0
    %3709 = vmatpush1.msra.mxu0 %v3669
    %3710 = vmatprep.subr.mxu0 0.0
    %3711 = vmatpush1.msra.mxu0 %v3668
    %3712 = vmatprep.subr.mxu0 0.0
    %3713 = vmatpush2.msra.mxu0 0.0
    %3714 = vmatprep.subr.mxu0 0.0
    %3715 = vmatpush2.msra.mxu0 0.0
    %3716 = vmatprep.subr.mxu0 0.0
    %3717 = vmatpush2.msra.mxu0 0.0
    %3718 = vmatprep.subr.mxu0 0.0
    %3719 = vmatpush2.msra.mxu0 0.0
    %3720 = vmatprep.subr.mxu0 0.0
    %3721 = vmatpush2.msra.mxu0 0.0
    %3722 = vmatprep.subr.mxu0 0.0
    %3723 = vmatpush2.msra.mxu0 0.0
    %3724 = vmatprep.subr.mxu0 0.0
    %3725 = vmatpush2.msra.mxu0 0.0
    %3726 = vmatprep.subr.mxu0 0.0
    %3727 = vmatpush2.msra.mxu0 0.0
    %3728 = vmatprep.subr.mxu0 0.0
    %3729 = vmatpush2.msra.mxu0 0.0
    %3730 = vmatprep.subr.mxu0 0.0
    %3731 = vmatpush2.msra.mxu0 0.0
    %3732 = vmatprep.subr.mxu0 0.0
    %3733 = vmatpush2.msra.mxu0 0.0
    %3734 = vmatprep.subr.mxu0 0.0
    %3735 = vmatpush2.msra.mxu0 0.0
    %3736 = vmatprep.subr.mxu0 0.0
    %3737 = vmatpush2.msra.mxu0 0.0
    %3738 = vmatprep.subr.mxu0 0.0
    %3739 = vmatpush2.msra.mxu0 0.0
    %3740 = vmatprep.subr.mxu0 0.0
    %3741 = vmatpush2.msra.mxu0 0.0
    %3742 = vmatprep.subr.mxu0 0.0
    %3743 = vmatpush2.msra.mxu0 0.0
    %3744 = vmatprep.mubr.f32.mxu0 0.0
    %3745 = vmatmul.mubr.f32.gmra.mxu0 %v3678
    %v3746 = vpop.f32.mrf.mxu0
    %v3747 = vadd.f32 0.0, %v3746
    %v3748 = vpop.f32.mrf.mxu0
    %3749 = vdwg.mxu0
    %v3750 = vadd.f32 %v3667, %v3747
    %v3751 = vld [vmem:[%s2166] sm:$0xff]
    %v3752 = vld [vmem:[%s2166 + $0x8] sm:$0xff]
    %v3753 = vld [vmem:[%s2166 + $0x10] sm:$0xff]
    %v3754 = vld [vmem:[%s2166 + $0x18] sm:$0xff]
    %v3755 = vld [vmem:[%s2166 + $0x20] sm:$0xff]
    %v3756 = vld [vmem:[%s2166 + $0x28] sm:$0xff]
    %v3757 = vld [vmem:[%s2166 + $0x30] sm:$0xff]
    %v3758 = vld [vmem:[%s2166 + $0x38] sm:$0xff]
    %v3759 = vrot.slane %v2078, 2
    %v3760 = vsel %vm2091, %v3759, 0
    %3762 = vmatprep.subr.mxu0 0.0
    %3763 = vmatpush1.msra.mxu0 0.0
    %3764 = vmatprep.subr.mxu0 0.0
    %3765 = vmatpush1.msra.mxu0 0.0
    %3766 = vmatprep.subr.mxu0 0.0
    %3767 = vmatpush1.msra.mxu0 0.0
    %3768 = vmatprep.subr.mxu0 0.0
    %3769 = vmatpush1.msra.mxu0 0.0
    %3770 = vmatprep.subr.mxu0 0.0
    %3771 = vmatpush1.msra.mxu0 0.0
    %3772 = vmatprep.subr.mxu0 0.0
    %3773 = vmatpush1.msra.mxu0 0.0
    %3774 = vmatprep.subr.mxu0 0.0
    %3775 = vmatpush1.msra.mxu0 0.0
    %3776 = vmatprep.subr.mxu0 0.0
    %3777 = vmatpush1.msra.mxu0 0.0
    %3778 = vmatprep.subr.mxu0 0.0
    %3779 = vmatpush1.msra.mxu0 %v3758
    %3780 = vmatprep.subr.mxu0 0.0
    %3781 = vmatpush1.msra.mxu0 %v3757
    %3782 = vmatprep.subr.mxu0 0.0
    %3783 = vmatpush1.msra.mxu0 %v3756
    %3784 = vmatprep.subr.mxu0 0.0
    %3785 = vmatpush1.msra.mxu0 %v3755
    %3786 = vmatprep.subr.mxu0 0.0
    %3787 = vmatpush1.msra.mxu0 %v3754
    %3788 = vmatprep.subr.mxu0 0.0
    %3789 = vmatpush1.msra.mxu0 %v3753
    %3790 = vmatprep.subr.mxu0 0.0
    %3791 = vmatpush1.msra.mxu0 %v3752
    %3792 = vmatprep.subr.mxu0 0.0
    %3793 = vmatpush1.msra.mxu0 %v3751
    %3794 = vmatprep.subr.mxu0 0.0
    %3795 = vmatpush2.msra.mxu0 0.0
    %3796 = vmatprep.subr.mxu0 0.0
    %3797 = vmatpush2.msra.mxu0 0.0
    %3798 = vmatprep.subr.mxu0 0.0
    %3799 = vmatpush2.msra.mxu0 0.0
    %3800 = vmatprep.subr.mxu0 0.0
    %3801 = vmatpush2.msra.mxu0 0.0
    %3802 = vmatprep.subr.mxu0 0.0
    %3803 = vmatpush2.msra.mxu0 0.0
    %3804 = vmatprep.subr.mxu0 0.0
    %3805 = vmatpush2.msra.mxu0 0.0
    %3806 = vmatprep.subr.mxu0 0.0
    %3807 = vmatpush2.msra.mxu0 0.0
    %3808 = vmatprep.subr.mxu0 0.0
    %3809 = vmatpush2.msra.mxu0 0.0
    %3810 = vmatprep.subr.mxu0 0.0
    %3811 = vmatpush2.msra.mxu0 0.0
    %3812 = vmatprep.subr.mxu0 0.0
    %3813 = vmatpush2.msra.mxu0 0.0
    %3814 = vmatprep.subr.mxu0 0.0
    %3815 = vmatpush2.msra.mxu0 0.0
    %3816 = vmatprep.subr.mxu0 0.0
    %3817 = vmatpush2.msra.mxu0 0.0
    %3818 = vmatprep.subr.mxu0 0.0
    %3819 = vmatpush2.msra.mxu0 0.0
    %3820 = vmatprep.subr.mxu0 0.0
    %3821 = vmatpush2.msra.mxu0 0.0
    %3822 = vmatprep.subr.mxu0 0.0
    %3823 = vmatpush2.msra.mxu0 0.0
    %3824 = vmatprep.subr.mxu0 0.0
    %3825 = vmatpush2.msra.mxu0 0.0
    %3826 = vmatprep.mubr.f32.mxu0 0.0
    %3827 = vmatmul.mubr.f32.gmra.mxu0 %v3760
    %v3828 = vpop.f32.mrf.mxu0
    %v3829 = vadd.f32 0.0, %v3828
    %v3830 = vpop.f32.mrf.mxu0
    %3831 = vdwg.mxu0
    %v3832 = vadd.f32 %v3750, %v3829
    %v3833 = vld [vmem:[%s2249] sm:$0xff]
    %v3834 = vld [vmem:[%s2249 + $0x8] sm:$0xff]
    %v3835 = vld [vmem:[%s2249 + $0x10] sm:$0xff]
    %v3836 = vld [vmem:[%s2249 + $0x18] sm:$0xff]
    %v3837 = vld [vmem:[%s2249 + $0x20] sm:$0xff]
    %v3838 = vld [vmem:[%s2249 + $0x28] sm:$0xff]
    %v3839 = vld [vmem:[%s2249 + $0x30] sm:$0xff]
    %v3840 = vld [vmem:[%s2249 + $0x38] sm:$0xff]
    %v3841 = vrot.slane %v2078, 3
    %v3842 = vsel %vm2091, %v3841, 0
    %3844 = vmatprep.subr.mxu0 0.0
    %3845 = vmatpush1.msra.mxu0 0.0
    %3846 = vmatprep.subr.mxu0 0.0
    %3847 = vmatpush1.msra.mxu0 0.0
    %3848 = vmatprep.subr.mxu0 0.0
    %3849 = vmatpush1.msra.mxu0 0.0
    %3850 = vmatprep.subr.mxu0 0.0
    %3851 = vmatpush1.msra.mxu0 0.0
    %3852 = vmatprep.subr.mxu0 0.0
    %3853 = vmatpush1.msra.mxu0 0.0
    %3854 = vmatprep.subr.mxu0 0.0
    %3855 = vmatpush1.msra.mxu0 0.0
    %3856 = vmatprep.subr.mxu0 0.0
    %3857 = vmatpush1.msra.mxu0 0.0
    %3858 = vmatprep.subr.mxu0 0.0
    %3859 = vmatpush1.msra.mxu0 0.0
    %3860 = vmatprep.subr.mxu0 0.0
    %3861 = vmatpush1.msra.mxu0 %v3840
    %3862 = vmatprep.subr.mxu0 0.0
    %3863 = vmatpush1.msra.mxu0 %v3839
    %3864 = vmatprep.subr.mxu0 0.0
    %3865 = vmatpush1.msra.mxu0 %v3838
    %3866 = vmatprep.subr.mxu0 0.0
    %3867 = vmatpush1.msra.mxu0 %v3837
    %3868 = vmatprep.subr.mxu0 0.0
    %3869 = vmatpush1.msra.mxu0 %v3836
    %3870 = vmatprep.subr.mxu0 0.0
    %3871 = vmatpush1.msra.mxu0 %v3835
    %3872 = vmatprep.subr.mxu0 0.0
    %3873 = vmatpush1.msra.mxu0 %v3834
    %3874 = vmatprep.subr.mxu0 0.0
    %3875 = vmatpush1.msra.mxu0 %v3833
    %3876 = vmatprep.subr.mxu0 0.0
    %3877 = vmatpush2.msra.mxu0 0.0
    %3878 = vmatprep.subr.mxu0 0.0
    %3879 = vmatpush2.msra.mxu0 0.0
    %3880 = vmatprep.subr.mxu0 0.0
    %3881 = vmatpush2.msra.mxu0 0.0
    %3882 = vmatprep.subr.mxu0 0.0
    %3883 = vmatpush2.msra.mxu0 0.0
    %3884 = vmatprep.subr.mxu0 0.0
    %3885 = vmatpush2.msra.mxu0 0.0
    %3886 = vmatprep.subr.mxu0 0.0
    %3887 = vmatpush2.msra.mxu0 0.0
    %3888 = vmatprep.subr.mxu0 0.0
    %3889 = vmatpush2.msra.mxu0 0.0
    %3890 = vmatprep.subr.mxu0 0.0
    %3891 = vmatpush2.msra.mxu0 0.0
    %3892 = vmatprep.subr.mxu0 0.0
    %3893 = vmatpush2.msra.mxu0 0.0
    %3894 = vmatprep.subr.mxu0 0.0
    %3895 = vmatpush2.msra.mxu0 0.0
    %3896 = vmatprep.subr.mxu0 0.0
    %3897 = vmatpush2.msra.mxu0 0.0
    %3898 = vmatprep.subr.mxu0 0.0
    %3899 = vmatpush2.msra.mxu0 0.0
    %3900 = vmatprep.subr.mxu0 0.0
    %3901 = vmatpush2.msra.mxu0 0.0
    %3902 = vmatprep.subr.mxu0 0.0
    %3903 = vmatpush2.msra.mxu0 0.0
    %3904 = vmatprep.subr.mxu0 0.0
    %3905 = vmatpush2.msra.mxu0 0.0
    %3906 = vmatprep.subr.mxu0 0.0
    %3907 = vmatpush2.msra.mxu0 0.0
    %3908 = vmatprep.mubr.f32.mxu0 0.0
    %3909 = vmatmul.mubr.f32.gmra.mxu0 %v3842
    %v3910 = vpop.f32.mrf.mxu0
    %v3911 = vadd.f32 0.0, %v3910
    %v3912 = vpop.f32.mrf.mxu0
    %3913 = vdwg.mxu0
    %v3914 = vadd.f32 %v3832, %v3911
    %v3915 = vld [vmem:[%s2332] sm:$0xff]
    %v3916 = vld [vmem:[%s2332 + $0x8] sm:$0xff]
    %v3917 = vld [vmem:[%s2332 + $0x10] sm:$0xff]
    %v3918 = vld [vmem:[%s2332 + $0x18] sm:$0xff]
    %v3919 = vld [vmem:[%s2332 + $0x20] sm:$0xff]
    %v3920 = vld [vmem:[%s2332 + $0x28] sm:$0xff]
    %v3921 = vld [vmem:[%s2332 + $0x30] sm:$0xff]
    %v3922 = vld [vmem:[%s2332 + $0x38] sm:$0xff]
    %v3923 = vrot.slane %v2078, 4
    %v3924 = vsel %vm2091, %v3923, 0
    %3926 = vmatprep.subr.mxu0 0.0
    %3927 = vmatpush1.msra.mxu0 0.0
    %3928 = vmatprep.subr.mxu0 0.0
    %3929 = vmatpush1.msra.mxu0 0.0
    %3930 = vmatprep.subr.mxu0 0.0
    %3931 = vmatpush1.msra.mxu0 0.0
    %3932 = vmatprep.subr.mxu0 0.0
    %3933 = vmatpush1.msra.mxu0 0.0
    %3934 = vmatprep.subr.mxu0 0.0
    %3935 = vmatpush1.msra.mxu0 0.0
    %3936 = vmatprep.subr.mxu0 0.0
    %3937 = vmatpush1.msra.mxu0 0.0
    %3938 = vmatprep.subr.mxu0 0.0
    %3939 = vmatpush1.msra.mxu0 0.0
    %3940 = vmatprep.subr.mxu0 0.0
    %3941 = vmatpush1.msra.mxu0 0.0
    %3942 = vmatprep.subr.mxu0 0.0
    %3943 = vmatpush1.msra.mxu0 %v3922
    %3944 = vmatprep.subr.mxu0 0.0
    %3945 = vmatpush1.msra.mxu0 %v3921
    %3946 = vmatprep.subr.mxu0 0.0
    %3947 = vmatpush1.msra.mxu0 %v3920
    %3948 = vmatprep.subr.mxu0 0.0
    %3949 = vmatpush1.msra.mxu0 %v3919
    %3950 = vmatprep.subr.mxu0 0.0
    %3951 = vmatpush1.msra.mxu0 %v3918
    %3952 = vmatprep.subr.mxu0 0.0
    %3953 = vmatpush1.msra.mxu0 %v3917
    %3954 = vmatprep.subr.mxu0 0.0
    %3955 = vmatpush1.msra.mxu0 %v3916
    %3956 = vmatprep.subr.mxu0 0.0
    %3957 = vmatpush1.msra.mxu0 %v3915
    %3958 = vmatprep.subr.mxu0 0.0
    %3959 = vmatpush2.msra.mxu0 0.0
    %3960 = vmatprep.subr.mxu0 0.0
    %3961 = vmatpush2.msra.mxu0 0.0
    %3962 = vmatprep.subr.mxu0 0.0
    %3963 = vmatpush2.msra.mxu0 0.0
    %3964 = vmatprep.subr.mxu0 0.0
    %3965 = vmatpush2.msra.mxu0 0.0
    %3966 = vmatprep.subr.mxu0 0.0
    %3967 = vmatpush2.msra.mxu0 0.0
    %3968 = vmatprep.subr.mxu0 0.0
    %3969 = vmatpush2.msra.mxu0 0.0
    %3970 = vmatprep.subr.mxu0 0.0
    %3971 = vmatpush2.msra.mxu0 0.0
    %3972 = vmatprep.subr.mxu0 0.0
    %3973 = vmatpush2.msra.mxu0 0.0
    %3974 = vmatprep.subr.mxu0 0.0
    %3975 = vmatpush2.msra.mxu0 0.0
    %3976 = vmatprep.subr.mxu0 0.0
    %3977 = vmatpush2.msra.mxu0 0.0
    %3978 = vmatprep.subr.mxu0 0.0
    %3979 = vmatpush2.msra.mxu0 0.0
    %3980 = vmatprep.subr.mxu0 0.0
    %3981 = vmatpush2.msra.mxu0 0.0
    %3982 = vmatprep.subr.mxu0 0.0
    %3983 = vmatpush2.msra.mxu0 0.0
    %3984 = vmatprep.subr.mxu0 0.0
    %3985 = vmatpush2.msra.mxu0 0.0
    %3986 = vmatprep.subr.mxu0 0.0
    %3987 = vmatpush2.msra.mxu0 0.0
    %3988 = vmatprep.subr.mxu0 0.0
    %3989 = vmatpush2.msra.mxu0 0.0
    %3990 = vmatprep.mubr.f32.mxu0 0.0
    %3991 = vmatmul.mubr.f32.gmra.mxu0 %v3924
    %v3992 = vpop.f32.mrf.mxu0
    %v3993 = vadd.f32 0.0, %v3992
    %v3994 = vpop.f32.mrf.mxu0
    %3995 = vdwg.mxu0
    %v3996 = vadd.f32 %v3914, %v3993
    %v3997 = vld [vmem:[%s2415] sm:$0xff]
    %v3998 = vld [vmem:[%s2415 + $0x8] sm:$0xff]
    %v3999 = vld [vmem:[%s2415 + $0x10] sm:$0xff]
    %v4000 = vld [vmem:[%s2415 + $0x18] sm:$0xff]
    %v4001 = vld [vmem:[%s2415 + $0x20] sm:$0xff]
    %v4002 = vld [vmem:[%s2415 + $0x28] sm:$0xff]
    %v4003 = vld [vmem:[%s2415 + $0x30] sm:$0xff]
    %v4004 = vld [vmem:[%s2415 + $0x38] sm:$0xff]
    %v4006 = vsel %vm2091, %v2079, 0
    %4008 = vmatprep.subr.mxu0 0.0
    %4009 = vmatpush1.msra.mxu0 0.0
    %4010 = vmatprep.subr.mxu0 0.0
    %4011 = vmatpush1.msra.mxu0 0.0
    %4012 = vmatprep.subr.mxu0 0.0
    %4013 = vmatpush1.msra.mxu0 0.0
    %4014 = vmatprep.subr.mxu0 0.0
    %4015 = vmatpush1.msra.mxu0 0.0
    %4016 = vmatprep.subr.mxu0 0.0
    %4017 = vmatpush1.msra.mxu0 0.0
    %4018 = vmatprep.subr.mxu0 0.0
    %4019 = vmatpush1.msra.mxu0 0.0
    %4020 = vmatprep.subr.mxu0 0.0
    %4021 = vmatpush1.msra.mxu0 0.0
    %4022 = vmatprep.subr.mxu0 0.0
    %4023 = vmatpush1.msra.mxu0 0.0
    %4024 = vmatprep.subr.mxu0 0.0
    %4025 = vmatpush1.msra.mxu0 %v4004
    %4026 = vmatprep.subr.mxu0 0.0
    %4027 = vmatpush1.msra.mxu0 %v4003
    %4028 = vmatprep.subr.mxu0 0.0
    %4029 = vmatpush1.msra.mxu0 %v4002
    %4030 = vmatprep.subr.mxu0 0.0
    %4031 = vmatpush1.msra.mxu0 %v4001
    %4032 = vmatprep.subr.mxu0 0.0
    %4033 = vmatpush1.msra.mxu0 %v4000
    %4034 = vmatprep.subr.mxu0 0.0
    %4035 = vmatpush1.msra.mxu0 %v3999
    %4036 = vmatprep.subr.mxu0 0.0
    %4037 = vmatpush1.msra.mxu0 %v3998
    %4038 = vmatprep.subr.mxu0 0.0
    %4039 = vmatpush1.msra.mxu0 %v3997
    %4040 = vmatprep.subr.mxu0 0.0
    %4041 = vmatpush2.msra.mxu0 0.0
    %4042 = vmatprep.subr.mxu0 0.0
    %4043 = vmatpush2.msra.mxu0 0.0
    %4044 = vmatprep.subr.mxu0 0.0
    %4045 = vmatpush2.msra.mxu0 0.0
    %4046 = vmatprep.subr.mxu0 0.0
    %4047 = vmatpush2.msra.mxu0 0.0
    %4048 = vmatprep.subr.mxu0 0.0
    %4049 = vmatpush2.msra.mxu0 0.0
    %4050 = vmatprep.subr.mxu0 0.0
    %4051 = vmatpush2.msra.mxu0 0.0
    %4052 = vmatprep.subr.mxu0 0.0
    %4053 = vmatpush2.msra.mxu0 0.0
    %4054 = vmatprep.subr.mxu0 0.0
    %4055 = vmatpush2.msra.mxu0 0.0
    %4056 = vmatprep.subr.mxu0 0.0
    %4057 = vmatpush2.msra.mxu0 0.0
    %4058 = vmatprep.subr.mxu0 0.0
    %4059 = vmatpush2.msra.mxu0 0.0
    %4060 = vmatprep.subr.mxu0 0.0
    %4061 = vmatpush2.msra.mxu0 0.0
    %4062 = vmatprep.subr.mxu0 0.0
    %4063 = vmatpush2.msra.mxu0 0.0
    %4064 = vmatprep.subr.mxu0 0.0
    %4065 = vmatpush2.msra.mxu0 0.0
    %4066 = vmatprep.subr.mxu0 0.0
    %4067 = vmatpush2.msra.mxu0 0.0
    %4068 = vmatprep.subr.mxu0 0.0
    %4069 = vmatpush2.msra.mxu0 0.0
    %4070 = vmatprep.subr.mxu0 0.0
    %4071 = vmatpush2.msra.mxu0 0.0
    %4072 = vmatprep.mubr.f32.mxu0 0.0
    %4073 = vmatmul.mubr.f32.gmra.mxu0 %v4006
    %v4074 = vpop.f32.mrf.mxu0
    %v4075 = vadd.f32 0.0, %v4074
    %v4076 = vpop.f32.mrf.mxu0
    %4077 = vdwg.mxu0
    %v4078 = vadd.f32 %v3996, %v4075
    %v4079 = vld [vmem:[%s2498] sm:$0xff]
    %v4080 = vld [vmem:[%s2498 + $0x8] sm:$0xff]
    %v4081 = vld [vmem:[%s2498 + $0x10] sm:$0xff]
    %v4082 = vld [vmem:[%s2498 + $0x18] sm:$0xff]
    %v4083 = vld [vmem:[%s2498 + $0x20] sm:$0xff]
    %v4084 = vld [vmem:[%s2498 + $0x28] sm:$0xff]
    %v4085 = vld [vmem:[%s2498 + $0x30] sm:$0xff]
    %v4086 = vld [vmem:[%s2498 + $0x38] sm:$0xff]
    %v4087 = vrot.slane %v2079, 1
    %v4088 = vsel %vm2091, %v4087, 0
    %4090 = vmatprep.subr.mxu0 0.0
    %4091 = vmatpush1.msra.mxu0 0.0
    %4092 = vmatprep.subr.mxu0 0.0
    %4093 = vmatpush1.msra.mxu0 0.0
    %4094 = vmatprep.subr.mxu0 0.0
    %4095 = vmatpush1.msra.mxu0 0.0
    %4096 = vmatprep.subr.mxu0 0.0
    %4097 = vmatpush1.msra.mxu0 0.0
    %4098 = vmatprep.subr.mxu0 0.0
    %4099 = vmatpush1.msra.mxu0 0.0
    %4100 = vmatprep.subr.mxu0 0.0
    %4101 = vmatpush1.msra.mxu0 0.0
    %4102 = vmatprep.subr.mxu0 0.0
    %4103 = vmatpush1.msra.mxu0 0.0
    %4104 = vmatprep.subr.mxu0 0.0
    %4105 = vmatpush1.msra.mxu0 0.0
    %4106 = vmatprep.subr.mxu0 0.0
    %4107 = vmatpush1.msra.mxu0 %v4086
    %4108 = vmatprep.subr.mxu0 0.0
    %4109 = vmatpush1.msra.mxu0 %v4085
    %4110 = vmatprep.subr.mxu0 0.0
    %4111 = vmatpush1.msra.mxu0 %v4084
    %4112 = vmatprep.subr.mxu0 0.0
    %4113 = vmatpush1.msra.mxu0 %v4083
    %4114 = vmatprep.subr.mxu0 0.0
    %4115 = vmatpush1.msra.mxu0 %v4082
    %4116 = vmatprep.subr.mxu0 0.0
    %4117 = vmatpush1.msra.mxu0 %v4081
    %4118 = vmatprep.subr.mxu0 0.0
    %4119 = vmatpush1.msra.mxu0 %v4080
    %4120 = vmatprep.subr.mxu0 0.0
    %4121 = vmatpush1.msra.mxu0 %v4079
    %4122 = vmatprep.subr.mxu0 0.0
    %4123 = vmatpush2.msra.mxu0 0.0
    %4124 = vmatprep.subr.mxu0 0.0
    %4125 = vmatpush2.msra.mxu0 0.0
    %4126 = vmatprep.subr.mxu0 0.0
    %4127 = vmatpush2.msra.mxu0 0.0
    %4128 = vmatprep.subr.mxu0 0.0
    %4129 = vmatpush2.msra.mxu0 0.0
    %4130 = vmatprep.subr.mxu0 0.0
    %4131 = vmatpush2.msra.mxu0 0.0
    %4132 = vmatprep.subr.mxu0 0.0
    %4133 = vmatpush2.msra.mxu0 0.0
    %4134 = vmatprep.subr.mxu0 0.0
    %4135 = vmatpush2.msra.mxu0 0.0
    %4136 = vmatprep.subr.mxu0 0.0
    %4137 = vmatpush2.msra.mxu0 0.0
    %4138 = vmatprep.subr.mxu0 0.0
    %4139 = vmatpush2.msra.mxu0 0.0
    %4140 = vmatprep.subr.mxu0 0.0
    %4141 = vmatpush2.msra.mxu0 0.0
    %4142 = vmatprep.subr.mxu0 0.0
    %4143 = vmatpush2.msra.mxu0 0.0
    %4144 = vmatprep.subr.mxu0 0.0
    %4145 = vmatpush2.msra.mxu0 0.0
    %4146 = vmatprep.subr.mxu0 0.0
    %4147 = vmatpush2.msra.mxu0 0.0
    %4148 = vmatprep.subr.mxu0 0.0
    %4149 = vmatpush2.msra.mxu0 0.0
    %4150 = vmatprep.subr.mxu0 0.0
    %4151 = vmatpush2.msra.mxu0 0.0
    %4152 = vmatprep.subr.mxu0 0.0
    %4153 = vmatpush2.msra.mxu0 0.0
    %4154 = vmatprep.mubr.f32.mxu0 0.0
    %4155 = vmatmul.mubr.f32.gmra.mxu0 %v4088
    %v4156 = vpop.f32.mrf.mxu0
    %v4157 = vadd.f32 0.0, %v4156
    %v4158 = vpop.f32.mrf.mxu0
    %4159 = vdwg.mxu0
    %v4160 = vadd.f32 %v4078, %v4157
    %v4161 = vld [vmem:[%s2581] sm:$0xff]
    %v4162 = vld [vmem:[%s2581 + $0x8] sm:$0xff]
    %v4163 = vld [vmem:[%s2581 + $0x10] sm:$0xff]
    %v4164 = vld [vmem:[%s2581 + $0x18] sm:$0xff]
    %v4165 = vld [vmem:[%s2581 + $0x20] sm:$0xff]
    %v4166 = vld [vmem:[%s2581 + $0x28] sm:$0xff]
    %v4167 = vld [vmem:[%s2581 + $0x30] sm:$0xff]
    %v4168 = vld [vmem:[%s2581 + $0x38] sm:$0xff]
    %v4169 = vrot.slane %v2079, 2
    %v4170 = vsel %vm2091, %v4169, 0
    %4172 = vmatprep.subr.mxu0 0.0
    %4173 = vmatpush1.msra.mxu0 0.0
    %4174 = vmatprep.subr.mxu0 0.0
    %4175 = vmatpush1.msra.mxu0 0.0
    %4176 = vmatprep.subr.mxu0 0.0
    %4177 = vmatpush1.msra.mxu0 0.0
    %4178 = vmatprep.subr.mxu0 0.0
    %4179 = vmatpush1.msra.mxu0 0.0
    %4180 = vmatprep.subr.mxu0 0.0
    %4181 = vmatpush1.msra.mxu0 0.0
    %4182 = vmatprep.subr.mxu0 0.0
    %4183 = vmatpush1.msra.mxu0 0.0
    %4184 = vmatprep.subr.mxu0 0.0
    %4185 = vmatpush1.msra.mxu0 0.0
    %4186 = vmatprep.subr.mxu0 0.0
    %4187 = vmatpush1.msra.mxu0 0.0
    %4188 = vmatprep.subr.mxu0 0.0
    %4189 = vmatpush1.msra.mxu0 %v4168
    %4190 = vmatprep.subr.mxu0 0.0
    %4191 = vmatpush1.msra.mxu0 %v4167
    %4192 = vmatprep.subr.mxu0 0.0
    %4193 = vmatpush1.msra.mxu0 %v4166
    %4194 = vmatprep.subr.mxu0 0.0
    %4195 = vmatpush1.msra.mxu0 %v4165
    %4196 = vmatprep.subr.mxu0 0.0
    %4197 = vmatpush1.msra.mxu0 %v4164
    %4198 = vmatprep.subr.mxu0 0.0
    %4199 = vmatpush1.msra.mxu0 %v4163
    %4200 = vmatprep.subr.mxu0 0.0
    %4201 = vmatpush1.msra.mxu0 %v4162
    %4202 = vmatprep.subr.mxu0 0.0
    %4203 = vmatpush1.msra.mxu0 %v4161
    %4204 = vmatprep.subr.mxu0 0.0
    %4205 = vmatpush2.msra.mxu0 0.0
    %4206 = vmatprep.subr.mxu0 0.0
    %4207 = vmatpush2.msra.mxu0 0.0
    %4208 = vmatprep.subr.mxu0 0.0
    %4209 = vmatpush2.msra.mxu0 0.0
    %4210 = vmatprep.subr.mxu0 0.0
    %4211 = vmatpush2.msra.mxu0 0.0
    %4212 = vmatprep.subr.mxu0 0.0
    %4213 = vmatpush2.msra.mxu0 0.0
    %4214 = vmatprep.subr.mxu0 0.0
    %4215 = vmatpush2.msra.mxu0 0.0
    %4216 = vmatprep.subr.mxu0 0.0
    %4217 = vmatpush2.msra.mxu0 0.0
    %4218 = vmatprep.subr.mxu0 0.0
    %4219 = vmatpush2.msra.mxu0 0.0
    %4220 = vmatprep.subr.mxu0 0.0
    %4221 = vmatpush2.msra.mxu0 0.0
    %4222 = vmatprep.subr.mxu0 0.0
    %4223 = vmatpush2.msra.mxu0 0.0
    %4224 = vmatprep.subr.mxu0 0.0
    %4225 = vmatpush2.msra.mxu0 0.0
    %4226 = vmatprep.subr.mxu0 0.0
    %4227 = vmatpush2.msra.mxu0 0.0
    %4228 = vmatprep.subr.mxu0 0.0
    %4229 = vmatpush2.msra.mxu0 0.0
    %4230 = vmatprep.subr.mxu0 0.0
    %4231 = vmatpush2.msra.mxu0 0.0
    %4232 = vmatprep.subr.mxu0 0.0
    %4233 = vmatpush2.msra.mxu0 0.0
    %4234 = vmatprep.subr.mxu0 0.0
    %4235 = vmatpush2.msra.mxu0 0.0
    %4236 = vmatprep.mubr.f32.mxu0 0.0
    %4237 = vmatmul.mubr.f32.gmra.mxu0 %v4170
    %v4238 = vpop.f32.mrf.mxu0
    %v4239 = vadd.f32 0.0, %v4238
    %v4240 = vpop.f32.mrf.mxu0
    %4241 = vdwg.mxu0
    %v4242 = vadd.f32 %v4160, %v4239
    %v4243 = vld [vmem:[%s2664] sm:$0xff]
    %v4244 = vld [vmem:[%s2664 + $0x8] sm:$0xff]
    %v4245 = vld [vmem:[%s2664 + $0x10] sm:$0xff]
    %v4246 = vld [vmem:[%s2664 + $0x18] sm:$0xff]
    %v4247 = vld [vmem:[%s2664 + $0x20] sm:$0xff]
    %v4248 = vld [vmem:[%s2664 + $0x28] sm:$0xff]
    %v4249 = vld [vmem:[%s2664 + $0x30] sm:$0xff]
    %v4250 = vld [vmem:[%s2664 + $0x38] sm:$0xff]
    %v4251 = vrot.slane %v2079, 3
    %v4252 = vsel %vm2091, %v4251, 0
    %4254 = vmatprep.subr.mxu0 0.0
    %4255 = vmatpush1.msra.mxu0 0.0
    %4256 = vmatprep.subr.mxu0 0.0
    %4257 = vmatpush1.msra.mxu0 0.0
    %4258 = vmatprep.subr.mxu0 0.0
    %4259 = vmatpush1.msra.mxu0 0.0
    %4260 = vmatprep.subr.mxu0 0.0
    %4261 = vmatpush1.msra.mxu0 0.0
    %4262 = vmatprep.subr.mxu0 0.0
    %4263 = vmatpush1.msra.mxu0 0.0
    %4264 = vmatprep.subr.mxu0 0.0
    %4265 = vmatpush1.msra.mxu0 0.0
    %4266 = vmatprep.subr.mxu0 0.0
    %4267 = vmatpush1.msra.mxu0 0.0
    %4268 = vmatprep.subr.mxu0 0.0
    %4269 = vmatpush1.msra.mxu0 0.0
    %4270 = vmatprep.subr.mxu0 0.0
    %4271 = vmatpush1.msra.mxu0 %v4250
    %4272 = vmatprep.subr.mxu0 0.0
    %4273 = vmatpush1.msra.mxu0 %v4249
    %4274 = vmatprep.subr.mxu0 0.0
    %4275 = vmatpush1.msra.mxu0 %v4248
    %4276 = vmatprep.subr.mxu0 0.0
    %4277 = vmatpush1.msra.mxu0 %v4247
    %4278 = vmatprep.subr.mxu0 0.0
    %4279 = vmatpush1.msra.mxu0 %v4246
    %4280 = vmatprep.subr.mxu0 0.0
    %4281 = vmatpush1.msra.mxu0 %v4245
    %4282 = vmatprep.subr.mxu0 0.0
    %4283 = vmatpush1.msra.mxu0 %v4244
    %4284 = vmatprep.subr.mxu0 0.0
    %4285 = vmatpush1.msra.mxu0 %v4243
    %4286 = vmatprep.subr.mxu0 0.0
    %4287 = vmatpush2.msra.mxu0 0.0
    %4288 = vmatprep.subr.mxu0 0.0
    %4289 = vmatpush2.msra.mxu0 0.0
    %4290 = vmatprep.subr.mxu0 0.0
    %4291 = vmatpush2.msra.mxu0 0.0
    %4292 = vmatprep.subr.mxu0 0.0
    %4293 = vmatpush2.msra.mxu0 0.0
    %4294 = vmatprep.subr.mxu0 0.0
    %4295 = vmatpush2.msra.mxu0 0.0
    %4296 = vmatprep.subr.mxu0 0.0
    %4297 = vmatpush2.msra.mxu0 0.0
    %4298 = vmatprep.subr.mxu0 0.0
    %4299 = vmatpush2.msra.mxu0 0.0
    %4300 = vmatprep.subr.mxu0 0.0
    %4301 = vmatpush2.msra.mxu0 0.0
    %4302 = vmatprep.subr.mxu0 0.0
    %4303 = vmatpush2.msra.mxu0 0.0
    %4304 = vmatprep.subr.mxu0 0.0
    %4305 = vmatpush2.msra.mxu0 0.0
    %4306 = vmatprep.subr.mxu0 0.0
    %4307 = vmatpush2.msra.mxu0 0.0
    %4308 = vmatprep.subr.mxu0 0.0
    %4309 = vmatpush2.msra.mxu0 0.0
    %4310 = vmatprep.subr.mxu0 0.0
    %4311 = vmatpush2.msra.mxu0 0.0
    %4312 = vmatprep.subr.mxu0 0.0
    %4313 = vmatpush2.msra.mxu0 0.0
    %4314 = vmatprep.subr.mxu0 0.0
    %4315 = vmatpush2.msra.mxu0 0.0
    %4316 = vmatprep.subr.mxu0 0.0
    %4317 = vmatpush2.msra.mxu0 0.0
    %4318 = vmatprep.mubr.f32.mxu0 0.0
    %4319 = vmatmul.mubr.f32.gmra.mxu0 %v4252
    %v4320 = vpop.f32.mrf.mxu0
    %v4321 = vadd.f32 0.0, %v4320
    %v4322 = vpop.f32.mrf.mxu0
    %4323 = vdwg.mxu0
    %v4324 = vadd.f32 %v4242, %v4321
    %v4325 = vld [vmem:[%s2747] sm:$0xff]
    %v4326 = vld [vmem:[%s2747 + $0x8] sm:$0xff]
    %v4327 = vld [vmem:[%s2747 + $0x10] sm:$0xff]
    %v4328 = vld [vmem:[%s2747 + $0x18] sm:$0xff]
    %v4329 = vld [vmem:[%s2747 + $0x20] sm:$0xff]
    %v4330 = vld [vmem:[%s2747 + $0x28] sm:$0xff]
    %v4331 = vld [vmem:[%s2747 + $0x30] sm:$0xff]
    %v4332 = vld [vmem:[%s2747 + $0x38] sm:$0xff]
    %v4333 = vrot.slane %v2079, 7
    %v4334 = vsel %vm2091, %v4333, 0
    %4336 = vmatprep.subr.mxu0 0.0
    %4337 = vmatpush1.msra.mxu0 0.0
    %4338 = vmatprep.subr.mxu0 0.0
    %4339 = vmatpush1.msra.mxu0 0.0
    %4340 = vmatprep.subr.mxu0 0.0
    %4341 = vmatpush1.msra.mxu0 0.0
    %4342 = vmatprep.subr.mxu0 0.0
    %4343 = vmatpush1.msra.mxu0 0.0
    %4344 = vmatprep.subr.mxu0 0.0
    %4345 = vmatpush1.msra.mxu0 0.0
    %4346 = vmatprep.subr.mxu0 0.0
    %4347 = vmatpush1.msra.mxu0 0.0
    %4348 = vmatprep.subr.mxu0 0.0
    %4349 = vmatpush1.msra.mxu0 0.0
    %4350 = vmatprep.subr.mxu0 0.0
    %4351 = vmatpush1.msra.mxu0 0.0
    %4352 = vmatprep.subr.mxu0 0.0
    %4353 = vmatpush1.msra.mxu0 %v4332
    %4354 = vmatprep.subr.mxu0 0.0
    %4355 = vmatpush1.msra.mxu0 %v4331
    %4356 = vmatprep.subr.mxu0 0.0
    %4357 = vmatpush1.msra.mxu0 %v4330
    %4358 = vmatprep.subr.mxu0 0.0
    %4359 = vmatpush1.msra.mxu0 %v4329
    %4360 = vmatprep.subr.mxu0 0.0
    %4361 = vmatpush1.msra.mxu0 %v4328
    %4362 = vmatprep.subr.mxu0 0.0
    %4363 = vmatpush1.msra.mxu0 %v4327
    %4364 = vmatprep.subr.mxu0 0.0
    %4365 = vmatpush1.msra.mxu0 %v4326
    %4366 = vmatprep.subr.mxu0 0.0
    %4367 = vmatpush1.msra.mxu0 %v4325
    %4368 = vmatprep.subr.mxu0 0.0
    %4369 = vmatpush2.msra.mxu0 0.0
    %4370 = vmatprep.subr.mxu0 0.0
    %4371 = vmatpush2.msra.mxu0 0.0
    %4372 = vmatprep.subr.mxu0 0.0
    %4373 = vmatpush2.msra.mxu0 0.0
    %4374 = vmatprep.subr.mxu0 0.0
    %4375 = vmatpush2.msra.mxu0 0.0
    %4376 = vmatprep.subr.mxu0 0.0
    %4377 = vmatpush2.msra.mxu0 0.0
    %4378 = vmatprep.subr.mxu0 0.0
    %4379 = vmatpush2.msra.mxu0 0.0
    %4380 = vmatprep.subr.mxu0 0.0
    %4381 = vmatpush2.msra.mxu0 0.0
    %4382 = vmatprep.subr.mxu0 0.0
    %4383 = vmatpush2.msra.mxu0 0.0
    %4384 = vmatprep.subr.mxu0 0.0
    %4385 = vmatpush2.msra.mxu0 0.0
    %4386 = vmatprep.subr.mxu0 0.0
    %4387 = vmatpush2.msra.mxu0 0.0
    %4388 = vmatprep.subr.mxu0 0.0
    %4389 = vmatpush2.msra.mxu0 0.0
    %4390 = vmatprep.subr.mxu0 0.0
    %4391 = vmatpush2.msra.mxu0 0.0
    %4392 = vmatprep.subr.mxu0 0.0
    %4393 = vmatpush2.msra.mxu0 0.0
    %4394 = vmatprep.subr.mxu0 0.0
    %4395 = vmatpush2.msra.mxu0 0.0
    %4396 = vmatprep.subr.mxu0 0.0
    %4397 = vmatpush2.msra.mxu0 0.0
    %4398 = vmatprep.subr.mxu0 0.0
    %4399 = vmatpush2.msra.mxu0 0.0
    %4400 = vmatprep.mubr.f32.mxu0 0.0
    %4401 = vmatmul.mubr.f32.gmra.mxu0 %v4334
    %v4402 = vpop.f32.mrf.mxu0
    %v4403 = vadd.f32 0.0, %v4402
    %v4404 = vpop.f32.mrf.mxu0
    %4405 = vdwg.mxu0
    %v4406 = vadd.f32 %v4324, %v4403
    %v4407 = vld [vmem:[%s2830] sm:$0xff]
    %v4408 = vld [vmem:[%s2830 + $0x8] sm:$0xff]
    %v4409 = vld [vmem:[%s2830 + $0x10] sm:$0xff]
    %v4410 = vld [vmem:[%s2830 + $0x18] sm:$0xff]
    %v4411 = vld [vmem:[%s2830 + $0x20] sm:$0xff]
    %v4412 = vld [vmem:[%s2830 + $0x28] sm:$0xff]
    %v4413 = vld [vmem:[%s2830 + $0x30] sm:$0xff]
    %v4414 = vld [vmem:[%s2830 + $0x38] sm:$0xff]
    %v4416 = vsel %vm2091, %v2080, 0
    %4418 = vmatprep.subr.mxu0 0.0
    %4419 = vmatpush1.msra.mxu0 0.0
    %4420 = vmatprep.subr.mxu0 0.0
    %4421 = vmatpush1.msra.mxu0 0.0
    %4422 = vmatprep.subr.mxu0 0.0
    %4423 = vmatpush1.msra.mxu0 0.0
    %4424 = vmatprep.subr.mxu0 0.0
    %4425 = vmatpush1.msra.mxu0 0.0
    %4426 = vmatprep.subr.mxu0 0.0
    %4427 = vmatpush1.msra.mxu0 0.0
    %4428 = vmatprep.subr.mxu0 0.0
    %4429 = vmatpush1.msra.mxu0 0.0
    %4430 = vmatprep.subr.mxu0 0.0
    %4431 = vmatpush1.msra.mxu0 0.0
    %4432 = vmatprep.subr.mxu0 0.0
    %4433 = vmatpush1.msra.mxu0 0.0
    %4434 = vmatprep.subr.mxu0 0.0
    %4435 = vmatpush1.msra.mxu0 %v4414
    %4436 = vmatprep.subr.mxu0 0.0
    %4437 = vmatpush1.msra.mxu0 %v4413
    %4438 = vmatprep.subr.mxu0 0.0
    %4439 = vmatpush1.msra.mxu0 %v4412
    %4440 = vmatprep.subr.mxu0 0.0
    %4441 = vmatpush1.msra.mxu0 %v4411
    %4442 = vmatprep.subr.mxu0 0.0
    %4443 = vmatpush1.msra.mxu0 %v4410
    %4444 = vmatprep.subr.mxu0 0.0
    %4445 = vmatpush1.msra.mxu0 %v4409
    %4446 = vmatprep.subr.mxu0 0.0
    %4447 = vmatpush1.msra.mxu0 %v4408
    %4448 = vmatprep.subr.mxu0 0.0
    %4449 = vmatpush1.msra.mxu0 %v4407
    %4450 = vmatprep.subr.mxu0 0.0
    %4451 = vmatpush2.msra.mxu0 0.0
    %4452 = vmatprep.subr.mxu0 0.0
    %4453 = vmatpush2.msra.mxu0 0.0
    %4454 = vmatprep.subr.mxu0 0.0
    %4455 = vmatpush2.msra.mxu0 0.0
    %4456 = vmatprep.subr.mxu0 0.0
    %4457 = vmatpush2.msra.mxu0 0.0
    %4458 = vmatprep.subr.mxu0 0.0
    %4459 = vmatpush2.msra.mxu0 0.0
    %4460 = vmatprep.subr.mxu0 0.0
    %4461 = vmatpush2.msra.mxu0 0.0
    %4462 = vmatprep.subr.mxu0 0.0
    %4463 = vmatpush2.msra.mxu0 0.0
    %4464 = vmatprep.subr.mxu0 0.0
    %4465 = vmatpush2.msra.mxu0 0.0
    %4466 = vmatprep.subr.mxu0 0.0
    %4467 = vmatpush2.msra.mxu0 0.0
    %4468 = vmatprep.subr.mxu0 0.0
    %4469 = vmatpush2.msra.mxu0 0.0
    %4470 = vmatprep.subr.mxu0 0.0
    %4471 = vmatpush2.msra.mxu0 0.0
    %4472 = vmatprep.subr.mxu0 0.0
    %4473 = vmatpush2.msra.mxu0 0.0
    %4474 = vmatprep.subr.mxu0 0.0
    %4475 = vmatpush2.msra.mxu0 0.0
    %4476 = vmatprep.subr.mxu0 0.0
    %4477 = vmatpush2.msra.mxu0 0.0
    %4478 = vmatprep.subr.mxu0 0.0
    %4479 = vmatpush2.msra.mxu0 0.0
    %4480 = vmatprep.subr.mxu0 0.0
    %4481 = vmatpush2.msra.mxu0 0.0
    %4482 = vmatprep.mubr.f32.mxu0 0.0
    %4483 = vmatmul.mubr.f32.gmra.mxu0 %v4416
    %v4484 = vpop.f32.mrf.mxu0
    %v4485 = vadd.f32 0.0, %v4484
    %v4486 = vpop.f32.mrf.mxu0
    %4487 = vdwg.mxu0
    %v4488 = vadd.f32 %v4406, %v4485
    %v4489 = vld [vmem:[%s2913] sm:$0xff]
    %v4490 = vld [vmem:[%s2913 + $0x8] sm:$0xff]
    %v4491 = vld [vmem:[%s2913 + $0x10] sm:$0xff]
    %v4492 = vld [vmem:[%s2913 + $0x18] sm:$0xff]
    %v4493 = vld [vmem:[%s2913 + $0x20] sm:$0xff]
    %v4494 = vld [vmem:[%s2913 + $0x28] sm:$0xff]
    %v4495 = vld [vmem:[%s2913 + $0x30] sm:$0xff]
    %v4496 = vld [vmem:[%s2913 + $0x38] sm:$0xff]
    %v4497 = vrot.slane %v2080, 1
    %v4498 = vsel %vm2091, %v4497, 0
    %4500 = vmatprep.subr.mxu0 0.0
    %4501 = vmatpush1.msra.mxu0 0.0
    %4502 = vmatprep.subr.mxu0 0.0
    %4503 = vmatpush1.msra.mxu0 0.0
    %4504 = vmatprep.subr.mxu0 0.0
    %4505 = vmatpush1.msra.mxu0 0.0
    %4506 = vmatprep.subr.mxu0 0.0
    %4507 = vmatpush1.msra.mxu0 0.0
    %4508 = vmatprep.subr.mxu0 0.0
    %4509 = vmatpush1.msra.mxu0 0.0
    %4510 = vmatprep.subr.mxu0 0.0
    %4511 = vmatpush1.msra.mxu0 0.0
    %4512 = vmatprep.subr.mxu0 0.0
    %4513 = vmatpush1.msra.mxu0 0.0
    %4514 = vmatprep.subr.mxu0 0.0
    %4515 = vmatpush1.msra.mxu0 0.0
    %4516 = vmatprep.subr.mxu0 0.0
    %4517 = vmatpush1.msra.mxu0 %v4496
    %4518 = vmatprep.subr.mxu0 0.0
    %4519 = vmatpush1.msra.mxu0 %v4495
    %4520 = vmatprep.subr.mxu0 0.0
    %4521 = vmatpush1.msra.mxu0 %v4494
    %4522 = vmatprep.subr.mxu0 0.0
    %4523 = vmatpush1.msra.mxu0 %v4493
    %4524 = vmatprep.subr.mxu0 0.0
    %4525 = vmatpush1.msra.mxu0 %v4492
    %4526 = vmatprep.subr.mxu0 0.0
    %4527 = vmatpush1.msra.mxu0 %v4491
    %4528 = vmatprep.subr.mxu0 0.0
    %4529 = vmatpush1.msra.mxu0 %v4490
    %4530 = vmatprep.subr.mxu0 0.0
    %4531 = vmatpush1.msra.mxu0 %v4489
    %4532 = vmatprep.subr.mxu0 0.0
    %4533 = vmatpush2.msra.mxu0 0.0
    %4534 = vmatprep.subr.mxu0 0.0
    %4535 = vmatpush2.msra.mxu0 0.0
    %4536 = vmatprep.subr.mxu0 0.0
    %4537 = vmatpush2.msra.mxu0 0.0
    %4538 = vmatprep.subr.mxu0 0.0
    %4539 = vmatpush2.msra.mxu0 0.0
    %4540 = vmatprep.subr.mxu0 0.0
    %4541 = vmatpush2.msra.mxu0 0.0
    %4542 = vmatprep.subr.mxu0 0.0
    %4543 = vmatpush2.msra.mxu0 0.0
    %4544 = vmatprep.subr.mxu0 0.0
    %4545 = vmatpush2.msra.mxu0 0.0
    %4546 = vmatprep.subr.mxu0 0.0
    %4547 = vmatpush2.msra.mxu0 0.0
    %4548 = vmatprep.subr.mxu0 0.0
    %4549 = vmatpush2.msra.mxu0 0.0
    %4550 = vmatprep.subr.mxu0 0.0
    %4551 = vmatpush2.msra.mxu0 0.0
    %4552 = vmatprep.subr.mxu0 0.0
    %4553 = vmatpush2.msra.mxu0 0.0
    %4554 = vmatprep.subr.mxu0 0.0
    %4555 = vmatpush2.msra.mxu0 0.0
    %4556 = vmatprep.subr.mxu0 0.0
    %4557 = vmatpush2.msra.mxu0 0.0
    %4558 = vmatprep.subr.mxu0 0.0
    %4559 = vmatpush2.msra.mxu0 0.0
    %4560 = vmatprep.subr.mxu0 0.0
    %4561 = vmatpush2.msra.mxu0 0.0
    %4562 = vmatprep.subr.mxu0 0.0
    %4563 = vmatpush2.msra.mxu0 0.0
    %4564 = vmatprep.mubr.f32.mxu0 0.0
    %4565 = vmatmul.mubr.f32.gmra.mxu0 %v4498
    %v4566 = vpop.f32.mrf.mxu0
    %v4567 = vadd.f32 0.0, %v4566
    %v4568 = vpop.f32.mrf.mxu0
    %4569 = vdwg.mxu0
    %v4570 = vadd.f32 %v4488, %v4567
    %v4571 = vld [vmem:[%s2996] sm:$0xff]
    %v4572 = vld [vmem:[%s2996 + $0x8] sm:$0xff]
    %v4573 = vld [vmem:[%s2996 + $0x10] sm:$0xff]
    %v4574 = vld [vmem:[%s2996 + $0x18] sm:$0xff]
    %v4575 = vld [vmem:[%s2996 + $0x20] sm:$0xff]
    %v4576 = vld [vmem:[%s2996 + $0x28] sm:$0xff]
    %v4577 = vld [vmem:[%s2996 + $0x30] sm:$0xff]
    %v4578 = vld [vmem:[%s2996 + $0x38] sm:$0xff]
    %v4579 = vrot.slane %v2080, 2
    %v4580 = vsel %vm2091, %v4579, 0
    %4582 = vmatprep.subr.mxu0 0.0
    %4583 = vmatpush1.msra.mxu0 0.0
    %4584 = vmatprep.subr.mxu0 0.0
    %4585 = vmatpush1.msra.mxu0 0.0
    %4586 = vmatprep.subr.mxu0 0.0
    %4587 = vmatpush1.msra.mxu0 0.0
    %4588 = vmatprep.subr.mxu0 0.0
    %4589 = vmatpush1.msra.mxu0 0.0
    %4590 = vmatprep.subr.mxu0 0.0
    %4591 = vmatpush1.msra.mxu0 0.0
    %4592 = vmatprep.subr.mxu0 0.0
    %4593 = vmatpush1.msra.mxu0 0.0
    %4594 = vmatprep.subr.mxu0 0.0
    %4595 = vmatpush1.msra.mxu0 0.0
    %4596 = vmatprep.subr.mxu0 0.0
    %4597 = vmatpush1.msra.mxu0 0.0
    %4598 = vmatprep.subr.mxu0 0.0
    %4599 = vmatpush1.msra.mxu0 %v4578
    %4600 = vmatprep.subr.mxu0 0.0
    %4601 = vmatpush1.msra.mxu0 %v4577
    %4602 = vmatprep.subr.mxu0 0.0
    %4603 = vmatpush1.msra.mxu0 %v4576
    %4604 = vmatprep.subr.mxu0 0.0
    %4605 = vmatpush1.msra.mxu0 %v4575
    %4606 = vmatprep.subr.mxu0 0.0
    %4607 = vmatpush1.msra.mxu0 %v4574
    %4608 = vmatprep.subr.mxu0 0.0
    %4609 = vmatpush1.msra.mxu0 %v4573
    %4610 = vmatprep.subr.mxu0 0.0
    %4611 = vmatpush1.msra.mxu0 %v4572
    %4612 = vmatprep.subr.mxu0 0.0
    %4613 = vmatpush1.msra.mxu0 %v4571
    %4614 = vmatprep.subr.mxu0 0.0
    %4615 = vmatpush2.msra.mxu0 0.0
    %4616 = vmatprep.subr.mxu0 0.0
    %4617 = vmatpush2.msra.mxu0 0.0
    %4618 = vmatprep.subr.mxu0 0.0
    %4619 = vmatpush2.msra.mxu0 0.0
    %4620 = vmatprep.subr.mxu0 0.0
    %4621 = vmatpush2.msra.mxu0 0.0
    %4622 = vmatprep.subr.mxu0 0.0
    %4623 = vmatpush2.msra.mxu0 0.0
    %4624 = vmatprep.subr.mxu0 0.0
    %4625 = vmatpush2.msra.mxu0 0.0
    %4626 = vmatprep.subr.mxu0 0.0
    %4627 = vmatpush2.msra.mxu0 0.0
    %4628 = vmatprep.subr.mxu0 0.0
    %4629 = vmatpush2.msra.mxu0 0.0
    %4630 = vmatprep.subr.mxu0 0.0
    %4631 = vmatpush2.msra.mxu0 0.0
    %4632 = vmatprep.subr.mxu0 0.0
    %4633 = vmatpush2.msra.mxu0 0.0
    %4634 = vmatprep.subr.mxu0 0.0
    %4635 = vmatpush2.msra.mxu0 0.0
    %4636 = vmatprep.subr.mxu0 0.0
    %4637 = vmatpush2.msra.mxu0 0.0
    %4638 = vmatprep.subr.mxu0 0.0
    %4639 = vmatpush2.msra.mxu0 0.0
    %4640 = vmatprep.subr.mxu0 0.0
    %4641 = vmatpush2.msra.mxu0 0.0
    %4642 = vmatprep.subr.mxu0 0.0
    %4643 = vmatpush2.msra.mxu0 0.0
    %4644 = vmatprep.subr.mxu0 0.0
    %4645 = vmatpush2.msra.mxu0 0.0
    %4646 = vmatprep.mubr.f32.mxu0 0.0
    %4647 = vmatmul.mubr.f32.gmra.mxu0 %v4580
    %v4648 = vpop.f32.mrf.mxu0
    %v4649 = vadd.f32 0.0, %v4648
    %v4650 = vpop.f32.mrf.mxu0
    %4651 = vdwg.mxu0
    %v4652 = vadd.f32 %v4570, %v4649
    %v4653 = vld [vmem:[%s3079] sm:$0xff]
    %v4654 = vld [vmem:[%s3079 + $0x8] sm:$0xff]
    %v4655 = vld [vmem:[%s3079 + $0x10] sm:$0xff]
    %v4656 = vld [vmem:[%s3079 + $0x18] sm:$0xff]
    %v4657 = vld [vmem:[%s3079 + $0x20] sm:$0xff]
    %v4658 = vld [vmem:[%s3079 + $0x28] sm:$0xff]
    %v4659 = vld [vmem:[%s3079 + $0x30] sm:$0xff]
    %v4660 = vld [vmem:[%s3079 + $0x38] sm:$0xff]
    %v4661 = vrot.slane %v2080, 6
    %v4662 = vsel %vm2091, %v4661, 0
    %4664 = vmatprep.subr.mxu0 0.0
    %4665 = vmatpush1.msra.mxu0 0.0
    %4666 = vmatprep.subr.mxu0 0.0
    %4667 = vmatpush1.msra.mxu0 0.0
    %4668 = vmatprep.subr.mxu0 0.0
    %4669 = vmatpush1.msra.mxu0 0.0
    %4670 = vmatprep.subr.mxu0 0.0
    %4671 = vmatpush1.msra.mxu0 0.0
    %4672 = vmatprep.subr.mxu0 0.0
    %4673 = vmatpush1.msra.mxu0 0.0
    %4674 = vmatprep.subr.mxu0 0.0
    %4675 = vmatpush1.msra.mxu0 0.0
    %4676 = vmatprep.subr.mxu0 0.0
    %4677 = vmatpush1.msra.mxu0 0.0
    %4678 = vmatprep.subr.mxu0 0.0
    %4679 = vmatpush1.msra.mxu0 0.0
    %4680 = vmatprep.subr.mxu0 0.0
    %4681 = vmatpush1.msra.mxu0 %v4660
    %4682 = vmatprep.subr.mxu0 0.0
    %4683 = vmatpush1.msra.mxu0 %v4659
    %4684 = vmatprep.subr.mxu0 0.0
    %4685 = vmatpush1.msra.mxu0 %v4658
    %4686 = vmatprep.subr.mxu0 0.0
    %4687 = vmatpush1.msra.mxu0 %v4657
    %4688 = vmatprep.subr.mxu0 0.0
    %4689 = vmatpush1.msra.mxu0 %v4656
    %4690 = vmatprep.subr.mxu0 0.0
    %4691 = vmatpush1.msra.mxu0 %v4655
    %4692 = vmatprep.subr.mxu0 0.0
    %4693 = vmatpush1.msra.mxu0 %v4654
    %4694 = vmatprep.subr.mxu0 0.0
    %4695 = vmatpush1.msra.mxu0 %v4653
    %4696 = vmatprep.subr.mxu0 0.0
    %4697 = vmatpush2.msra.mxu0 0.0
    %4698 = vmatprep.subr.mxu0 0.0
    %4699 = vmatpush2.msra.mxu0 0.0
    %4700 = vmatprep.subr.mxu0 0.0
    %4701 = vmatpush2.msra.mxu0 0.0
    %4702 = vmatprep.subr.mxu0 0.0
    %4703 = vmatpush2.msra.mxu0 0.0
    %4704 = vmatprep.subr.mxu0 0.0
    %4705 = vmatpush2.msra.mxu0 0.0
    %4706 = vmatprep.subr.mxu0 0.0
    %4707 = vmatpush2.msra.mxu0 0.0
    %4708 = vmatprep.subr.mxu0 0.0
    %4709 = vmatpush2.msra.mxu0 0.0
    %4710 = vmatprep.subr.mxu0 0.0
    %4711 = vmatpush2.msra.mxu0 0.0
    %4712 = vmatprep.subr.mxu0 0.0
    %4713 = vmatpush2.msra.mxu0 0.0
    %4714 = vmatprep.subr.mxu0 0.0
    %4715 = vmatpush2.msra.mxu0 0.0
    %4716 = vmatprep.subr.mxu0 0.0
    %4717 = vmatpush2.msra.mxu0 0.0
    %4718 = vmatprep.subr.mxu0 0.0
    %4719 = vmatpush2.msra.mxu0 0.0
    %4720 = vmatprep.subr.mxu0 0.0
    %4721 = vmatpush2.msra.mxu0 0.0
    %4722 = vmatprep.subr.mxu0 0.0
    %4723 = vmatpush2.msra.mxu0 0.0
    %4724 = vmatprep.subr.mxu0 0.0
    %4725 = vmatpush2.msra.mxu0 0.0
    %4726 = vmatprep.subr.mxu0 0.0
    %4727 = vmatpush2.msra.mxu0 0.0
    %4728 = vmatprep.mubr.f32.mxu0 0.0
    %4729 = vmatmul.mubr.f32.gmra.mxu0 %v4662
    %v4730 = vpop.f32.mrf.mxu0
    %v4731 = vadd.f32 0.0, %v4730
    %v4732 = vpop.f32.mrf.mxu0
    %4733 = vdwg.mxu0
    %v4734 = vadd.f32 %v4652, %v4731
    %v4735 = vld [vmem:[%s3162] sm:$0xff]
    %v4736 = vld [vmem:[%s3162 + $0x8] sm:$0xff]
    %v4737 = vld [vmem:[%s3162 + $0x10] sm:$0xff]
    %v4738 = vld [vmem:[%s3162 + $0x18] sm:$0xff]
    %v4739 = vld [vmem:[%s3162 + $0x20] sm:$0xff]
    %v4740 = vld [vmem:[%s3162 + $0x28] sm:$0xff]
    %v4741 = vld [vmem:[%s3162 + $0x30] sm:$0xff]
    %v4742 = vld [vmem:[%s3162 + $0x38] sm:$0xff]
    %v4743 = vrot.slane %v2080, 7
    %v4744 = vsel %vm2091, %v4743, 0
    %4746 = vmatprep.subr.mxu0 0.0
    %4747 = vmatpush1.msra.mxu0 0.0
    %4748 = vmatprep.subr.mxu0 0.0
    %4749 = vmatpush1.msra.mxu0 0.0
    %4750 = vmatprep.subr.mxu0 0.0
    %4751 = vmatpush1.msra.mxu0 0.0
    %4752 = vmatprep.subr.mxu0 0.0
    %4753 = vmatpush1.msra.mxu0 0.0
    %4754 = vmatprep.subr.mxu0 0.0
    %4755 = vmatpush1.msra.mxu0 0.0
    %4756 = vmatprep.subr.mxu0 0.0
    %4757 = vmatpush1.msra.mxu0 0.0
    %4758 = vmatprep.subr.mxu0 0.0
    %4759 = vmatpush1.msra.mxu0 0.0
    %4760 = vmatprep.subr.mxu0 0.0
    %4761 = vmatpush1.msra.mxu0 0.0
    %4762 = vmatprep.subr.mxu0 0.0
    %4763 = vmatpush1.msra.mxu0 %v4742
    %4764 = vmatprep.subr.mxu0 0.0
    %4765 = vmatpush1.msra.mxu0 %v4741
    %4766 = vmatprep.subr.mxu0 0.0
    %4767 = vmatpush1.msra.mxu0 %v4740
    %4768 = vmatprep.subr.mxu0 0.0
    %4769 = vmatpush1.msra.mxu0 %v4739
    %4770 = vmatprep.subr.mxu0 0.0
    %4771 = vmatpush1.msra.mxu0 %v4738
    %4772 = vmatprep.subr.mxu0 0.0
    %4773 = vmatpush1.msra.mxu0 %v4737
    %4774 = vmatprep.subr.mxu0 0.0
    %4775 = vmatpush1.msra.mxu0 %v4736
    %4776 = vmatprep.subr.mxu0 0.0
    %4777 = vmatpush1.msra.mxu0 %v4735
    %4778 = vmatprep.subr.mxu0 0.0
    %4779 = vmatpush2.msra.mxu0 0.0
    %4780 = vmatprep.subr.mxu0 0.0
    %4781 = vmatpush2.msra.mxu0 0.0
    %4782 = vmatprep.subr.mxu0 0.0
    %4783 = vmatpush2.msra.mxu0 0.0
    %4784 = vmatprep.subr.mxu0 0.0
    %4785 = vmatpush2.msra.mxu0 0.0
    %4786 = vmatprep.subr.mxu0 0.0
    %4787 = vmatpush2.msra.mxu0 0.0
    %4788 = vmatprep.subr.mxu0 0.0
    %4789 = vmatpush2.msra.mxu0 0.0
    %4790 = vmatprep.subr.mxu0 0.0
    %4791 = vmatpush2.msra.mxu0 0.0
    %4792 = vmatprep.subr.mxu0 0.0
    %4793 = vmatpush2.msra.mxu0 0.0
    %4794 = vmatprep.subr.mxu0 0.0
    %4795 = vmatpush2.msra.mxu0 0.0
    %4796 = vmatprep.subr.mxu0 0.0
    %4797 = vmatpush2.msra.mxu0 0.0
    %4798 = vmatprep.subr.mxu0 0.0
    %4799 = vmatpush2.msra.mxu0 0.0
    %4800 = vmatprep.subr.mxu0 0.0
    %4801 = vmatpush2.msra.mxu0 0.0
    %4802 = vmatprep.subr.mxu0 0.0
    %4803 = vmatpush2.msra.mxu0 0.0
    %4804 = vmatprep.subr.mxu0 0.0
    %4805 = vmatpush2.msra.mxu0 0.0
    %4806 = vmatprep.subr.mxu0 0.0
    %4807 = vmatpush2.msra.mxu0 0.0
    %4808 = vmatprep.subr.mxu0 0.0
    %4809 = vmatpush2.msra.mxu0 0.0
    %4810 = vmatprep.mubr.f32.mxu0 0.0
    %4811 = vmatmul.mubr.f32.gmra.mxu0 %v4744
    %v4812 = vpop.f32.mrf.mxu0
    %v4813 = vadd.f32 0.0, %v4812
    %v4814 = vpop.f32.mrf.mxu0
    %4815 = vdwg.mxu0
    %v4816 = vadd.f32 %v4734, %v4813
    %v4817 = vld [vmem:[%s3245] sm:$0xff]
    %v4818 = vld [vmem:[%s3245 + $0x8] sm:$0xff]
    %v4819 = vld [vmem:[%s3245 + $0x10] sm:$0xff]
    %v4820 = vld [vmem:[%s3245 + $0x18] sm:$0xff]
    %v4821 = vld [vmem:[%s3245 + $0x20] sm:$0xff]
    %v4822 = vld [vmem:[%s3245 + $0x28] sm:$0xff]
    %v4823 = vld [vmem:[%s3245 + $0x30] sm:$0xff]
    %v4824 = vld [vmem:[%s3245 + $0x38] sm:$0xff]
    %v4826 = vsel %vm2091, %v2081, 0
    %4828 = vmatprep.subr.mxu0 0.0
    %4829 = vmatpush1.msra.mxu0 0.0
    %4830 = vmatprep.subr.mxu0 0.0
    %4831 = vmatpush1.msra.mxu0 0.0
    %4832 = vmatprep.subr.mxu0 0.0
    %4833 = vmatpush1.msra.mxu0 0.0
    %4834 = vmatprep.subr.mxu0 0.0
    %4835 = vmatpush1.msra.mxu0 0.0
    %4836 = vmatprep.subr.mxu0 0.0
    %4837 = vmatpush1.msra.mxu0 0.0
    %4838 = vmatprep.subr.mxu0 0.0
    %4839 = vmatpush1.msra.mxu0 0.0
    %4840 = vmatprep.subr.mxu0 0.0
    %4841 = vmatpush1.msra.mxu0 0.0
    %4842 = vmatprep.subr.mxu0 0.0
    %4843 = vmatpush1.msra.mxu0 0.0
    %4844 = vmatprep.subr.mxu0 0.0
    %4845 = vmatpush1.msra.mxu0 %v4824
    %4846 = vmatprep.subr.mxu0 0.0
    %4847 = vmatpush1.msra.mxu0 %v4823
    %4848 = vmatprep.subr.mxu0 0.0
    %4849 = vmatpush1.msra.mxu0 %v4822
    %4850 = vmatprep.subr.mxu0 0.0
    %4851 = vmatpush1.msra.mxu0 %v4821
    %4852 = vmatprep.subr.mxu0 0.0
    %4853 = vmatpush1.msra.mxu0 %v4820
    %4854 = vmatprep.subr.mxu0 0.0
    %4855 = vmatpush1.msra.mxu0 %v4819
    %4856 = vmatprep.subr.mxu0 0.0
    %4857 = vmatpush1.msra.mxu0 %v4818
    %4858 = vmatprep.subr.mxu0 0.0
    %4859 = vmatpush1.msra.mxu0 %v4817
    %4860 = vmatprep.subr.mxu0 0.0
    %4861 = vmatpush2.msra.mxu0 0.0
    %4862 = vmatprep.subr.mxu0 0.0
    %4863 = vmatpush2.msra.mxu0 0.0
    %4864 = vmatprep.subr.mxu0 0.0
    %4865 = vmatpush2.msra.mxu0 0.0
    %4866 = vmatprep.subr.mxu0 0.0
    %4867 = vmatpush2.msra.mxu0 0.0
    %4868 = vmatprep.subr.mxu0 0.0
    %4869 = vmatpush2.msra.mxu0 0.0
    %4870 = vmatprep.subr.mxu0 0.0
    %4871 = vmatpush2.msra.mxu0 0.0
    %4872 = vmatprep.subr.mxu0 0.0
    %4873 = vmatpush2.msra.mxu0 0.0
    %4874 = vmatprep.subr.mxu0 0.0
    %4875 = vmatpush2.msra.mxu0 0.0
    %4876 = vmatprep.subr.mxu0 0.0
    %4877 = vmatpush2.msra.mxu0 0.0
    %4878 = vmatprep.subr.mxu0 0.0
    %4879 = vmatpush2.msra.mxu0 0.0
    %4880 = vmatprep.subr.mxu0 0.0
    %4881 = vmatpush2.msra.mxu0 0.0
    %4882 = vmatprep.subr.mxu0 0.0
    %4883 = vmatpush2.msra.mxu0 0.0
    %4884 = vmatprep.subr.mxu0 0.0
    %4885 = vmatpush2.msra.mxu0 0.0
    %4886 = vmatprep.subr.mxu0 0.0
    %4887 = vmatpush2.msra.mxu0 0.0
    %4888 = vmatprep.subr.mxu0 0.0
    %4889 = vmatpush2.msra.mxu0 0.0
    %4890 = vmatprep.subr.mxu0 0.0
    %4891 = vmatpush2.msra.mxu0 0.0
    %4892 = vmatprep.mubr.f32.mxu0 0.0
    %4893 = vmatmul.mubr.f32.gmra.mxu0 %v4826
    %v4894 = vpop.f32.mrf.mxu0
    %v4895 = vadd.f32 0.0, %v4894
    %v4896 = vpop.f32.mrf.mxu0
    %4897 = vdwg.mxu0
    %v4898 = vadd.f32 %v4816, %v4895
    %v4899 = vld [vmem:[%s3328] sm:$0xff]
    %v4900 = vld [vmem:[%s3328 + $0x8] sm:$0xff]
    %v4901 = vld [vmem:[%s3328 + $0x10] sm:$0xff]
    %v4902 = vld [vmem:[%s3328 + $0x18] sm:$0xff]
    %v4903 = vld [vmem:[%s3328 + $0x20] sm:$0xff]
    %v4904 = vld [vmem:[%s3328 + $0x28] sm:$0xff]
    %v4905 = vld [vmem:[%s3328 + $0x30] sm:$0xff]
    %v4906 = vld [vmem:[%s3328 + $0x38] sm:$0xff]
    %v4907 = vrot.slane %v2081, 1
    %v4908 = vsel %vm2091, %v4907, 0
    %4910 = vmatprep.subr.mxu0 0.0
    %4911 = vmatpush1.msra.mxu0 0.0
    %4912 = vmatprep.subr.mxu0 0.0
    %4913 = vmatpush1.msra.mxu0 0.0
    %4914 = vmatprep.subr.mxu0 0.0
    %4915 = vmatpush1.msra.mxu0 0.0
    %4916 = vmatprep.subr.mxu0 0.0
    %4917 = vmatpush1.msra.mxu0 0.0
    %4918 = vmatprep.subr.mxu0 0.0
    %4919 = vmatpush1.msra.mxu0 0.0
    %4920 = vmatprep.subr.mxu0 0.0
    %4921 = vmatpush1.msra.mxu0 0.0
    %4922 = vmatprep.subr.mxu0 0.0
    %4923 = vmatpush1.msra.mxu0 0.0
    %4924 = vmatprep.subr.mxu0 0.0
    %4925 = vmatpush1.msra.mxu0 0.0
    %4926 = vmatprep.subr.mxu0 0.0
    %4927 = vmatpush1.msra.mxu0 %v4906
    %4928 = vmatprep.subr.mxu0 0.0
    %4929 = vmatpush1.msra.mxu0 %v4905
    %4930 = vmatprep.subr.mxu0 0.0
    %4931 = vmatpush1.msra.mxu0 %v4904
    %4932 = vmatprep.subr.mxu0 0.0
    %4933 = vmatpush1.msra.mxu0 %v4903
    %4934 = vmatprep.subr.mxu0 0.0
    %4935 = vmatpush1.msra.mxu0 %v4902
    %4936 = vmatprep.subr.mxu0 0.0
    %4937 = vmatpush1.msra.mxu0 %v4901
    %4938 = vmatprep.subr.mxu0 0.0
    %4939 = vmatpush1.msra.mxu0 %v4900
    %4940 = vmatprep.subr.mxu0 0.0
    %4941 = vmatpush1.msra.mxu0 %v4899
    %4942 = vmatprep.subr.mxu0 0.0
    %4943 = vmatpush2.msra.mxu0 0.0
    %4944 = vmatprep.subr.mxu0 0.0
    %4945 = vmatpush2.msra.mxu0 0.0
    %4946 = vmatprep.subr.mxu0 0.0
    %4947 = vmatpush2.msra.mxu0 0.0
    %4948 = vmatprep.subr.mxu0 0.0
    %4949 = vmatpush2.msra.mxu0 0.0
    %4950 = vmatprep.subr.mxu0 0.0
    %4951 = vmatpush2.msra.mxu0 0.0
    %4952 = vmatprep.subr.mxu0 0.0
    %4953 = vmatpush2.msra.mxu0 0.0
    %4954 = vmatprep.subr.mxu0 0.0
    %4955 = vmatpush2.msra.mxu0 0.0
    %4956 = vmatprep.subr.mxu0 0.0
    %4957 = vmatpush2.msra.mxu0 0.0
    %4958 = vmatprep.subr.mxu0 0.0
    %4959 = vmatpush2.msra.mxu0 0.0
    %4960 = vmatprep.subr.mxu0 0.0
    %4961 = vmatpush2.msra.mxu0 0.0
    %4962 = vmatprep.subr.mxu0 0.0
    %4963 = vmatpush2.msra.mxu0 0.0
    %4964 = vmatprep.subr.mxu0 0.0
    %4965 = vmatpush2.msra.mxu0 0.0
    %4966 = vmatprep.subr.mxu0 0.0
    %4967 = vmatpush2.msra.mxu0 0.0
    %4968 = vmatprep.subr.mxu0 0.0
    %4969 = vmatpush2.msra.mxu0 0.0
    %4970 = vmatprep.subr.mxu0 0.0
    %4971 = vmatpush2.msra.mxu0 0.0
    %4972 = vmatprep.subr.mxu0 0.0
    %4973 = vmatpush2.msra.mxu0 0.0
    %4974 = vmatprep.mubr.f32.mxu0 0.0
    %4975 = vmatmul.mubr.f32.gmra.mxu0 %v4908
    %v4976 = vpop.f32.mrf.mxu0
    %v4977 = vadd.f32 0.0, %v4976
    %v4978 = vpop.f32.mrf.mxu0
    %4979 = vdwg.mxu0
    %v4980 = vadd.f32 %v4898, %v4977
    %v4981 = vmax.f32 %v4980, 0.0
    %v4982 = vld [vmem:[%s9] sm:$0xff]
    %v4983 = vld [vmem:[%s9 + $0x8] sm:$0xff]
    %v4984 = vld [vmem:[%s9 + $0x10] sm:$0xff]
    %v4985 = vld [vmem:[%s9 + $0x18] sm:$0xff]
    %v4986 = vld [vmem:[%s9 + $0x20] sm:$0xff]
    %v4987 = vld [vmem:[%s9 + $0x28] sm:$0xff]
    %v4988 = vld [vmem:[%s9 + $0x30] sm:$0xff]
    %v4989 = vld [vmem:[%s9 + $0x38] sm:$0xff]
    %v4990 = vld [vmem:[%s9 + $0x40] sm:$0xff]
    %v4991 = vld [vmem:[%s9 + $0x48] sm:$0xff]
    %v4992 = vld [vmem:[%s9 + $0x50] sm:$0xff]
    %v4993 = vld [vmem:[%s9 + $0x58] sm:$0xff]
    %v4994 = vld [vmem:[%s9 + $0x60] sm:$0xff]
    %v4995 = vld [vmem:[%s9 + $0x68] sm:$0xff]
    %v4996 = vld [vmem:[%s9 + $0x70] sm:$0xff]
    %v4997 = vld [vmem:[%s9 + $0x78] sm:$0xff]
    %v4998 = vld [vmem:[%s10] sm:$0x1]
    %4999 = vmatprep.subr.mxu0 0.0
    %5000 = vmatpush1.msra.mxu0 %v4997
    %5001 = vmatprep.subr.mxu0 0.0
    %5002 = vmatpush1.msra.mxu0 %v4996
    %5003 = vmatprep.subr.mxu0 0.0
    %5004 = vmatpush1.msra.mxu0 %v4995
    %5005 = vmatprep.subr.mxu0 0.0
    %5006 = vmatpush1.msra.mxu0 %v4994
    %5007 = vmatprep.subr.mxu0 0.0
    %5008 = vmatpush1.msra.mxu0 %v4993
    %5009 = vmatprep.subr.mxu0 0.0
    %5010 = vmatpush1.msra.mxu0 %v4992
    %5011 = vmatprep.subr.mxu0 0.0
    %5012 = vmatpush1.msra.mxu0 %v4991
    %5013 = vmatprep.subr.mxu0 0.0
    %5014 = vmatpush1.msra.mxu0 %v4990
    %5015 = vmatprep.subr.mxu0 0.0
    %5016 = vmatpush1.msra.mxu0 %v4989
    %5017 = vmatprep.subr.mxu0 0.0
    %5018 = vmatpush1.msra.mxu0 %v4988
    %5019 = vmatprep.subr.mxu0 0.0
    %5020 = vmatpush1.msra.mxu0 %v4987
    %5021 = vmatprep.subr.mxu0 0.0
    %5022 = vmatpush1.msra.mxu0 %v4986
    %5023 = vmatprep.subr.mxu0 0.0
    %5024 = vmatpush1.msra.mxu0 %v4985
    %5025 = vmatprep.subr.mxu0 0.0
    %5026 = vmatpush1.msra.mxu0 %v4984
    %5027 = vmatprep.subr.mxu0 0.0
    %5028 = vmatpush1.msra.mxu0 %v4983
    %5029 = vmatprep.subr.mxu0 0.0
    %5030 = vmatpush1.msra.mxu0 %v4982
    %5031 = vmatprep.subr.mxu0 0.0
    %5032 = vmatpush2.msra.mxu0 0.0
    %5033 = vmatprep.subr.mxu0 0.0
    %5034 = vmatpush2.msra.mxu0 0.0
    %5035 = vmatprep.subr.mxu0 0.0
    %5036 = vmatpush2.msra.mxu0 0.0
    %5037 = vmatprep.subr.mxu0 0.0
    %5038 = vmatpush2.msra.mxu0 0.0
    %5039 = vmatprep.subr.mxu0 0.0
    %5040 = vmatpush2.msra.mxu0 0.0
    %5041 = vmatprep.subr.mxu0 0.0
    %5042 = vmatpush2.msra.mxu0 0.0
    %5043 = vmatprep.subr.mxu0 0.0
    %5044 = vmatpush2.msra.mxu0 0.0
    %5045 = vmatprep.subr.mxu0 0.0
    %5046 = vmatpush2.msra.mxu0 0.0
    %5047 = vmatprep.subr.mxu0 0.0
    %5048 = vmatpush2.msra.mxu0 0.0
    %5049 = vmatprep.subr.mxu0 0.0
    %5050 = vmatpush2.msra.mxu0 0.0
    %5051 = vmatprep.subr.mxu0 0.0
    %5052 = vmatpush2.msra.mxu0 0.0
    %5053 = vmatprep.subr.mxu0 0.0
    %5054 = vmatpush2.msra.mxu0 0.0
    %5055 = vmatprep.subr.mxu0 0.0
    %5056 = vmatpush2.msra.mxu0 0.0
    %5057 = vmatprep.subr.mxu0 0.0
    %5058 = vmatpush2.msra.mxu0 0.0
    %5059 = vmatprep.subr.mxu0 0.0
    %5060 = vmatpush2.msra.mxu0 0.0
    %5061 = vmatprep.subr.mxu0 0.0
    %5062 = vmatpush2.msra.mxu0 0.0
    %5063 = vmatprep.mubr.f32.mxu0 0.0
    %5064 = vmatmul.mubr.f32.gmra.mxu0 %v4981
    %v5065 = vpop.f32.mrf.mxu0
    %v5066 = vadd.f32 %v4998, %v5065
    %v5067 = vpop.f32.mrf.mxu0
    %5068 = vdwg.mxu0
    %v5069 = vmax.f32 %v5066, 0.0
    %v5070 = vld [vmem:[%s11] sm:$0xff]
    %v5071 = vld [vmem:[%s11 + $0x8] sm:$0xff]
    %v5072 = vld [vmem:[%s11 + $0x10] sm:$0xff]
    %v5073 = vld [vmem:[%s11 + $0x18] sm:$0xff]
    %v5074 = vld [vmem:[%s11 + $0x20] sm:$0xff]
    %v5075 = vld [vmem:[%s11 + $0x28] sm:$0xff]
    %v5076 = vld [vmem:[%s11 + $0x30] sm:$0xff]
    %v5077 = vld [vmem:[%s11 + $0x38] sm:$0xff]
    %v5078 = vld [vmem:[%s12] sm:$0x1]
    %v5080 = vsel %vm2091, %v5069, 0
    %5082 = vmatprep.subr.mxu0 0.0
    %5083 = vmatpush1.msra.mxu0 0.0
    %5084 = vmatprep.subr.mxu0 0.0
    %5085 = vmatpush1.msra.mxu0 0.0
    %5086 = vmatprep.subr.mxu0 0.0
    %5087 = vmatpush1.msra.mxu0 0.0
    %5088 = vmatprep.subr.mxu0 0.0
    %5089 = vmatpush1.msra.mxu0 0.0
    %5090 = vmatprep.subr.mxu0 0.0
    %5091 = vmatpush1.msra.mxu0 0.0
    %5092 = vmatprep.subr.mxu0 0.0
    %5093 = vmatpush1.msra.mxu0 0.0
    %5094 = vmatprep.subr.mxu0 0.0
    %5095 = vmatpush1.msra.mxu0 0.0
    %5096 = vmatprep.subr.mxu0 0.0
    %5097 = vmatpush1.msra.mxu0 0.0
    %5098 = vmatprep.subr.mxu0 0.0
    %5099 = vmatpush1.msra.mxu0 %v5077
    %5100 = vmatprep.subr.mxu0 0.0
    %5101 = vmatpush1.msra.mxu0 %v5076
    %5102 = vmatprep.subr.mxu0 0.0
    %5103 = vmatpush1.msra.mxu0 %v5075
    %5104 = vmatprep.subr.mxu0 0.0
    %5105 = vmatpush1.msra.mxu0 %v5074
    %5106 = vmatprep.subr.mxu0 0.0
    %5107 = vmatpush1.msra.mxu0 %v5073
    %5108 = vmatprep.subr.mxu0 0.0
    %5109 = vmatpush1.msra.mxu0 %v5072
    %5110 = vmatprep.subr.mxu0 0.0
    %5111 = vmatpush1.msra.mxu0 %v5071
    %5112 = vmatprep.subr.mxu0 0.0
    %5113 = vmatpush1.msra.mxu0 %v5070
    %5114 = vmatprep.subr.mxu0 0.0
    %5115 = vmatpush2.msra.mxu0 0.0
    %5116 = vmatprep.subr.mxu0 0.0
    %5117 = vmatpush2.msra.mxu0 0.0
    %5118 = vmatprep.subr.mxu0 0.0
    %5119 = vmatpush2.msra.mxu0 0.0
    %5120 = vmatprep.subr.mxu0 0.0
    %5121 = vmatpush2.msra.mxu0 0.0
    %5122 = vmatprep.subr.mxu0 0.0
    %5123 = vmatpush2.msra.mxu0 0.0
    %5124 = vmatprep.subr.mxu0 0.0
    %5125 = vmatpush2.msra.mxu0 0.0
    %5126 = vmatprep.subr.mxu0 0.0
    %5127 = vmatpush2.msra.mxu0 0.0
    %5128 = vmatprep.subr.mxu0 0.0
    %5129 = vmatpush2.msra.mxu0 0.0
    %5130 = vmatprep.subr.mxu0 0.0
    %5131 = vmatpush2.msra.mxu0 0.0
    %5132 = vmatprep.subr.mxu0 0.0
    %5133 = vmatpush2.msra.mxu0 0.0
    %5134 = vmatprep.subr.mxu0 0.0
    %5135 = vmatpush2.msra.mxu0 0.0
    %5136 = vmatprep.subr.mxu0 0.0
    %5137 = vmatpush2.msra.mxu0 0.0
    %5138 = vmatprep.subr.mxu0 0.0
    %5139 = vmatpush2.msra.mxu0 0.0
    %5140 = vmatprep.subr.mxu0 0.0
    %5141 = vmatpush2.msra.mxu0 0.0
    %5142 = vmatprep.subr.mxu0 0.0
    %5143 = vmatpush2.msra.mxu0 0.0
    %5144 = vmatprep.subr.mxu0 0.0
    %5145 = vmatpush2.msra.mxu0 0.0
    %5146 = vmatprep.mubr.f32.mxu0 0.0
    %5147 = vmatmul.mubr.f32.gmra.mxu0 %v5080
    %v5148 = vpop.f32.mrf.mxu0
    %v5149 = vadd.f32 %v5078, %v5148
    %v5150 = vpop.f32.mrf.mxu0
    %5151 = vdwg.mxu0
    %v5152 = vmax.f32 %v5149, 0.0
    %v5153 = vld [vmem:[%s13] sm:$0xff]
    %v5154 = vld [vmem:[%s13 + $0x8] sm:$0xff]
    %v5155 = vld [vmem:[%s13 + $0x10] sm:$0xff]
    %v5156 = vld [vmem:[%s13 + $0x18] sm:$0xff]
    %v5157 = vld [vmem:[%s13 + $0x20] sm:$0xff]
    %v5158 = vld [vmem:[%s13 + $0x28] sm:$0xff]
    %v5159 = vld [vmem:[%s13 + $0x30] sm:$0xff]
    %v5160 = vld [vmem:[%s13 + $0x38] sm:$0xff]
    %v5161 = vld [vmem:[%s14] sm:$0x1]
    %v5163 = vsel %vm2091, %v5152, 0
    %5165 = vmatprep.subr.mxu0 0.0
    %5166 = vmatpush1.msra.mxu0 0.0
    %5167 = vmatprep.subr.mxu0 0.0
    %5168 = vmatpush1.msra.mxu0 0.0
    %5169 = vmatprep.subr.mxu0 0.0
    %5170 = vmatpush1.msra.mxu0 0.0
    %5171 = vmatprep.subr.mxu0 0.0
    %5172 = vmatpush1.msra.mxu0 0.0
    %5173 = vmatprep.subr.mxu0 0.0
    %5174 = vmatpush1.msra.mxu0 0.0
    %5175 = vmatprep.subr.mxu0 0.0
    %5176 = vmatpush1.msra.mxu0 0.0
    %5177 = vmatprep.subr.mxu0 0.0
    %5178 = vmatpush1.msra.mxu0 0.0
    %5179 = vmatprep.subr.mxu0 0.0
    %5180 = vmatpush1.msra.mxu0 0.0
    %5181 = vmatprep.subr.mxu0 0.0
    %5182 = vmatpush1.msra.mxu0 %v5160
    %5183 = vmatprep.subr.mxu0 0.0
    %5184 = vmatpush1.msra.mxu0 %v5159
    %5185 = vmatprep.subr.mxu0 0.0
    %5186 = vmatpush1.msra.mxu0 %v5158
    %5187 = vmatprep.subr.mxu0 0.0
    %5188 = vmatpush1.msra.mxu0 %v5157
    %5189 = vmatprep.subr.mxu0 0.0
    %5190 = vmatpush1.msra.mxu0 %v5156
    %5191 = vmatprep.subr.mxu0 0.0
    %5192 = vmatpush1.msra.mxu0 %v5155
    %5193 = vmatprep.subr.mxu0 0.0
    %5194 = vmatpush1.msra.mxu0 %v5154
    %5195 = vmatprep.subr.mxu0 0.0
    %5196 = vmatpush1.msra.mxu0 %v5153
    %5197 = vmatprep.subr.mxu0 0.0
    %5198 = vmatpush2.msra.mxu0 0.0
    %5199 = vmatprep.subr.mxu0 0.0
    %5200 = vmatpush2.msra.mxu0 0.0
    %5201 = vmatprep.subr.mxu0 0.0
    %5202 = vmatpush2.msra.mxu0 0.0
    %5203 = vmatprep.subr.mxu0 0.0
    %5204 = vmatpush2.msra.mxu0 0.0
    %5205 = vmatprep.subr.mxu0 0.0
    %5206 = vmatpush2.msra.mxu0 0.0
    %5207 = vmatprep.subr.mxu0 0.0
    %5208 = vmatpush2.msra.mxu0 0.0
    %5209 = vmatprep.subr.mxu0 0.0
    %5210 = vmatpush2.msra.mxu0 0.0
    %5211 = vmatprep.subr.mxu0 0.0
    %5212 = vmatpush2.msra.mxu0 0.0
    %5213 = vmatprep.subr.mxu0 0.0
    %5214 = vmatpush2.msra.mxu0 0.0
    %5215 = vmatprep.subr.mxu0 0.0
    %5216 = vmatpush2.msra.mxu0 0.0
    %5217 = vmatprep.subr.mxu0 0.0
    %5218 = vmatpush2.msra.mxu0 0.0
    %5219 = vmatprep.subr.mxu0 0.0
    %5220 = vmatpush2.msra.mxu0 0.0
    %5221 = vmatprep.subr.mxu0 0.0
    %5222 = vmatpush2.msra.mxu0 0.0
    %5223 = vmatprep.subr.mxu0 0.0
    %5224 = vmatpush2.msra.mxu0 0.0
    %5225 = vmatprep.subr.mxu0 0.0
    %5226 = vmatpush2.msra.mxu0 0.0
    %5227 = vmatprep.subr.mxu0 0.0
    %5228 = vmatpush2.msra.mxu0 0.0
    %5229 = vmatprep.mubr.f32.mxu0 0.0
    %5230 = vmatmul.mubr.f32.gmra.mxu0 %v5163
    %v5231 = vpop.f32.mrf.mxu0
    %v5232 = vadd.f32 %v5161, %v5231
    %v5233 = vpop.f32.mrf.mxu0
    %5234 = vdwg.mxu0
    %5235 = vst.msk [vmem:[#allocation5 + $0x1] sm:$0x1] %vm3665, %v5232
    // Predicated region
    $region66: #{q_forward.1} parent=1 // pred_check
      _
    $region67: #{q_forward.1} parent=1 // pred_check_branch
      %5237 = sbr.rel (0) target = $region69
    $region68: #{q_forward.1} parent=1 // pred_region
      %s5239 = ssub.s32 32, 32
      %5240 = vsyncadd [#allocation4], %s5239
      %s5242 = sshll.u32 [#allocation5], 4
      %s5243 = int_to_ptr.vmem [resolvable:$true] %s5242
      %5245 = dma.vmem_to_hbm [thread:$0]  %s5243, 32, %s15, [#allocation4]
    $region69: #{q_forward.1} parent=1 // pred_fallthru
      _
    // Predicated region
    $region70: #{q_forward.1} parent=1 // pred_check
      _
    $region71: #{q_forward.1} parent=1 // pred_check_branch
      %5247 = sbr.rel (0) target = $region73
    $region72: #{q_forward.1} parent=1 // pred_region
      %5248 = dma.done [#allocation4], 32
    $region73: #{q_forward.1} parent=1 // pred_fallthru
      _
    %5249 = vsyncpa [#allocation3], 1
    %5250 = vsyncpa [#allocation4], 1

</llo_original>
